<compile_context>
chip_gen: v7x
topology: tpu7x:2x2x1
jax: 0.10.0
libtpu: 0.0.40
codegen_flags: <defaults>
</compile_context>

<pallas_src>
import functools

import jax
import jax.numpy as jnp
from jax.experimental import pallas as pl
from jax.experimental.pallas import tpu as pltpu


_SUBLANE = 8  # f32 sublane count; batch is padded up to a multiple of this


def _make_kernel(num_layers, lstm_hidden, seq_len, batch_pad):
    """Kernel factory. Gate order follows PyTorch LSTM: i, f, g, o."""
    H = lstm_hidden
    T = seq_len
    Bp = batch_pad

    def kernel(x_ref, *refs):
        w_refs = refs[:-1]
        out_ref = refs[-1]

        # ---- hoist all weight loads out of the time loop (loaded once) ----
        w_ih = [w_refs[3 * l][...] for l in range(num_layers)]       # (in_l, 4H)
        w_hh = [w_refs[3 * l + 1][...] for l in range(num_layers)]   # (H, 4H)
        bias = [w_refs[3 * l + 2][...] for l in range(num_layers)]   # (1, 4H)
        w1 = w_refs[3 * num_layers][...]                             # (H, L)
        b1 = w_refs[3 * num_layers + 1][...]                         # (1, L)
        w2 = w_refs[3 * num_layers + 2][...]                         # (L, O)
        b2 = w_refs[3 * num_layers + 3][...]                         # (1, O)

        h = [jnp.zeros((Bp, H), jnp.float32) for _ in range(num_layers)]
        c = [jnp.zeros((Bp, H), jnp.float32) for _ in range(num_layers)]

        # Fully-unrolled recurrence; h/c stay in vregs (no VMEM round-trips).
        # For long T this would become a lax.fori_loop with VMEM-scratch state.
        h_last = []
        for t in range(T):
            inp = x_ref[t]                                           # (Bp, in_l)
            for layer in range(num_layers):
                gates = (
                    jnp.dot(inp, w_ih[layer],
                            preferred_element_type=jnp.float32)
                    + jnp.dot(h[layer], w_hh[layer],
                              preferred_element_type=jnp.float32)
                    + bias[layer]
                )                                                    # (Bp, 4H)
                i_g = jax.nn.sigmoid(gates[:, 0 * H:1 * H])
                f_g = jax.nn.sigmoid(gates[:, 1 * H:2 * H])
                g_g = jnp.tanh(gates[:, 2 * H:3 * H])
                o_g = jax.nn.sigmoid(gates[:, 3 * H:4 * H])
                c_new = f_g * c[layer] + i_g * g_g
                h_new = o_g * jnp.tanh(c_new)
                h[layer] = h_new
                c[layer] = c_new
                inp = h_new                                          # next layer
            h_last.append(inp)

        # ---- epilogue: MLP on the stacked (T*Bp, H) slab, single store ----
        h_all = jnp.concatenate(h_last, axis=0)                      # (T*Bp, H)
        hid = jnp.dot(h_all, w1, preferred_element_type=jnp.float32) + b1
        hid = jnp.maximum(hid, 0.0)                                  # ReLU
        out = jnp.dot(hid, w2, preferred_element_type=jnp.float32) + b2
        out_ref[...] = out.astype(out_ref.dtype)

    return kernel


def decoder_lstm_forward(x, params, *, num_layers, lstm_hidden, output_size):
    """x: (B, T, hidden_size) -> (B, T, output_size). params: flat torch-layout list."""
    B, T, _ = x.shape
    Bp = -(-B // _SUBLANE) * _SUBLANE

    # Host-side layout prep (outside the kernel): time-major activations,
    # batch padded to a sublane multiple, weights pre-transposed so the kernel
    # feeds the MXU directly with zero per-step layout work.
    x_tm = jnp.transpose(x, (1, 0, 2)).astype(jnp.float32)           # (T, B, F)
    x_tm = jnp.pad(x_tm, ((0, 0), (0, Bp - B), (0, 0)))              # (T, Bp, F)

    kparams = []
    for layer in range(num_layers):
        kparams.append(jnp.transpose(params[3 * layer]))             # (in_l, 4H)
        kparams.append(jnp.transpose(params[3 * layer + 1]))         # (H, 4H)
        kparams.append(params[3 * layer + 2])                        # (1, 4H)
    kparams.append(jnp.transpose(params[3 * num_layers]))            # (H, L)
    kparams.append(params[3 * num_layers + 1])                       # (1, L)
    kparams.append(jnp.transpose(params[3 * num_layers + 2]))        # (L, O)
    kparams.append(params[3 * num_layers + 3])                       # (1, O)

    kernel = _make_kernel(num_layers, lstm_hidden, T, Bp)
    vmem_spec = pl.BlockSpec(memory_space=pltpu.MemorySpace.VMEM)

    out_flat = pl.pallas_call(
        kernel,
        out_shape=jax.ShapeDtypeStruct((T * Bp, output_size), jnp.float32),
        in_specs=[vmem_spec] * (1 + len(kparams)),
        out_specs=vmem_spec,
    )(x_tm, *kparams)

    out = out_flat.reshape(T, Bp, output_size)[:, :B, :]             # drop pad rows
    return jnp.transpose(out, (1, 0, 2))                             # (B, T, O)


def reference_forward(x, params, *, num_layers, lstm_hidden):
    """Pure-JAX reference (mirrors torch.nn.LSTM + Linear/ReLU/Linear)."""
    B, T, _ = x.shape
    H = lstm_hidden
    seq = x.astype(jnp.float32)

    for layer in range(num_layers):
        w_ih = params[3 * layer]
        w_hh = params[3 * layer + 1]
        bias = params[3 * layer + 2][0]

        def step(carry, xt, w_ih=w_ih, w_hh=w_hh, bias=bias):
            h, c = carry
            gates = xt @ w_ih.T + h @ w_hh.T + bias
            i = jax.nn.sigmoid(gates[:, 0 * H:1 * H])
            f = jax.nn.sigmoid(gates[:, 1 * H:2 * H])
            g = jnp.tanh(gates[:, 2 * H:3 * H])
            o = jax.nn.sigmoid(gates[:, 3 * H:4 * H])
            c_new = f * c + i * g
            h_new = o * jnp.tanh(c_new)
            return (h_new, c_new), h_new

        init = (jnp.zeros((B, H), jnp.float32), jnp.zeros((B, H), jnp.float32))
        _, ys = jax.lax.scan(step, init, jnp.transpose(seq, (1, 0, 2)))
        seq = jnp.transpose(ys, (1, 0, 2))

    w1, b1 = params[3 * num_layers], params[3 * num_layers + 1][0]
    w2, b2 = params[3 * num_layers + 2], params[3 * num_layers + 3][0]
    hid = jnp.maximum(seq @ w1.T + b1, 0.0)
    return hid @ w2.T + b2


if __name__ == "__main__":
    # Module hyper-params (small, TPU-friendly):
    #   hidden_size     = 32  -> LSTM input feature size
    #   lin_output_size = 32  -> LSTM hidden size (also lin_1 input)
    #   lin_hidden_size = 64  -> lin_1 output / lin_2 input
    #   output_size     = 16  -> final output features
    #   num_layers      = 2
    B, T = 2, 8
    hidden_size, lin_output_size = 32, 32
    lin_hidden_size, output_size = 64, 16
    num_layers = 2

    key = jax.random.PRNGKey(0)

    def uniform(key, shape, scale):
        return jax.random.uniform(key, shape, jnp.float32, -scale, scale)

    params = []
    k = 1.0 / jnp.sqrt(jnp.float32(lin_output_size))
    for layer in range(num_layers):
        in_f = hidden_size if layer == 0 else lin_output_size
        key, k1, k2, k3, k4 = jax.random.split(key, 5)
        w_ih = uniform(k1, (4 * lin_output_size, in_f), k)
        w_hh = uniform(k2, (4 * lin_output_size, lin_output_size), k)
        b_ih = uniform(k3, (4 * lin_output_size,), k)
        b_hh = uniform(k4, (4 * lin_output_size,), k)
        params += [w_ih, w_hh, (b_ih + b_hh).reshape(1, -1)]

    key, k1, k2, k3, k4 = jax.random.split(key, 5)
    s1 = 1.0 / jnp.sqrt(jnp.float32(lin_output_size))
    s2 = 1.0 / jnp.sqrt(jnp.float32(lin_hidden_size))
    params += [
        uniform(k1, (lin_hidden_size, lin_output_size), s1),
        uniform(k2, (lin_hidden_size,), s1).reshape(1, -1),
        uniform(k3, (output_size, lin_hidden_size), s2),
        uniform(k4, (output_size,), s2).reshape(1, -1),
    ]

    key, kx = jax.random.split(key)
    x = jax.random.normal(kx, (B, T, hidden_size), jnp.float32)

    fwd = functools.partial(
        decoder_lstm_forward,
        num_layers=num_layers,
        lstm_hidden=lin_output_size,
        output_size=output_size,
    )
    out = jax.jit(fwd)(x, params)
    out = jax.block_until_ready(out)

    ref = reference_forward(x, params, num_layers=num_layers, lstm_hidden=lin_output_size)
    assert out.shape == (B, T, output_size)
    assert jnp.allclose(out, ref, atol=1e-4, rtol=1e-4), "mismatch vs JAX reference"

    print("KERNEL_OK")
</pallas_src>

<mosaic_0001>
module attributes {stable_mosaic.version = 11 : i64} {
  func.func @kernel(%arg0: memref<8x8x32xf32, #tpu.memory_space<vmem>>, %arg1: memref<32x128xf32, #tpu.memory_space<vmem>>, %arg2: memref<32x128xf32, #tpu.memory_space<vmem>>, %arg3: memref<1x128xf32, #tpu.memory_space<vmem>>, %arg4: memref<32x128xf32, #tpu.memory_space<vmem>>, %arg5: memref<32x128xf32, #tpu.memory_space<vmem>>, %arg6: memref<1x128xf32, #tpu.memory_space<vmem>>, %arg7: memref<32x64xf32, #tpu.memory_space<vmem>>, %arg8: memref<1x64xf32, #tpu.memory_space<vmem>>, %arg9: memref<64x16xf32, #tpu.memory_space<vmem>>, %arg10: memref<1x16xf32, #tpu.memory_space<vmem>>, %arg11: memref<64x16xf32, #tpu.memory_space<vmem>>) attributes {dimension_semantics = [], scalar_prefetch = 0 : i64, scratch_operands = 0 : i64, tpu.core_type = #tpu.core_type<tc>} {
    %c0 = arith.constant 0 : index
    %c0_0 = arith.constant 0 : index
    %0 = vector.load %arg1[%c0, %c0_0] : memref<32x128xf32, #tpu.memory_space<vmem>>, vector<32x128xf32>
    %c0_1 = arith.constant 0 : index
    %c0_2 = arith.constant 0 : index
    %1 = vector.load %arg4[%c0_1, %c0_2] : memref<32x128xf32, #tpu.memory_space<vmem>>, vector<32x128xf32>
    %c0_3 = arith.constant 0 : index
    %c0_4 = arith.constant 0 : index
    %2 = vector.load %arg2[%c0_3, %c0_4] : memref<32x128xf32, #tpu.memory_space<vmem>>, vector<32x128xf32>
    %c0_5 = arith.constant 0 : index
    %c0_6 = arith.constant 0 : index
    %3 = vector.load %arg5[%c0_5, %c0_6] : memref<32x128xf32, #tpu.memory_space<vmem>>, vector<32x128xf32>
    %c0_7 = arith.constant 0 : index
    %c0_8 = arith.constant 0 : index
    %4 = vector.load %arg3[%c0_7, %c0_8] : memref<1x128xf32, #tpu.memory_space<vmem>>, vector<1x128xf32>
    %c0_9 = arith.constant 0 : index
    %c0_10 = arith.constant 0 : index
    %5 = vector.load %arg6[%c0_9, %c0_10] : memref<1x128xf32, #tpu.memory_space<vmem>>, vector<1x128xf32>
    %c0_11 = arith.constant 0 : index
    %c0_12 = arith.constant 0 : index
    %6 = vector.load %arg7[%c0_11, %c0_12] : memref<32x64xf32, #tpu.memory_space<vmem>>, vector<32x64xf32>
    %c0_13 = arith.constant 0 : index
    %c0_14 = arith.constant 0 : index
    %7 = vector.load %arg8[%c0_13, %c0_14] : memref<1x64xf32, #tpu.memory_space<vmem>>, vector<1x64xf32>
    %c0_15 = arith.constant 0 : index
    %c0_16 = arith.constant 0 : index
    %8 = vector.load %arg9[%c0_15, %c0_16] : memref<64x16xf32, #tpu.memory_space<vmem>>, vector<64x16xf32>
    %c0_17 = arith.constant 0 : index
    %c0_18 = arith.constant 0 : index
    %9 = vector.load %arg10[%c0_17, %c0_18] : memref<1x16xf32, #tpu.memory_space<vmem>>, vector<1x16xf32>
    %cst = arith.constant 0.000000e+00 : f32
    %10 = vector.broadcast %cst : f32 to vector<8x32xf32>
    %cst_19 = arith.constant 0.000000e+00 : f32
    %11 = vector.broadcast %cst_19 : f32 to vector<8x32xf32>
    %cst_20 = arith.constant 0.000000e+00 : f32
    %12 = vector.broadcast %cst_20 : f32 to vector<8x32xf32>
    %cst_21 = arith.constant 0.000000e+00 : f32
    %13 = vector.broadcast %cst_21 : f32 to vector<8x32xf32>
    %c0_22 = arith.constant 0 : index
    %c0_23 = arith.constant 0 : index
    %c0_24 = arith.constant 0 : index
    %14 = vector.load %arg0[%c0_22, %c0_23, %c0_24] : memref<8x8x32xf32, #tpu.memory_space<vmem>>, vector<1x8x32xf32>
    %15 = vector.shape_cast %14 : vector<1x8x32xf32> to vector<8x32xf32>
    %cst_25 = arith.constant dense<0.000000e+00> : vector<8x128xf32>
    %16 = tpu.matmul %15, %0, %cst_25 {dimension_numbers = #tpu.dot_dimension_numbers<[1], [0], [0], [1], [0, 0, 1, 1], [], []>} : vector<8x32xf32>, vector<32x128xf32>, vector<8x128xf32> -> vector<8x128xf32>
    %cst_26 = arith.constant dense<0.000000e+00> : vector<8x128xf32>
    %17 = tpu.matmul %10, %2, %cst_26 {dimension_numbers = #tpu.dot_dimension_numbers<[1], [0], [0], [1], [0, 0, 1, 1], [], []>} : vector<8x32xf32>, vector<32x128xf32>, vector<8x128xf32> -> vector<8x128xf32>
    %18 = arith.addf %16, %17 : vector<8x128xf32>
    %19 = vector.broadcast %4 : vector<1x128xf32> to vector<8x128xf32>
    %20 = arith.addf %18, %19 : vector<8x128xf32>
    %21 = vector.extract_strided_slice %20 {offsets = [0, 0], sizes = [8, 32], strides = [1, 1]} : vector<8x128xf32> to vector<8x32xf32>
    %22 = arith.negf %21 : vector<8x32xf32>
    %23 = math.exp %22 : vector<8x32xf32>
    %cst_27 = arith.constant 1.000000e+00 : f32
    %24 = vector.broadcast %cst_27 : f32 to vector<8x32xf32>
    %25 = arith.addf %24, %23 : vector<8x32xf32>
    %26 = arith.divf %24, %25 : vector<8x32xf32>
    %27 = vector.extract_strided_slice %20 {offsets = [0, 32], sizes = [8, 32], strides = [1, 1]} : vector<8x128xf32> to vector<8x32xf32>
    %28 = arith.negf %27 : vector<8x32xf32>
    %29 = math.exp %28 : vector<8x32xf32>
    %cst_28 = arith.constant 1.000000e+00 : f32
    %30 = vector.broadcast %cst_28 : f32 to vector<8x32xf32>
    %31 = arith.addf %30, %29 : vector<8x32xf32>
    %32 = arith.divf %30, %31 : vector<8x32xf32>
    %33 = vector.extract_strided_slice %20 {offsets = [0, 64], sizes = [8, 32], strides = [1, 1]} : vector<8x128xf32> to vector<8x32xf32>
    %34 = math.tanh %33 : vector<8x32xf32>
    %35 = vector.extract_strided_slice %20 {offsets = [0, 96], sizes = [8, 32], strides = [1, 1]} : vector<8x128xf32> to vector<8x32xf32>
    %36 = arith.negf %35 : vector<8x32xf32>
    %37 = math.exp %36 : vector<8x32xf32>
    %cst_29 = arith.constant 1.000000e+00 : f32
    %38 = vector.broadcast %cst_29 : f32 to vector<8x32xf32>
    %39 = arith.addf %38, %37 : vector<8x32xf32>
    %40 = arith.divf %38, %39 : vector<8x32xf32>
    %41 = arith.mulf %32, %12 : vector<8x32xf32>
    %42 = arith.mulf %26, %34 : vector<8x32xf32>
    %43 = arith.addf %41, %42 : vector<8x32xf32>
    %44 = math.tanh %43 : vector<8x32xf32>
    %45 = arith.mulf %40, %44 : vector<8x32xf32>
    %cst_30 = arith.constant dense<0.000000e+00> : vector<8x128xf32>
    %46 = tpu.matmul %45, %1, %cst_30 {dimension_numbers = #tpu.dot_dimension_numbers<[1], [0], [0], [1], [0, 0, 1, 1], [], []>} : vector<8x32xf32>, vector<32x128xf32>, vector<8x128xf32> -> vector<8x128xf32>
    %cst_31 = arith.constant dense<0.000000e+00> : vector<8x128xf32>
    %47 = tpu.matmul %11, %3, %cst_31 {dimension_numbers = #tpu.dot_dimension_numbers<[1], [0], [0], [1], [0, 0, 1, 1], [], []>} : vector<8x32xf32>, vector<32x128xf32>, vector<8x128xf32> -> vector<8x128xf32>
    %48 = arith.addf %46, %47 : vector<8x128xf32>
    %49 = vector.broadcast %5 : vector<1x128xf32> to vector<8x128xf32>
    %50 = arith.addf %48, %49 : vector<8x128xf32>
    %51 = vector.extract_strided_slice %50 {offsets = [0, 0], sizes = [8, 32], strides = [1, 1]} : vector<8x128xf32> to vector<8x32xf32>
    %52 = arith.negf %51 : vector<8x32xf32>
    %53 = math.exp %52 : vector<8x32xf32>
    %cst_32 = arith.constant 1.000000e+00 : f32
    %54 = vector.broadcast %cst_32 : f32 to vector<8x32xf32>
    %55 = arith.addf %54, %53 : vector<8x32xf32>
    %56 = arith.divf %54, %55 : vector<8x32xf32>
    %57 = vector.extract_strided_slice %50 {offsets = [0, 32], sizes = [8, 32], strides = [1, 1]} : vector<8x128xf32> to vector<8x32xf32>
    %58 = arith.negf %57 : vector<8x32xf32>
    %59 = math.exp %58 : vector<8x32xf32>
    %cst_33 = arith.constant 1.000000e+00 : f32
    %60 = vector.broadcast %cst_33 : f32 to vector<8x32xf32>
    %61 = arith.addf %60, %59 : vector<8x32xf32>
    %62 = arith.divf %60, %61 : vector<8x32xf32>
    %63 = vector.extract_strided_slice %50 {offsets = [0, 64], sizes = [8, 32], strides = [1, 1]} : vector<8x128xf32> to vector<8x32xf32>
    %64 = math.tanh %63 : vector<8x32xf32>
    %65 = vector.extract_strided_slice %50 {offsets = [0, 96], sizes = [8, 32], strides = [1, 1]} : vector<8x128xf32> to vector<8x32xf32>
    %66 = arith.negf %65 : vector<8x32xf32>
    %67 = math.exp %66 : vector<8x32xf32>
    %cst_34 = arith.constant 1.000000e+00 : f32
    %68 = vector.broadcast %cst_34 : f32 to vector<8x32xf32>
    %69 = arith.addf %68, %67 : vector<8x32xf32>
    %70 = arith.divf %68, %69 : vector<8x32xf32>
    %71 = arith.mulf %62, %13 : vector<8x32xf32>
    %72 = arith.mulf %56, %64 : vector<8x32xf32>
    %73 = arith.addf %71, %72 : vector<8x32xf32>
    %74 = math.tanh %73 : vector<8x32xf32>
    %75 = arith.mulf %70, %74 : vector<8x32xf32>
    %c1 = arith.constant 1 : index
    %c0_35 = arith.constant 0 : index
    %c0_36 = arith.constant 0 : index
    %76 = vector.load %arg0[%c1, %c0_35, %c0_36] : memref<8x8x32xf32, #tpu.memory_space<vmem>>, vector<1x8x32xf32>
    %77 = vector.shape_cast %76 : vector<1x8x32xf32> to vector<8x32xf32>
    %cst_37 = arith.constant dense<0.000000e+00> : vector<8x128xf32>
    %78 = tpu.matmul %77, %0, %cst_37 {dimension_numbers = #tpu.dot_dimension_numbers<[1], [0], [0], [1], [0, 0, 1, 1], [], []>} : vector<8x32xf32>, vector<32x128xf32>, vector<8x128xf32> -> vector<8x128xf32>
    %cst_38 = arith.constant dense<0.000000e+00> : vector<8x128xf32>
    %79 = tpu.matmul %45, %2, %cst_38 {dimension_numbers = #tpu.dot_dimension_numbers<[1], [0], [0], [1], [0, 0, 1, 1], [], []>} : vector<8x32xf32>, vector<32x128xf32>, vector<8x128xf32> -> vector<8x128xf32>
    %80 = arith.addf %78, %79 : vector<8x128xf32>
    %81 = vector.broadcast %4 : vector<1x128xf32> to vector<8x128xf32>
    %82 = arith.addf %80, %81 : vector<8x128xf32>
    %83 = vector.extract_strided_slice %82 {offsets = [0, 0], sizes = [8, 32], strides = [1, 1]} : vector<8x128xf32> to vector<8x32xf32>
    %84 = arith.negf %83 : vector<8x32xf32>
    %85 = math.exp %84 : vector<8x32xf32>
    %cst_39 = arith.constant 1.000000e+00 : f32
    %86 = vector.broadcast %cst_39 : f32 to vector<8x32xf32>
    %87 = arith.addf %86, %85 : vector<8x32xf32>
    %88 = arith.divf %86, %87 : vector<8x32xf32>
    %89 = vector.extract_strided_slice %82 {offsets = [0, 32], sizes = [8, 32], strides = [1, 1]} : vector<8x128xf32> to vector<8x32xf32>
    %90 = arith.negf %89 : vector<8x32xf32>
    %91 = math.exp %90 : vector<8x32xf32>
    %cst_40 = arith.constant 1.000000e+00 : f32
    %92 = vector.broadcast %cst_40 : f32 to vector<8x32xf32>
    %93 = arith.addf %92, %91 : vector<8x32xf32>
    %94 = arith.divf %92, %93 : vector<8x32xf32>
    %95 = vector.extract_strided_slice %82 {offsets = [0, 64], sizes = [8, 32], strides = [1, 1]} : vector<8x128xf32> to vector<8x32xf32>
    %96 = math.tanh %95 : vector<8x32xf32>
    %97 = vector.extract_strided_slice %82 {offsets = [0, 96], sizes = [8, 32], strides = [1, 1]} : vector<8x128xf32> to vector<8x32xf32>
    %98 = arith.negf %97 : vector<8x32xf32>
    %99 = math.exp %98 : vector<8x32xf32>
    %cst_41 = arith.constant 1.000000e+00 : f32
    %100 = vector.broadcast %cst_41 : f32 to vector<8x32xf32>
    %101 = arith.addf %100, %99 : vector<8x32xf32>
    %102 = arith.divf %100, %101 : vector<8x32xf32>
    %103 = arith.mulf %94, %43 : vector<8x32xf32>
    %104 = arith.mulf %88, %96 : vector<8x32xf32>
    %105 = arith.addf %103, %104 : vector<8x32xf32>
    %106 = math.tanh %105 : vector<8x32xf32>
    %107 = arith.mulf %102, %106 : vector<8x32xf32>
    %cst_42 = arith.constant dense<0.000000e+00> : vector<8x128xf32>
    %108 = tpu.matmul %107, %1, %cst_42 {dimension_numbers = #tpu.dot_dimension_numbers<[1], [0], [0], [1], [0, 0, 1, 1], [], []>} : vector<8x32xf32>, vector<32x128xf32>, vector<8x128xf32> -> vector<8x128xf32>
    %cst_43 = arith.constant dense<0.000000e+00> : vector<8x128xf32>
    %109 = tpu.matmul %75, %3, %cst_43 {dimension_numbers = #tpu.dot_dimension_numbers<[1], [0], [0], [1], [0, 0, 1, 1], [], []>} : vector<8x32xf32>, vector<32x128xf32>, vector<8x128xf32> -> vector<8x128xf32>
    %110 = arith.addf %108, %109 : vector<8x128xf32>
    %111 = vector.broadcast %5 : vector<1x128xf32> to vector<8x128xf32>
    %112 = arith.addf %110, %111 : vector<8x128xf32>
    %113 = vector.extract_strided_slice %112 {offsets = [0, 0], sizes = [8, 32], strides = [1, 1]} : vector<8x128xf32> to vector<8x32xf32>
    %114 = arith.negf %113 : vector<8x32xf32>
    %115 = math.exp %114 : vector<8x32xf32>
    %cst_44 = arith.constant 1.000000e+00 : f32
    %116 = vector.broadcast %cst_44 : f32 to vector<8x32xf32>
    %117 = arith.addf %116, %115 : vector<8x32xf32>
    %118 = arith.divf %116, %117 : vector<8x32xf32>
    %119 = vector.extract_strided_slice %112 {offsets = [0, 32], sizes = [8, 32], strides = [1, 1]} : vector<8x128xf32> to vector<8x32xf32>
    %120 = arith.negf %119 : vector<8x32xf32>
    %121 = math.exp %120 : vector<8x32xf32>
    %cst_45 = arith.constant 1.000000e+00 : f32
    %122 = vector.broadcast %cst_45 : f32 to vector<8x32xf32>
    %123 = arith.addf %122, %121 : vector<8x32xf32>
    %124 = arith.divf %122, %123 : vector<8x32xf32>
    %125 = vector.extract_strided_slice %112 {offsets = [0, 64], sizes = [8, 32], strides = [1, 1]} : vector<8x128xf32> to vector<8x32xf32>
    %126 = math.tanh %125 : vector<8x32xf32>
    %127 = vector.extract_strided_slice %112 {offsets = [0, 96], sizes = [8, 32], strides = [1, 1]} : vector<8x128xf32> to vector<8x32xf32>
    %128 = arith.negf %127 : vector<8x32xf32>
    %129 = math.exp %128 : vector<8x32xf32>
    %cst_46 = arith.constant 1.000000e+00 : f32
    %130 = vector.broadcast %cst_46 : f32 to vector<8x32xf32>
    %131 = arith.addf %130, %129 : vector<8x32xf32>
    %132 = arith.divf %130, %131 : vector<8x32xf32>
    %133 = arith.mulf %124, %73 : vector<8x32xf32>
    %134 = arith.mulf %118, %126 : vector<8x32xf32>
    %135 = arith.addf %133, %134 : vector<8x32xf32>
    %136 = math.tanh %135 : vector<8x32xf32>
    %137 = arith.mulf %132, %136 : vector<8x32xf32>
    %c2 = arith.constant 2 : index
    %c0_47 = arith.constant 0 : index
    %c0_48 = arith.constant 0 : index
    %138 = vector.load %arg0[%c2, %c0_47, %c0_48] : memref<8x8x32xf32, #tpu.memory_space<vmem>>, vector<1x8x32xf32>
    %139 = vector.shape_cast %138 : vector<1x8x32xf32> to vector<8x32xf32>
    %cst_49 = arith.constant dense<0.000000e+00> : vector<8x128xf32>
    %140 = tpu.matmul %139, %0, %cst_49 {dimension_numbers = #tpu.dot_dimension_numbers<[1], [0], [0], [1], [0, 0, 1, 1], [], []>} : vector<8x32xf32>, vector<32x128xf32>, vector<8x128xf32> -> vector<8x128xf32>
    %cst_50 = arith.constant dense<0.000000e+00> : vector<8x128xf32>
    %141 = tpu.matmul %107, %2, %cst_50 {dimension_numbers = #tpu.dot_dimension_numbers<[1], [0], [0], [1], [0, 0, 1, 1], [], []>} : vector<8x32xf32>, vector<32x128xf32>, vector<8x128xf32> -> vector<8x128xf32>
    %142 = arith.addf %140, %141 : vector<8x128xf32>
    %143 = vector.broadcast %4 : vector<1x128xf32> to vector<8x128xf32>
    %144 = arith.addf %142, %143 : vector<8x128xf32>
    %145 = vector.extract_strided_slice %144 {offsets = [0, 0], sizes = [8, 32], strides = [1, 1]} : vector<8x128xf32> to vector<8x32xf32>
    %146 = arith.negf %145 : vector<8x32xf32>
    %147 = math.exp %146 : vector<8x32xf32>
    %cst_51 = arith.constant 1.000000e+00 : f32
    %148 = vector.broadcast %cst_51 : f32 to vector<8x32xf32>
    %149 = arith.addf %148, %147 : vector<8x32xf32>
    %150 = arith.divf %148, %149 : vector<8x32xf32>
    %151 = vector.extract_strided_slice %144 {offsets = [0, 32], sizes = [8, 32], strides = [1, 1]} : vector<8x128xf32> to vector<8x32xf32>
    %152 = arith.negf %151 : vector<8x32xf32>
    %153 = math.exp %152 : vector<8x32xf32>
    %cst_52 = arith.constant 1.000000e+00 : f32
    %154 = vector.broadcast %cst_52 : f32 to vector<8x32xf32>
    %155 = arith.addf %154, %153 : vector<8x32xf32>
    %156 = arith.divf %154, %155 : vector<8x32xf32>
    %157 = vector.extract_strided_slice %144 {offsets = [0, 64], sizes = [8, 32], strides = [1, 1]} : vector<8x128xf32> to vector<8x32xf32>
    %158 = math.tanh %157 : vector<8x32xf32>
    %159 = vector.extract_strided_slice %144 {offsets = [0, 96], sizes = [8, 32], strides = [1, 1]} : vector<8x128xf32> to vector<8x32xf32>
    %160 = arith.negf %159 : vector<8x32xf32>
    %161 = math.exp %160 : vector<8x32xf32>
    %cst_53 = arith.constant 1.000000e+00 : f32
    %162 = vector.broadcast %cst_53 : f32 to vector<8x32xf32>
    %163 = arith.addf %162, %161 : vector<8x32xf32>
    %164 = arith.divf %162, %163 : vector<8x32xf32>
    %165 = arith.mulf %156, %105 : vector<8x32xf32>
    %166 = arith.mulf %150, %158 : vector<8x32xf32>
    %167 = arith.addf %165, %166 : vector<8x32xf32>
    %168 = math.tanh %167 : vector<8x32xf32>
    %169 = arith.mulf %164, %168 : vector<8x32xf32>
    %cst_54 = arith.constant dense<0.000000e+00> : vector<8x128xf32>
    %170 = tpu.matmul %169, %1, %cst_54 {dimension_numbers = #tpu.dot_dimension_numbers<[1], [0], [0], [1], [0, 0, 1, 1], [], []>} : vector<8x32xf32>, vector<32x128xf32>, vector<8x128xf32> -> vector<8x128xf32>
    %cst_55 = arith.constant dense<0.000000e+00> : vector<8x128xf32>
    %171 = tpu.matmul %137, %3, %cst_55 {dimension_numbers = #tpu.dot_dimension_numbers<[1], [0], [0], [1], [0, 0, 1, 1], [], []>} : vector<8x32xf32>, vector<32x128xf32>, vector<8x128xf32> -> vector<8x128xf32>
    %172 = arith.addf %170, %171 : vector<8x128xf32>
    %173 = vector.broadcast %5 : vector<1x128xf32> to vector<8x128xf32>
    %174 = arith.addf %172, %173 : vector<8x128xf32>
    %175 = vector.extract_strided_slice %174 {offsets = [0, 0], sizes = [8, 32], strides = [1, 1]} : vector<8x128xf32> to vector<8x32xf32>
    %176 = arith.negf %175 : vector<8x32xf32>
    %177 = math.exp %176 : vector<8x32xf32>
    %cst_56 = arith.constant 1.000000e+00 : f32
    %178 = vector.broadcast %cst_56 : f32 to vector<8x32xf32>
    %179 = arith.addf %178, %177 : vector<8x32xf32>
    %180 = arith.divf %178, %179 : vector<8x32xf32>
    %181 = vector.extract_strided_slice %174 {offsets = [0, 32], sizes = [8, 32], strides = [1, 1]} : vector<8x128xf32> to vector<8x32xf32>
    %182 = arith.negf %181 : vector<8x32xf32>
    %183 = math.exp %182 : vector<8x32xf32>
    %cst_57 = arith.constant 1.000000e+00 : f32
    %184 = vector.broadcast %cst_57 : f32 to vector<8x32xf32>
    %185 = arith.addf %184, %183 : vector<8x32xf32>
    %186 = arith.divf %184, %185 : vector<8x32xf32>
    %187 = vector.extract_strided_slice %174 {offsets = [0, 64], sizes = [8, 32], strides = [1, 1]} : vector<8x128xf32> to vector<8x32xf32>
    %188 = math.tanh %187 : vector<8x32xf32>
    %189 = vector.extract_strided_slice %174 {offsets = [0, 96], sizes = [8, 32], strides = [1, 1]} : vector<8x128xf32> to vector<8x32xf32>
    %190 = arith.negf %189 : vector<8x32xf32>
    %191 = math.exp %190 : vector<8x32xf32>
    %cst_58 = arith.constant 1.000000e+00 : f32
    %192 = vector.broadcast %cst_58 : f32 to vector<8x32xf32>
    %193 = arith.addf %192, %191 : vector<8x32xf32>
    %194 = arith.divf %192, %193 : vector<8x32xf32>
    %195 = arith.mulf %186, %135 : vector<8x32xf32>
    %196 = arith.mulf %180, %188 : vector<8x32xf32>
    %197 = arith.addf %195, %196 : vector<8x32xf32>
    %198 = math.tanh %197 : vector<8x32xf32>
    %199 = arith.mulf %194, %198 : vector<8x32xf32>
    %c3 = arith.constant 3 : index
    %c0_59 = arith.constant 0 : index
    %c0_60 = arith.constant 0 : index
    %200 = vector.load %arg0[%c3, %c0_59, %c0_60] : memref<8x8x32xf32, #tpu.memory_space<vmem>>, vector<1x8x32xf32>
    %201 = vector.shape_cast %200 : vector<1x8x32xf32> to vector<8x32xf32>
    %cst_61 = arith.constant dense<0.000000e+00> : vector<8x128xf32>
    %202 = tpu.matmul %201, %0, %cst_61 {dimension_numbers = #tpu.dot_dimension_numbers<[1], [0], [0], [1], [0, 0, 1, 1], [], []>} : vector<8x32xf32>, vector<32x128xf32>, vector<8x128xf32> -> vector<8x128xf32>
    %cst_62 = arith.constant dense<0.000000e+00> : vector<8x128xf32>
    %203 = tpu.matmul %169, %2, %cst_62 {dimension_numbers = #tpu.dot_dimension_numbers<[1], [0], [0], [1], [0, 0, 1, 1], [], []>} : vector<8x32xf32>, vector<32x128xf32>, vector<8x128xf32> -> vector<8x128xf32>
    %204 = arith.addf %202, %203 : vector<8x128xf32>
    %205 = vector.broadcast %4 : vector<1x128xf32> to vector<8x128xf32>
    %206 = arith.addf %204, %205 : vector<8x128xf32>
    %207 = vector.extract_strided_slice %206 {offsets = [0, 0], sizes = [8, 32], strides = [1, 1]} : vector<8x128xf32> to vector<8x32xf32>
    %208 = arith.negf %207 : vector<8x32xf32>
    %209 = math.exp %208 : vector<8x32xf32>
    %cst_63 = arith.constant 1.000000e+00 : f32
    %210 = vector.broadcast %cst_63 : f32 to vector<8x32xf32>
    %211 = arith.addf %210, %209 : vector<8x32xf32>
    %212 = arith.divf %210, %211 : vector<8x32xf32>
    %213 = vector.extract_strided_slice %206 {offsets = [0, 32], sizes = [8, 32], strides = [1, 1]} : vector<8x128xf32> to vector<8x32xf32>
    %214 = arith.negf %213 : vector<8x32xf32>
    %215 = math.exp %214 : vector<8x32xf32>
    %cst_64 = arith.constant 1.000000e+00 : f32
    %216 = vector.broadcast %cst_64 : f32 to vector<8x32xf32>
    %217 = arith.addf %216, %215 : vector<8x32xf32>
    %218 = arith.divf %216, %217 : vector<8x32xf32>
    %219 = vector.extract_strided_slice %206 {offsets = [0, 64], sizes = [8, 32], strides = [1, 1]} : vector<8x128xf32> to vector<8x32xf32>
    %220 = math.tanh %219 : vector<8x32xf32>
    %221 = vector.extract_strided_slice %206 {offsets = [0, 96], sizes = [8, 32], strides = [1, 1]} : vector<8x128xf32> to vector<8x32xf32>
    %222 = arith.negf %221 : vector<8x32xf32>
    %223 = math.exp %222 : vector<8x32xf32>
    %cst_65 = arith.constant 1.000000e+00 : f32
    %224 = vector.broadcast %cst_65 : f32 to vector<8x32xf32>
    %225 = arith.addf %224, %223 : vector<8x32xf32>
    %226 = arith.divf %224, %225 : vector<8x32xf32>
    %227 = arith.mulf %218, %167 : vector<8x32xf32>
    %228 = arith.mulf %212, %220 : vector<8x32xf32>
    %229 = arith.addf %227, %228 : vector<8x32xf32>
    %230 = math.tanh %229 : vector<8x32xf32>
    %231 = arith.mulf %226, %230 : vector<8x32xf32>
    %cst_66 = arith.constant dense<0.000000e+00> : vector<8x128xf32>
    %232 = tpu.matmul %231, %1, %cst_66 {dimension_numbers = #tpu.dot_dimension_numbers<[1], [0], [0], [1], [0, 0, 1, 1], [], []>} : vector<8x32xf32>, vector<32x128xf32>, vector<8x128xf32> -> vector<8x128xf32>
    %cst_67 = arith.constant dense<0.000000e+00> : vector<8x128xf32>
    %233 = tpu.matmul %199, %3, %cst_67 {dimension_numbers = #tpu.dot_dimension_numbers<[1], [0], [0], [1], [0, 0, 1, 1], [], []>} : vector<8x32xf32>, vector<32x128xf32>, vector<8x128xf32> -> vector<8x128xf32>
    %234 = arith.addf %232, %233 : vector<8x128xf32>
    %235 = vector.broadcast %5 : vector<1x128xf32> to vector<8x128xf32>
    %236 = arith.addf %234, %235 : vector<8x128xf32>
    %237 = vector.extract_strided_slice %236 {offsets = [0, 0], sizes = [8, 32], strides = [1, 1]} : vector<8x128xf32> to vector<8x32xf32>
    %238 = arith.negf %237 : vector<8x32xf32>
    %239 = math.exp %238 : vector<8x32xf32>
    %cst_68 = arith.constant 1.000000e+00 : f32
    %240 = vector.broadcast %cst_68 : f32 to vector<8x32xf32>
    %241 = arith.addf %240, %239 : vector<8x32xf32>
    %242 = arith.divf %240, %241 : vector<8x32xf32>
    %243 = vector.extract_strided_slice %236 {offsets = [0, 32], sizes = [8, 32], strides = [1, 1]} : vector<8x128xf32> to vector<8x32xf32>
    %244 = arith.negf %243 : vector<8x32xf32>
    %245 = math.exp %244 : vector<8x32xf32>
    %cst_69 = arith.constant 1.000000e+00 : f32
    %246 = vector.broadcast %cst_69 : f32 to vector<8x32xf32>
    %247 = arith.addf %246, %245 : vector<8x32xf32>
    %248 = arith.divf %246, %247 : vector<8x32xf32>
    %249 = vector.extract_strided_slice %236 {offsets = [0, 64], sizes = [8, 32], strides = [1, 1]} : vector<8x128xf32> to vector<8x32xf32>
    %250 = math.tanh %249 : vector<8x32xf32>
    %251 = vector.extract_strided_slice %236 {offsets = [0, 96], sizes = [8, 32], strides = [1, 1]} : vector<8x128xf32> to vector<8x32xf32>
    %252 = arith.negf %251 : vector<8x32xf32>
    %253 = math.exp %252 : vector<8x32xf32>
    %cst_70 = arith.constant 1.000000e+00 : f32
    %254 = vector.broadcast %cst_70 : f32 to vector<8x32xf32>
    %255 = arith.addf %254, %253 : vector<8x32xf32>
    %256 = arith.divf %254, %255 : vector<8x32xf32>
    %257 = arith.mulf %248, %197 : vector<8x32xf32>
    %258 = arith.mulf %242, %250 : vector<8x32xf32>
    %259 = arith.addf %257, %258 : vector<8x32xf32>
    %260 = math.tanh %259 : vector<8x32xf32>
    %261 = arith.mulf %256, %260 : vector<8x32xf32>
    %c4 = arith.constant 4 : index
    %c0_71 = arith.constant 0 : index
    %c0_72 = arith.constant 0 : index
    %262 = vector.load %arg0[%c4, %c0_71, %c0_72] : memref<8x8x32xf32, #tpu.memory_space<vmem>>, vector<1x8x32xf32>
    %263 = vector.shape_cast %262 : vector<1x8x32xf32> to vector<8x32xf32>
    %cst_73 = arith.constant dense<0.000000e+00> : vector<8x128xf32>
    %264 = tpu.matmul %263, %0, %cst_73 {dimension_numbers = #tpu.dot_dimension_numbers<[1], [0], [0], [1], [0, 0, 1, 1], [], []>} : vector<8x32xf32>, vector<32x128xf32>, vector<8x128xf32> -> vector<8x128xf32>
    %cst_74 = arith.constant dense<0.000000e+00> : vector<8x128xf32>
    %265 = tpu.matmul %231, %2, %cst_74 {dimension_numbers = #tpu.dot_dimension_numbers<[1], [0], [0], [1], [0, 0, 1, 1], [], []>} : vector<8x32xf32>, vector<32x128xf32>, vector<8x128xf32> -> vector<8x128xf32>
    %266 = arith.addf %264, %265 : vector<8x128xf32>
    %267 = vector.broadcast %4 : vector<1x128xf32> to vector<8x128xf32>
    %268 = arith.addf %266, %267 : vector<8x128xf32>
    %269 = vector.extract_strided_slice %268 {offsets = [0, 0], sizes = [8, 32], strides = [1, 1]} : vector<8x128xf32> to vector<8x32xf32>
    %270 = arith.negf %269 : vector<8x32xf32>
    %271 = math.exp %270 : vector<8x32xf32>
    %cst_75 = arith.constant 1.000000e+00 : f32
    %272 = vector.broadcast %cst_75 : f32 to vector<8x32xf32>
    %273 = arith.addf %272, %271 : vector<8x32xf32>
    %274 = arith.divf %272, %273 : vector<8x32xf32>
    %275 = vector.extract_strided_slice %268 {offsets = [0, 32], sizes = [8, 32], strides = [1, 1]} : vector<8x128xf32> to vector<8x32xf32>
    %276 = arith.negf %275 : vector<8x32xf32>
    %277 = math.exp %276 : vector<8x32xf32>
    %cst_76 = arith.constant 1.000000e+00 : f32
    %278 = vector.broadcast %cst_76 : f32 to vector<8x32xf32>
    %279 = arith.addf %278, %277 : vector<8x32xf32>
    %280 = arith.divf %278, %279 : vector<8x32xf32>
    %281 = vector.extract_strided_slice %268 {offsets = [0, 64], sizes = [8, 32], strides = [1, 1]} : vector<8x128xf32> to vector<8x32xf32>
    %282 = math.tanh %281 : vector<8x32xf32>
    %283 = vector.extract_strided_slice %268 {offsets = [0, 96], sizes = [8, 32], strides = [1, 1]} : vector<8x128xf32> to vector<8x32xf32>
    %284 = arith.negf %283 : vector<8x32xf32>
    %285 = math.exp %284 : vector<8x32xf32>
    %cst_77 = arith.constant 1.000000e+00 : f32
    %286 = vector.broadcast %cst_77 : f32 to vector<8x32xf32>
    %287 = arith.addf %286, %285 : vector<8x32xf32>
    %288 = arith.divf %286, %287 : vector<8x32xf32>
    %289 = arith.mulf %280, %229 : vector<8x32xf32>
    %290 = arith.mulf %274, %282 : vector<8x32xf32>
    %291 = arith.addf %289, %290 : vector<8x32xf32>
    %292 = math.tanh %291 : vector<8x32xf32>
    %293 = arith.mulf %288, %292 : vector<8x32xf32>
    %cst_78 = arith.constant dense<0.000000e+00> : vector<8x128xf32>
    %294 = tpu.matmul %293, %1, %cst_78 {dimension_numbers = #tpu.dot_dimension_numbers<[1], [0], [0], [1], [0, 0, 1, 1], [], []>} : vector<8x32xf32>, vector<32x128xf32>, vector<8x128xf32> -> vector<8x128xf32>
    %cst_79 = arith.constant dense<0.000000e+00> : vector<8x128xf32>
    %295 = tpu.matmul %261, %3, %cst_79 {dimension_numbers = #tpu.dot_dimension_numbers<[1], [0], [0], [1], [0, 0, 1, 1], [], []>} : vector<8x32xf32>, vector<32x128xf32>, vector<8x128xf32> -> vector<8x128xf32>
    %296 = arith.addf %294, %295 : vector<8x128xf32>
    %297 = vector.broadcast %5 : vector<1x128xf32> to vector<8x128xf32>
    %298 = arith.addf %296, %297 : vector<8x128xf32>
    %299 = vector.extract_strided_slice %298 {offsets = [0, 0], sizes = [8, 32], strides = [1, 1]} : vector<8x128xf32> to vector<8x32xf32>
    %300 = arith.negf %299 : vector<8x32xf32>
    %301 = math.exp %300 : vector<8x32xf32>
    %cst_80 = arith.constant 1.000000e+00 : f32
    %302 = vector.broadcast %cst_80 : f32 to vector<8x32xf32>
    %303 = arith.addf %302, %301 : vector<8x32xf32>
    %304 = arith.divf %302, %303 : vector<8x32xf32>
    %305 = vector.extract_strided_slice %298 {offsets = [0, 32], sizes = [8, 32], strides = [1, 1]} : vector<8x128xf32> to vector<8x32xf32>
    %306 = arith.negf %305 : vector<8x32xf32>
    %307 = math.exp %306 : vector<8x32xf32>
    %cst_81 = arith.constant 1.000000e+00 : f32
    %308 = vector.broadcast %cst_81 : f32 to vector<8x32xf32>
    %309 = arith.addf %308, %307 : vector<8x32xf32>
    %310 = arith.divf %308, %309 : vector<8x32xf32>
    %311 = vector.extract_strided_slice %298 {offsets = [0, 64], sizes = [8, 32], strides = [1, 1]} : vector<8x128xf32> to vector<8x32xf32>
    %312 = math.tanh %311 : vector<8x32xf32>
    %313 = vector.extract_strided_slice %298 {offsets = [0, 96], sizes = [8, 32], strides = [1, 1]} : vector<8x128xf32> to vector<8x32xf32>
    %314 = arith.negf %313 : vector<8x32xf32>
    %315 = math.exp %314 : vector<8x32xf32>
    %cst_82 = arith.constant 1.000000e+00 : f32
    %316 = vector.broadcast %cst_82 : f32 to vector<8x32xf32>
    %317 = arith.addf %316, %315 : vector<8x32xf32>
    %318 = arith.divf %316, %317 : vector<8x32xf32>
    %319 = arith.mulf %310, %259 : vector<8x32xf32>
    %320 = arith.mulf %304, %312 : vector<8x32xf32>
    %321 = arith.addf %319, %320 : vector<8x32xf32>
    %322 = math.tanh %321 : vector<8x32xf32>
    %323 = arith.mulf %318, %322 : vector<8x32xf32>
    %c5 = arith.constant 5 : index
    %c0_83 = arith.constant 0 : index
    %c0_84 = arith.constant 0 : index
    %324 = vector.load %arg0[%c5, %c0_83, %c0_84] : memref<8x8x32xf32, #tpu.memory_space<vmem>>, vector<1x8x32xf32>
    %325 = vector.shape_cast %324 : vector<1x8x32xf32> to vector<8x32xf32>
    %cst_85 = arith.constant dense<0.000000e+00> : vector<8x128xf32>
    %326 = tpu.matmul %325, %0, %cst_85 {dimension_numbers = #tpu.dot_dimension_numbers<[1], [0], [0], [1], [0, 0, 1, 1], [], []>} : vector<8x32xf32>, vector<32x128xf32>, vector<8x128xf32> -> vector<8x128xf32>
    %cst_86 = arith.constant dense<0.000000e+00> : vector<8x128xf32>
    %327 = tpu.matmul %293, %2, %cst_86 {dimension_numbers = #tpu.dot_dimension_numbers<[1], [0], [0], [1], [0, 0, 1, 1], [], []>} : vector<8x32xf32>, vector<32x128xf32>, vector<8x128xf32> -> vector<8x128xf32>
    %328 = arith.addf %326, %327 : vector<8x128xf32>
    %329 = vector.broadcast %4 : vector<1x128xf32> to vector<8x128xf32>
    %330 = arith.addf %328, %329 : vector<8x128xf32>
    %331 = vector.extract_strided_slice %330 {offsets = [0, 0], sizes = [8, 32], strides = [1, 1]} : vector<8x128xf32> to vector<8x32xf32>
    %332 = arith.negf %331 : vector<8x32xf32>
    %333 = math.exp %332 : vector<8x32xf32>
    %cst_87 = arith.constant 1.000000e+00 : f32
    %334 = vector.broadcast %cst_87 : f32 to vector<8x32xf32>
    %335 = arith.addf %334, %333 : vector<8x32xf32>
    %336 = arith.divf %334, %335 : vector<8x32xf32>
    %337 = vector.extract_strided_slice %330 {offsets = [0, 32], sizes = [8, 32], strides = [1, 1]} : vector<8x128xf32> to vector<8x32xf32>
    %338 = arith.negf %337 : vector<8x32xf32>
    %339 = math.exp %338 : vector<8x32xf32>
    %cst_88 = arith.constant 1.000000e+00 : f32
    %340 = vector.broadcast %cst_88 : f32 to vector<8x32xf32>
    %341 = arith.addf %340, %339 : vector<8x32xf32>
    %342 = arith.divf %340, %341 : vector<8x32xf32>
    %343 = vector.extract_strided_slice %330 {offsets = [0, 64], sizes = [8, 32], strides = [1, 1]} : vector<8x128xf32> to vector<8x32xf32>
    %344 = math.tanh %343 : vector<8x32xf32>
    %345 = vector.extract_strided_slice %330 {offsets = [0, 96], sizes = [8, 32], strides = [1, 1]} : vector<8x128xf32> to vector<8x32xf32>
    %346 = arith.negf %345 : vector<8x32xf32>
    %347 = math.exp %346 : vector<8x32xf32>
    %cst_89 = arith.constant 1.000000e+00 : f32
    %348 = vector.broadcast %cst_89 : f32 to vector<8x32xf32>
    %349 = arith.addf %348, %347 : vector<8x32xf32>
    %350 = arith.divf %348, %349 : vector<8x32xf32>
    %351 = arith.mulf %342, %291 : vector<8x32xf32>
    %352 = arith.mulf %336, %344 : vector<8x32xf32>
    %353 = arith.addf %351, %352 : vector<8x32xf32>
    %354 = math.tanh %353 : vector<8x32xf32>
    %355 = arith.mulf %350, %354 : vector<8x32xf32>
    %cst_90 = arith.constant dense<0.000000e+00> : vector<8x128xf32>
    %356 = tpu.matmul %355, %1, %cst_90 {dimension_numbers = #tpu.dot_dimension_numbers<[1], [0], [0], [1], [0, 0, 1, 1], [], []>} : vector<8x32xf32>, vector<32x128xf32>, vector<8x128xf32> -> vector<8x128xf32>
    %cst_91 = arith.constant dense<0.000000e+00> : vector<8x128xf32>
    %357 = tpu.matmul %323, %3, %cst_91 {dimension_numbers = #tpu.dot_dimension_numbers<[1], [0], [0], [1], [0, 0, 1, 1], [], []>} : vector<8x32xf32>, vector<32x128xf32>, vector<8x128xf32> -> vector<8x128xf32>
    %358 = arith.addf %356, %357 : vector<8x128xf32>
    %359 = vector.broadcast %5 : vector<1x128xf32> to vector<8x128xf32>
    %360 = arith.addf %358, %359 : vector<8x128xf32>
    %361 = vector.extract_strided_slice %360 {offsets = [0, 0], sizes = [8, 32], strides = [1, 1]} : vector<8x128xf32> to vector<8x32xf32>
    %362 = arith.negf %361 : vector<8x32xf32>
    %363 = math.exp %362 : vector<8x32xf32>
    %cst_92 = arith.constant 1.000000e+00 : f32
    %364 = vector.broadcast %cst_92 : f32 to vector<8x32xf32>
    %365 = arith.addf %364, %363 : vector<8x32xf32>
    %366 = arith.divf %364, %365 : vector<8x32xf32>
    %367 = vector.extract_strided_slice %360 {offsets = [0, 32], sizes = [8, 32], strides = [1, 1]} : vector<8x128xf32> to vector<8x32xf32>
    %368 = arith.negf %367 : vector<8x32xf32>
    %369 = math.exp %368 : vector<8x32xf32>
    %cst_93 = arith.constant 1.000000e+00 : f32
    %370 = vector.broadcast %cst_93 : f32 to vector<8x32xf32>
    %371 = arith.addf %370, %369 : vector<8x32xf32>
    %372 = arith.divf %370, %371 : vector<8x32xf32>
    %373 = vector.extract_strided_slice %360 {offsets = [0, 64], sizes = [8, 32], strides = [1, 1]} : vector<8x128xf32> to vector<8x32xf32>
    %374 = math.tanh %373 : vector<8x32xf32>
    %375 = vector.extract_strided_slice %360 {offsets = [0, 96], sizes = [8, 32], strides = [1, 1]} : vector<8x128xf32> to vector<8x32xf32>
    %376 = arith.negf %375 : vector<8x32xf32>
    %377 = math.exp %376 : vector<8x32xf32>
    %cst_94 = arith.constant 1.000000e+00 : f32
    %378 = vector.broadcast %cst_94 : f32 to vector<8x32xf32>
    %379 = arith.addf %378, %377 : vector<8x32xf32>
    %380 = arith.divf %378, %379 : vector<8x32xf32>
    %381 = arith.mulf %372, %321 : vector<8x32xf32>
    %382 = arith.mulf %366, %374 : vector<8x32xf32>
    %383 = arith.addf %381, %382 : vector<8x32xf32>
    %384 = math.tanh %383 : vector<8x32xf32>
    %385 = arith.mulf %380, %384 : vector<8x32xf32>
    %c6 = arith.constant 6 : index
    %c0_95 = arith.constant 0 : index
    %c0_96 = arith.constant 0 : index
    %386 = vector.load %arg0[%c6, %c0_95, %c0_96] : memref<8x8x32xf32, #tpu.memory_space<vmem>>, vector<1x8x32xf32>
    %387 = vector.shape_cast %386 : vector<1x8x32xf32> to vector<8x32xf32>
    %cst_97 = arith.constant dense<0.000000e+00> : vector<8x128xf32>
    %388 = tpu.matmul %387, %0, %cst_97 {dimension_numbers = #tpu.dot_dimension_numbers<[1], [0], [0], [1], [0, 0, 1, 1], [], []>} : vector<8x32xf32>, vector<32x128xf32>, vector<8x128xf32> -> vector<8x128xf32>
    %cst_98 = arith.constant dense<0.000000e+00> : vector<8x128xf32>
    %389 = tpu.matmul %355, %2, %cst_98 {dimension_numbers = #tpu.dot_dimension_numbers<[1], [0], [0], [1], [0, 0, 1, 1], [], []>} : vector<8x32xf32>, vector<32x128xf32>, vector<8x128xf32> -> vector<8x128xf32>
    %390 = arith.addf %388, %389 : vector<8x128xf32>
    %391 = vector.broadcast %4 : vector<1x128xf32> to vector<8x128xf32>
    %392 = arith.addf %390, %391 : vector<8x128xf32>
    %393 = vector.extract_strided_slice %392 {offsets = [0, 0], sizes = [8, 32], strides = [1, 1]} : vector<8x128xf32> to vector<8x32xf32>
    %394 = arith.negf %393 : vector<8x32xf32>
    %395 = math.exp %394 : vector<8x32xf32>
    %cst_99 = arith.constant 1.000000e+00 : f32
    %396 = vector.broadcast %cst_99 : f32 to vector<8x32xf32>
    %397 = arith.addf %396, %395 : vector<8x32xf32>
    %398 = arith.divf %396, %397 : vector<8x32xf32>
    %399 = vector.extract_strided_slice %392 {offsets = [0, 32], sizes = [8, 32], strides = [1, 1]} : vector<8x128xf32> to vector<8x32xf32>
    %400 = arith.negf %399 : vector<8x32xf32>
    %401 = math.exp %400 : vector<8x32xf32>
    %cst_100 = arith.constant 1.000000e+00 : f32
    %402 = vector.broadcast %cst_100 : f32 to vector<8x32xf32>
    %403 = arith.addf %402, %401 : vector<8x32xf32>
    %404 = arith.divf %402, %403 : vector<8x32xf32>
    %405 = vector.extract_strided_slice %392 {offsets = [0, 64], sizes = [8, 32], strides = [1, 1]} : vector<8x128xf32> to vector<8x32xf32>
    %406 = math.tanh %405 : vector<8x32xf32>
    %407 = vector.extract_strided_slice %392 {offsets = [0, 96], sizes = [8, 32], strides = [1, 1]} : vector<8x128xf32> to vector<8x32xf32>
    %408 = arith.negf %407 : vector<8x32xf32>
    %409 = math.exp %408 : vector<8x32xf32>
    %cst_101 = arith.constant 1.000000e+00 : f32
    %410 = vector.broadcast %cst_101 : f32 to vector<8x32xf32>
    %411 = arith.addf %410, %409 : vector<8x32xf32>
    %412 = arith.divf %410, %411 : vector<8x32xf32>
    %413 = arith.mulf %404, %353 : vector<8x32xf32>
    %414 = arith.mulf %398, %406 : vector<8x32xf32>
    %415 = arith.addf %413, %414 : vector<8x32xf32>
    %416 = math.tanh %415 : vector<8x32xf32>
    %417 = arith.mulf %412, %416 : vector<8x32xf32>
    %cst_102 = arith.constant dense<0.000000e+00> : vector<8x128xf32>
    %418 = tpu.matmul %417, %1, %cst_102 {dimension_numbers = #tpu.dot_dimension_numbers<[1], [0], [0], [1], [0, 0, 1, 1], [], []>} : vector<8x32xf32>, vector<32x128xf32>, vector<8x128xf32> -> vector<8x128xf32>
    %cst_103 = arith.constant dense<0.000000e+00> : vector<8x128xf32>
    %419 = tpu.matmul %385, %3, %cst_103 {dimension_numbers = #tpu.dot_dimension_numbers<[1], [0], [0], [1], [0, 0, 1, 1], [], []>} : vector<8x32xf32>, vector<32x128xf32>, vector<8x128xf32> -> vector<8x128xf32>
    %420 = arith.addf %418, %419 : vector<8x128xf32>
    %421 = vector.broadcast %5 : vector<1x128xf32> to vector<8x128xf32>
    %422 = arith.addf %420, %421 : vector<8x128xf32>
    %423 = vector.extract_strided_slice %422 {offsets = [0, 0], sizes = [8, 32], strides = [1, 1]} : vector<8x128xf32> to vector<8x32xf32>
    %424 = arith.negf %423 : vector<8x32xf32>
    %425 = math.exp %424 : vector<8x32xf32>
    %cst_104 = arith.constant 1.000000e+00 : f32
    %426 = vector.broadcast %cst_104 : f32 to vector<8x32xf32>
    %427 = arith.addf %426, %425 : vector<8x32xf32>
    %428 = arith.divf %426, %427 : vector<8x32xf32>
    %429 = vector.extract_strided_slice %422 {offsets = [0, 32], sizes = [8, 32], strides = [1, 1]} : vector<8x128xf32> to vector<8x32xf32>
    %430 = arith.negf %429 : vector<8x32xf32>
    %431 = math.exp %430 : vector<8x32xf32>
    %cst_105 = arith.constant 1.000000e+00 : f32
    %432 = vector.broadcast %cst_105 : f32 to vector<8x32xf32>
    %433 = arith.addf %432, %431 : vector<8x32xf32>
    %434 = arith.divf %432, %433 : vector<8x32xf32>
    %435 = vector.extract_strided_slice %422 {offsets = [0, 64], sizes = [8, 32], strides = [1, 1]} : vector<8x128xf32> to vector<8x32xf32>
    %436 = math.tanh %435 : vector<8x32xf32>
    %437 = vector.extract_strided_slice %422 {offsets = [0, 96], sizes = [8, 32], strides = [1, 1]} : vector<8x128xf32> to vector<8x32xf32>
    %438 = arith.negf %437 : vector<8x32xf32>
    %439 = math.exp %438 : vector<8x32xf32>
    %cst_106 = arith.constant 1.000000e+00 : f32
    %440 = vector.broadcast %cst_106 : f32 to vector<8x32xf32>
    %441 = arith.addf %440, %439 : vector<8x32xf32>
    %442 = arith.divf %440, %441 : vector<8x32xf32>
    %443 = arith.mulf %434, %383 : vector<8x32xf32>
    %444 = arith.mulf %428, %436 : vector<8x32xf32>
    %445 = arith.addf %443, %444 : vector<8x32xf32>
    %446 = math.tanh %445 : vector<8x32xf32>
    %447 = arith.mulf %442, %446 : vector<8x32xf32>
    %c7 = arith.constant 7 : index
    %c0_107 = arith.constant 0 : index
    %c0_108 = arith.constant 0 : index
    %448 = vector.load %arg0[%c7, %c0_107, %c0_108] : memref<8x8x32xf32, #tpu.memory_space<vmem>>, vector<1x8x32xf32>
    %449 = vector.shape_cast %448 : vector<1x8x32xf32> to vector<8x32xf32>
    %cst_109 = arith.constant dense<0.000000e+00> : vector<8x128xf32>
    %450 = tpu.matmul %449, %0, %cst_109 {dimension_numbers = #tpu.dot_dimension_numbers<[1], [0], [0], [1], [0, 0, 1, 1], [], []>} : vector<8x32xf32>, vector<32x128xf32>, vector<8x128xf32> -> vector<8x128xf32>
    %cst_110 = arith.constant dense<0.000000e+00> : vector<8x128xf32>
    %451 = tpu.matmul %417, %2, %cst_110 {dimension_numbers = #tpu.dot_dimension_numbers<[1], [0], [0], [1], [0, 0, 1, 1], [], []>} : vector<8x32xf32>, vector<32x128xf32>, vector<8x128xf32> -> vector<8x128xf32>
    %452 = arith.addf %450, %451 : vector<8x128xf32>
    %453 = vector.broadcast %4 : vector<1x128xf32> to vector<8x128xf32>
    %454 = arith.addf %452, %453 : vector<8x128xf32>
    %455 = vector.extract_strided_slice %454 {offsets = [0, 0], sizes = [8, 32], strides = [1, 1]} : vector<8x128xf32> to vector<8x32xf32>
    %456 = arith.negf %455 : vector<8x32xf32>
    %457 = math.exp %456 : vector<8x32xf32>
    %cst_111 = arith.constant 1.000000e+00 : f32
    %458 = vector.broadcast %cst_111 : f32 to vector<8x32xf32>
    %459 = arith.addf %458, %457 : vector<8x32xf32>
    %460 = arith.divf %458, %459 : vector<8x32xf32>
    %461 = vector.extract_strided_slice %454 {offsets = [0, 32], sizes = [8, 32], strides = [1, 1]} : vector<8x128xf32> to vector<8x32xf32>
    %462 = arith.negf %461 : vector<8x32xf32>
    %463 = math.exp %462 : vector<8x32xf32>
    %cst_112 = arith.constant 1.000000e+00 : f32
    %464 = vector.broadcast %cst_112 : f32 to vector<8x32xf32>
    %465 = arith.addf %464, %463 : vector<8x32xf32>
    %466 = arith.divf %464, %465 : vector<8x32xf32>
    %467 = vector.extract_strided_slice %454 {offsets = [0, 64], sizes = [8, 32], strides = [1, 1]} : vector<8x128xf32> to vector<8x32xf32>
    %468 = math.tanh %467 : vector<8x32xf32>
    %469 = vector.extract_strided_slice %454 {offsets = [0, 96], sizes = [8, 32], strides = [1, 1]} : vector<8x128xf32> to vector<8x32xf32>
    %470 = arith.negf %469 : vector<8x32xf32>
    %471 = math.exp %470 : vector<8x32xf32>
    %cst_113 = arith.constant 1.000000e+00 : f32
    %472 = vector.broadcast %cst_113 : f32 to vector<8x32xf32>
    %473 = arith.addf %472, %471 : vector<8x32xf32>
    %474 = arith.divf %472, %473 : vector<8x32xf32>
    %475 = arith.mulf %466, %415 : vector<8x32xf32>
    %476 = arith.mulf %460, %468 : vector<8x32xf32>
    %477 = arith.addf %475, %476 : vector<8x32xf32>
    %478 = math.tanh %477 : vector<8x32xf32>
    %479 = arith.mulf %474, %478 : vector<8x32xf32>
    %cst_114 = arith.constant dense<0.000000e+00> : vector<8x128xf32>
    %480 = tpu.matmul %479, %1, %cst_114 {dimension_numbers = #tpu.dot_dimension_numbers<[1], [0], [0], [1], [0, 0, 1, 1], [], []>} : vector<8x32xf32>, vector<32x128xf32>, vector<8x128xf32> -> vector<8x128xf32>
    %cst_115 = arith.constant dense<0.000000e+00> : vector<8x128xf32>
    %481 = tpu.matmul %447, %3, %cst_115 {dimension_numbers = #tpu.dot_dimension_numbers<[1], [0], [0], [1], [0, 0, 1, 1], [], []>} : vector<8x32xf32>, vector<32x128xf32>, vector<8x128xf32> -> vector<8x128xf32>
    %482 = arith.addf %480, %481 : vector<8x128xf32>
    %483 = vector.broadcast %5 : vector<1x128xf32> to vector<8x128xf32>
    %484 = arith.addf %482, %483 : vector<8x128xf32>
    %485 = vector.extract_strided_slice %484 {offsets = [0, 0], sizes = [8, 32], strides = [1, 1]} : vector<8x128xf32> to vector<8x32xf32>
    %486 = arith.negf %485 : vector<8x32xf32>
    %487 = math.exp %486 : vector<8x32xf32>
    %cst_116 = arith.constant 1.000000e+00 : f32
    %488 = vector.broadcast %cst_116 : f32 to vector<8x32xf32>
    %489 = arith.addf %488, %487 : vector<8x32xf32>
    %490 = arith.divf %488, %489 : vector<8x32xf32>
    %491 = vector.extract_strided_slice %484 {offsets = [0, 32], sizes = [8, 32], strides = [1, 1]} : vector<8x128xf32> to vector<8x32xf32>
    %492 = arith.negf %491 : vector<8x32xf32>
    %493 = math.exp %492 : vector<8x32xf32>
    %cst_117 = arith.constant 1.000000e+00 : f32
    %494 = vector.broadcast %cst_117 : f32 to vector<8x32xf32>
    %495 = arith.addf %494, %493 : vector<8x32xf32>
    %496 = arith.divf %494, %495 : vector<8x32xf32>
    %497 = vector.extract_strided_slice %484 {offsets = [0, 64], sizes = [8, 32], strides = [1, 1]} : vector<8x128xf32> to vector<8x32xf32>
    %498 = math.tanh %497 : vector<8x32xf32>
    %499 = vector.extract_strided_slice %484 {offsets = [0, 96], sizes = [8, 32], strides = [1, 1]} : vector<8x128xf32> to vector<8x32xf32>
    %500 = arith.negf %499 : vector<8x32xf32>
    %501 = math.exp %500 : vector<8x32xf32>
    %cst_118 = arith.constant 1.000000e+00 : f32
    %502 = vector.broadcast %cst_118 : f32 to vector<8x32xf32>
    %503 = arith.addf %502, %501 : vector<8x32xf32>
    %504 = arith.divf %502, %503 : vector<8x32xf32>
    %505 = arith.mulf %496, %445 : vector<8x32xf32>
    %506 = arith.mulf %490, %498 : vector<8x32xf32>
    %507 = arith.addf %505, %506 : vector<8x32xf32>
    %508 = math.tanh %507 : vector<8x32xf32>
    %509 = arith.mulf %504, %508 : vector<8x32xf32>
    %510 = tpu.concatenate %75, %137, %199, %261, %323, %385, %447, %509 in 0 : vector<8x32xf32>, vector<8x32xf32>, vector<8x32xf32>, vector<8x32xf32>, vector<8x32xf32>, vector<8x32xf32>, vector<8x32xf32>, vector<8x32xf32> -> vector<64x32xf32>
    %cst_119 = arith.constant dense<0.000000e+00> : vector<64x64xf32>
    %511 = tpu.matmul %510, %6, %cst_119 {dimension_numbers = #tpu.dot_dimension_numbers<[1], [0], [0], [1], [0, 0, 1, 1], [], []>} : vector<64x32xf32>, vector<32x64xf32>, vector<64x64xf32> -> vector<64x64xf32>
    %512 = vector.broadcast %7 : vector<1x64xf32> to vector<64x64xf32>
    %513 = arith.addf %511, %512 : vector<64x64xf32>
    %cst_120 = arith.constant 0.000000e+00 : f32
    %514 = vector.broadcast %cst_120 : f32 to vector<64x64xf32>
    %515 = arith.maximumf %513, %514 : vector<64x64xf32>
    %cst_121 = arith.constant dense<0.000000e+00> : vector<64x16xf32>
    %516 = tpu.matmul %515, %8, %cst_121 {dimension_numbers = #tpu.dot_dimension_numbers<[1], [0], [0], [1], [0, 0, 1, 1], [], []>} : vector<64x64xf32>, vector<64x16xf32>, vector<64x16xf32> -> vector<64x16xf32>
    %517 = vector.broadcast %9 : vector<1x16xf32> to vector<64x16xf32>
    %518 = arith.addf %516, %517 : vector<64x16xf32>
    %c0_122 = arith.constant 0 : index
    %c0_123 = arith.constant 0 : index
    %519 = vector.load %arg11[%c0_122, %c0_123] : memref<64x16xf32, #tpu.memory_space<vmem>>, vector<64x16xf32>
    tpu.vector_store %arg11[%c0_122, %c0_123], %518 {strides = array<i32>} : memref<64x16xf32, #tpu.memory_space<vmem>>, vector<64x16xf32>,
    return
  }
}

</mosaic_0001>

<llo_original>
// kernel: decoder_lstm_forward.1
$region0: #{decoder_lstm_forward.1}
  #allocation0 [shape = 'u32[]', space=smem, size = 0x4, offset = 0x4, fixed_abs, tag = 'smem constant byte address 0x4 - core index']
  #allocation1 [shape = 'u32[144,128]{1,0:T(1,128)}', space=vmem, size = 0x12000, scoped, tag = 'internal scratch']
  %s0 = inlined_call_operand.vmem [shape: f32[8,8,32], index: 0, kind: input, shape index: {}]
  %s1 = inlined_call_operand.vmem [shape: f32[32,128], index: 1, kind: input, shape index: {}]
  %s2 = inlined_call_operand.vmem [shape: f32[32,128], index: 2, kind: input, shape index: {}]
  %s3 = inlined_call_operand.vmem [shape: f32[1,128], index: 3, kind: input, shape index: {}]
  %s4 = inlined_call_operand.vmem [shape: f32[32,128], index: 4, kind: input, shape index: {}]
  %s5 = inlined_call_operand.vmem [shape: f32[32,128], index: 5, kind: input, shape index: {}]
  %s6 = inlined_call_operand.vmem [shape: f32[1,128], index: 6, kind: input, shape index: {}]
  %s7 = inlined_call_operand.vmem [shape: f32[32,64], index: 7, kind: input, shape index: {}]
  %s8 = inlined_call_operand.vmem [shape: f32[1,64], index: 8, kind: input, shape index: {}]
  %s9 = inlined_call_operand.vmem [shape: f32[64,16], index: 9, kind: input, shape index: {}]
  %s10 = inlined_call_operand.vmem [shape: f32[1,16], index: 10, kind: input, shape index: {}]
  %s11 = inlined_call_operand.vmem [shape: f32[64,16], index: 11, kind: output, shape index: {}]
  %s12 = sld [smem:[#allocation0]]
  $region54: #{decoder_lstm_forward.1} parent=0
    _
  %s14 = ssub.s32 1, %s12
  %s15 = scalar_select 0, %s14, %s12
  // Predicated region
  $region2: #{decoder_lstm_forward.1} parent=0 // pred_check
    _
  $region3: #{decoder_lstm_forward.1} parent=0 // pred_check_branch
    %17 = sbr.rel (0) target = $region5
  $region4: #{decoder_lstm_forward.1} parent=0 // pred_region
    _
  $region5: #{decoder_lstm_forward.1} parent=0 // pred_fallthru
    _
  // Predicated region
  $region6: #{decoder_lstm_forward.1} parent=0 // pred_check
    _
  $region7: #{decoder_lstm_forward.1} parent=0 // pred_check_branch
    %19 = sbr.rel (0) target = $region9
  $region8: #{decoder_lstm_forward.1} parent=0 // pred_region
    _
  $region9: #{decoder_lstm_forward.1} parent=0 // pred_fallthru
    _
  // Predicated region
  $region10: #{decoder_lstm_forward.1} parent=0 // pred_check
    _
  $region11: #{decoder_lstm_forward.1} parent=0 // pred_check_branch
    %21 = sbr.rel (0) target = $region13
  $region12: #{decoder_lstm_forward.1} parent=0 // pred_region
    _
  $region13: #{decoder_lstm_forward.1} parent=0 // pred_fallthru
    _
  // Predicated region
  $region14: #{decoder_lstm_forward.1} parent=0 // pred_check
    _
  $region15: #{decoder_lstm_forward.1} parent=0 // pred_check_branch
    %23 = sbr.rel (0) target = $region17
  $region16: #{decoder_lstm_forward.1} parent=0 // pred_region
    _
  $region17: #{decoder_lstm_forward.1} parent=0 // pred_fallthru
    _
  // Predicated region
  $region18: #{decoder_lstm_forward.1} parent=0 // pred_check
    _
  $region19: #{decoder_lstm_forward.1} parent=0 // pred_check_branch
    %25 = sbr.rel (0) target = $region21
  $region20: #{decoder_lstm_forward.1} parent=0 // pred_region
    _
  $region21: #{decoder_lstm_forward.1} parent=0 // pred_fallthru
    _
  // Predicated region
  $region22: #{decoder_lstm_forward.1} parent=0 // pred_check
    _
  $region23: #{decoder_lstm_forward.1} parent=0 // pred_check_branch
    %27 = sbr.rel (0) target = $region25
  $region24: #{decoder_lstm_forward.1} parent=0 // pred_region
    _
  $region25: #{decoder_lstm_forward.1} parent=0 // pred_fallthru
    _
  // Predicated region
  $region26: #{decoder_lstm_forward.1} parent=0 // pred_check
    _
  $region27: #{decoder_lstm_forward.1} parent=0 // pred_check_branch
    %29 = sbr.rel (0) target = $region29
  $region28: #{decoder_lstm_forward.1} parent=0 // pred_region
    _
  $region29: #{decoder_lstm_forward.1} parent=0 // pred_fallthru
    _
  // Predicated region
  $region30: #{decoder_lstm_forward.1} parent=0 // pred_check
    _
  $region31: #{decoder_lstm_forward.1} parent=0 // pred_check_branch
    %31 = sbr.rel (0) target = $region33
  $region32: #{decoder_lstm_forward.1} parent=0 // pred_region
    _
  $region33: #{decoder_lstm_forward.1} parent=0 // pred_fallthru
    _
  // Predicated region
  $region34: #{decoder_lstm_forward.1} parent=0 // pred_check
    _
  $region35: #{decoder_lstm_forward.1} parent=0 // pred_check_branch
    %33 = sbr.rel (0) target = $region37
  $region36: #{decoder_lstm_forward.1} parent=0 // pred_region
    _
  $region37: #{decoder_lstm_forward.1} parent=0 // pred_fallthru
    _
  // Predicated region
  $region38: #{decoder_lstm_forward.1} parent=0 // pred_check
    _
  $region39: #{decoder_lstm_forward.1} parent=0 // pred_check_branch
    %35 = sbr.rel (0) target = $region41
  $region40: #{decoder_lstm_forward.1} parent=0 // pred_region
    _
  $region41: #{decoder_lstm_forward.1} parent=0 // pred_fallthru
    _
  // Predicated region
  $region42: #{decoder_lstm_forward.1} parent=0 // pred_check
    _
  $region43: #{decoder_lstm_forward.1} parent=0 // pred_check_branch
    %37 = sbr.rel (0) target = $region45
  $region44: #{decoder_lstm_forward.1} parent=0 // pred_region
    _
  $region45: #{decoder_lstm_forward.1} parent=0 // pred_fallthru
    _
  %v38 = vld [vmem:[%s1] sm:$0xff]
  %v39 = vld [vmem:[%s1 + $0x8] sm:$0xff]
  %v40 = vld [vmem:[%s1 + $0x10] sm:$0xff]
  %v41 = vld [vmem:[%s1 + $0x18] sm:$0xff]
  %v42 = vld [vmem:[%s4] sm:$0xff]
  %v43 = vld [vmem:[%s4 + $0x8] sm:$0xff]
  %v44 = vld [vmem:[%s4 + $0x10] sm:$0xff]
  %v45 = vld [vmem:[%s4 + $0x18] sm:$0xff]
  %v46 = vld [vmem:[%s2] sm:$0xff]
  %v47 = vld [vmem:[%s2 + $0x8] sm:$0xff]
  %v48 = vld [vmem:[%s2 + $0x10] sm:$0xff]
  %v49 = vld [vmem:[%s2 + $0x18] sm:$0xff]
  %v50 = vld [vmem:[%s5] sm:$0xff]
  %v51 = vld [vmem:[%s5 + $0x8] sm:$0xff]
  %v52 = vld [vmem:[%s5 + $0x10] sm:$0xff]
  %v53 = vld [vmem:[%s5 + $0x18] sm:$0xff]
  %v54 = vld [vmem:[%s3] sm:$0x1]
  %v55 = vld [vmem:[%s6] sm:$0x1]
  %v56 = vld [vmem:[%s7] sm:$0xff]
  %v57 = vld [vmem:[%s7 + $0x8] sm:$0xff]
  %v58 = vld [vmem:[%s7 + $0x10] sm:$0xff]
  %v59 = vld [vmem:[%s7 + $0x18] sm:$0xff]
  %v60 = vld [vmem:[%s8] sm:$0x1]
  %v61 = vld [vmem:[%s9] sm:$0xff]
  %v62 = vld [vmem:[%s9 + $0x8] sm:$0xff]
  %v63 = vld [vmem:[%s9 + $0x10] sm:$0xff]
  %v64 = vld [vmem:[%s9 + $0x18] sm:$0xff]
  %v65 = vld [vmem:[%s9 + $0x20] sm:$0xff]
  %v66 = vld [vmem:[%s9 + $0x28] sm:$0xff]
  %v67 = vld [vmem:[%s9 + $0x30] sm:$0xff]
  %v68 = vld [vmem:[%s9 + $0x38] sm:$0xff]
  %v69 = vld [vmem:[%s10] sm:$0x1]
  %v70 = vld [vmem:[%s0] sm:$0xff]
  %vm71 = vcmask 261120
  %v73 = vsel %vm71, 0.0, 0
  %75 = vmatprep.subr.mxu0 0.0
  %76 = vmatpush1.msra.mxu0 %v46
  %77 = vmatprep.subr.mxu0 0.0
  %78 = vmatpush1.msra.mxu0 %v47
  %79 = vmatprep.subr.mxu0 0.0
  %80 = vmatpush1.msra.mxu0 %v48
  %81 = vmatprep.subr.mxu0 0.0
  %82 = vmatpush1.msra.mxu0 %v49
  %83 = vmatprep.subr.mxu0 0.0
  %84 = vmatpush1.msra.mxu0 0.0
  %85 = vmatprep.subr.mxu0 0.0
  %86 = vmatpush1.msra.mxu0 0.0
  %87 = vmatprep.subr.mxu0 0.0
  %88 = vmatpush1.msra.mxu0 0.0
  %89 = vmatprep.subr.mxu0 0.0
  %90 = vmatpush1.msra.mxu0 0.0
  %91 = vmatprep.subr.mxu0 0.0
  %92 = vmatpush1.msra.mxu0 0.0
  %93 = vmatprep.subr.mxu0 0.0
  %94 = vmatpush1.msra.mxu0 0.0
  %95 = vmatprep.subr.mxu0 0.0
  %96 = vmatpush1.msra.mxu0 0.0
  %97 = vmatprep.subr.mxu0 0.0
  %98 = vmatpush1.msra.mxu0 0.0
  %99 = vmatprep.subr.mxu0 0.0
  %100 = vmatpush1.msra.mxu0 0.0
  %101 = vmatprep.subr.mxu0 0.0
  %102 = vmatpush1.msra.mxu0 0.0
  %103 = vmatprep.subr.mxu0 0.0
  %104 = vmatpush1.msra.mxu0 0.0
  %105 = vmatprep.subr.mxu0 0.0
  %106 = vmatpush1.msra.mxu0 0.0
  %107 = vmatprep.subr.mxu0 0.0
  %108 = vmatpush1.msra.mxu0 0.0
  %109 = vmatprep.subr.mxu0 0.0
  %110 = vmatpush1.msra.mxu0 0.0
  %111 = vmatprep.subr.mxu0 0.0
  %112 = vmatpush1.msra.mxu0 0.0
  %113 = vmatprep.subr.mxu0 0.0
  %114 = vmatpush1.msra.mxu0 0.0
  %115 = vmatprep.subr.mxu0 0.0
  %116 = vmatpush1.msra.mxu0 0.0
  %117 = vmatprep.subr.mxu0 0.0
  %118 = vmatpush1.msra.mxu0 0.0
  %119 = vmatprep.subr.mxu0 0.0
  %120 = vmatpush1.msra.mxu0 0.0
  %121 = vmatprep.subr.mxu0 0.0
  %122 = vmatpush1.msra.mxu0 0.0
  %123 = vmatprep.subr.mxu0 0.0
  %124 = vmatpush1.msra.mxu0 0.0
  %125 = vmatprep.subr.mxu0 0.0
  %126 = vmatpush1.msra.mxu0 0.0
  %127 = vmatprep.subr.mxu0 0.0
  %128 = vmatpush1.msra.mxu0 0.0
  %129 = vmatprep.subr.mxu0 0.0
  %130 = vmatpush1.msra.mxu0 0.0
  %131 = vmatprep.subr.mxu0 0.0
  %132 = vmatpush1.msra.mxu0 0.0
  %133 = vmatprep.subr.mxu0 0.0
  %134 = vmatpush1.msra.mxu0 0.0
  %135 = vmatprep.subr.mxu0 0.0
  %136 = vmatpush1.msra.mxu0 0.0
  %137 = vmatprep.subr.mxu0 0.0
  %138 = vmatpush1.msra.mxu0 0.0
  %139 = vmatprep.mubr.f32.mxu0 0.0
  %140 = vmatmul.mubr.f32.gmra.mrb[0].mxu0 %v73
  %v141 = vpop.f32.mrb[0].mxu0
  %v142 = vadd.f32 0.0, %v141
  %v143 = vpop.f32.mrb[0].mxu0
  %144 = vdwg.mxu0
  %v146 = vsel %vm71, %v70, 0
  %148 = vmatprep.subr.mxu0 0.0
  %149 = vmatpush1.msra.mxu0 %v38
  %150 = vmatprep.subr.mxu0 0.0
  %151 = vmatpush1.msra.mxu0 %v39
  %152 = vmatprep.subr.mxu0 0.0
  %153 = vmatpush1.msra.mxu0 %v40
  %154 = vmatprep.subr.mxu0 0.0
  %155 = vmatpush1.msra.mxu0 %v41
  %156 = vmatprep.subr.mxu0 0.0
  %157 = vmatpush1.msra.mxu0 0.0
  %158 = vmatprep.subr.mxu0 0.0
  %159 = vmatpush1.msra.mxu0 0.0
  %160 = vmatprep.subr.mxu0 0.0
  %161 = vmatpush1.msra.mxu0 0.0
  %162 = vmatprep.subr.mxu0 0.0
  %163 = vmatpush1.msra.mxu0 0.0
  %164 = vmatprep.subr.mxu0 0.0
  %165 = vmatpush1.msra.mxu0 0.0
  %166 = vmatprep.subr.mxu0 0.0
  %167 = vmatpush1.msra.mxu0 0.0
  %168 = vmatprep.subr.mxu0 0.0
  %169 = vmatpush1.msra.mxu0 0.0
  %170 = vmatprep.subr.mxu0 0.0
  %171 = vmatpush1.msra.mxu0 0.0
  %172 = vmatprep.subr.mxu0 0.0
  %173 = vmatpush1.msra.mxu0 0.0
  %174 = vmatprep.subr.mxu0 0.0
  %175 = vmatpush1.msra.mxu0 0.0
  %176 = vmatprep.subr.mxu0 0.0
  %177 = vmatpush1.msra.mxu0 0.0
  %178 = vmatprep.subr.mxu0 0.0
  %179 = vmatpush1.msra.mxu0 0.0
  %180 = vmatprep.subr.mxu0 0.0
  %181 = vmatpush1.msra.mxu0 0.0
  %182 = vmatprep.subr.mxu0 0.0
  %183 = vmatpush1.msra.mxu0 0.0
  %184 = vmatprep.subr.mxu0 0.0
  %185 = vmatpush1.msra.mxu0 0.0
  %186 = vmatprep.subr.mxu0 0.0
  %187 = vmatpush1.msra.mxu0 0.0
  %188 = vmatprep.subr.mxu0 0.0
  %189 = vmatpush1.msra.mxu0 0.0
  %190 = vmatprep.subr.mxu0 0.0
  %191 = vmatpush1.msra.mxu0 0.0
  %192 = vmatprep.subr.mxu0 0.0
  %193 = vmatpush1.msra.mxu0 0.0
  %194 = vmatprep.subr.mxu0 0.0
  %195 = vmatpush1.msra.mxu0 0.0
  %196 = vmatprep.subr.mxu0 0.0
  %197 = vmatpush1.msra.mxu0 0.0
  %198 = vmatprep.subr.mxu0 0.0
  %199 = vmatpush1.msra.mxu0 0.0
  %200 = vmatprep.subr.mxu0 0.0
  %201 = vmatpush1.msra.mxu0 0.0
  %202 = vmatprep.subr.mxu0 0.0
  %203 = vmatpush1.msra.mxu0 0.0
  %204 = vmatprep.subr.mxu0 0.0
  %205 = vmatpush1.msra.mxu0 0.0
  %206 = vmatprep.subr.mxu0 0.0
  %207 = vmatpush1.msra.mxu0 0.0
  %208 = vmatprep.subr.mxu0 0.0
  %209 = vmatpush1.msra.mxu0 0.0
  %210 = vmatprep.subr.mxu0 0.0
  %211 = vmatpush1.msra.mxu0 0.0
  %212 = vmatprep.mubr.f32.mxu0 0.0
  %213 = vmatmul.mubr.f32.gmra.mrb[0].mxu0 %v146
  %v214 = vpop.f32.mrb[0].mxu0
  %v215 = vadd.f32 %v142, %v214
  %v216 = vpop.f32.mrb[0].mxu0
  %217 = vdwg.mxu0
  %v219 = vlaneseq
  %v220 = vshrl.u32 %v219, 7
  %v221 = vsub.s32 0, %v220
  %v222 = vrot.slane %v54, %v221
  %v224 = vadd.f32 %v215, %v222
  %v225 = vxor.u32 %v224, 2147483648
  %v226 = vmul.f32 %v225, 1.442695
  %v227 = vpow.pop %v226
  %v228 = vadd.f32 %v227, 1.0
  %v229 = vrcp.pop %v228
  %v230 = vmul.f32 1.0, %v229
  %v231 = vtanh.pop %v224
  %v232 = vmul.f32 %v230, 0.0
  %234 = vrot.lane.b32.xlu0 %v231, 64
  %v235 = vpop.permute.xlu0 %234
  %v237 = vmul.f32 %v230, %v235
  %239 = vrot.lane.b32.xlu0 %v237, 32
  %v240 = vpop.permute.xlu0 %239
  %v242 = vadd.f32 %v232, %v240
  %v243 = vtanh.pop %v242
  %245 = vrot.lane.b32.xlu0 %v243, 64
  %v246 = vpop.permute.xlu0 %245
  %v248 = vmul.f32 %v230, %v246
  %249 = vmatprep.subr.mxu0 0.0
  %250 = vmatpush1.msra.mxu0 %v50
  %251 = vmatprep.subr.mxu0 0.0
  %252 = vmatpush1.msra.mxu0 %v51
  %253 = vmatprep.subr.mxu0 0.0
  %254 = vmatpush1.msra.mxu0 %v52
  %255 = vmatprep.subr.mxu0 0.0
  %256 = vmatpush1.msra.mxu0 %v53
  %257 = vmatprep.subr.mxu0 0.0
  %258 = vmatpush1.msra.mxu0 0.0
  %259 = vmatprep.subr.mxu0 0.0
  %260 = vmatpush1.msra.mxu0 0.0
  %261 = vmatprep.subr.mxu0 0.0
  %262 = vmatpush1.msra.mxu0 0.0
  %263 = vmatprep.subr.mxu0 0.0
  %264 = vmatpush1.msra.mxu0 0.0
  %265 = vmatprep.subr.mxu0 0.0
  %266 = vmatpush1.msra.mxu0 0.0
  %267 = vmatprep.subr.mxu0 0.0
  %268 = vmatpush1.msra.mxu0 0.0
  %269 = vmatprep.subr.mxu0 0.0
  %270 = vmatpush1.msra.mxu0 0.0
  %271 = vmatprep.subr.mxu0 0.0
  %272 = vmatpush1.msra.mxu0 0.0
  %273 = vmatprep.subr.mxu0 0.0
  %274 = vmatpush1.msra.mxu0 0.0
  %275 = vmatprep.subr.mxu0 0.0
  %276 = vmatpush1.msra.mxu0 0.0
  %277 = vmatprep.subr.mxu0 0.0
  %278 = vmatpush1.msra.mxu0 0.0
  %279 = vmatprep.subr.mxu0 0.0
  %280 = vmatpush1.msra.mxu0 0.0
  %281 = vmatprep.subr.mxu0 0.0
  %282 = vmatpush1.msra.mxu0 0.0
  %283 = vmatprep.subr.mxu0 0.0
  %284 = vmatpush1.msra.mxu0 0.0
  %285 = vmatprep.subr.mxu0 0.0
  %286 = vmatpush1.msra.mxu0 0.0
  %287 = vmatprep.subr.mxu0 0.0
  %288 = vmatpush1.msra.mxu0 0.0
  %289 = vmatprep.subr.mxu0 0.0
  %290 = vmatpush1.msra.mxu0 0.0
  %291 = vmatprep.subr.mxu0 0.0
  %292 = vmatpush1.msra.mxu0 0.0
  %293 = vmatprep.subr.mxu0 0.0
  %294 = vmatpush1.msra.mxu0 0.0
  %295 = vmatprep.subr.mxu0 0.0
  %296 = vmatpush1.msra.mxu0 0.0
  %297 = vmatprep.subr.mxu0 0.0
  %298 = vmatpush1.msra.mxu0 0.0
  %299 = vmatprep.subr.mxu0 0.0
  %300 = vmatpush1.msra.mxu0 0.0
  %301 = vmatprep.subr.mxu0 0.0
  %302 = vmatpush1.msra.mxu0 0.0
  %303 = vmatprep.subr.mxu0 0.0
  %304 = vmatpush1.msra.mxu0 0.0
  %305 = vmatprep.subr.mxu0 0.0
  %306 = vmatpush1.msra.mxu0 0.0
  %307 = vmatprep.subr.mxu0 0.0
  %308 = vmatpush1.msra.mxu0 0.0
  %309 = vmatprep.subr.mxu0 0.0
  %310 = vmatpush1.msra.mxu0 0.0
  %311 = vmatprep.subr.mxu0 0.0
  %312 = vmatpush1.msra.mxu0 0.0
  %313 = vmatprep.mubr.f32.mxu0 0.0
  %314 = vmatmul.mubr.f32.gmra.mrb[0].mxu0 %v73
  %v315 = vpop.f32.mrb[0].mxu0
  %v316 = vadd.f32 0.0, %v315
  %v317 = vpop.f32.mrb[0].mxu0
  %318 = vdwg.mxu0
  %320 = vrot.lane.b32.xlu0 %v248, 32
  %v321 = vpop.permute.xlu0 %320
  %v322 = vsel %vm71, %v321, 0
  %324 = vmatprep.subr.mxu0 0.0
  %325 = vmatpush1.msra.mxu0 %v42
  %326 = vmatprep.subr.mxu0 0.0
  %327 = vmatpush1.msra.mxu0 %v43
  %328 = vmatprep.subr.mxu0 0.0
  %329 = vmatpush1.msra.mxu0 %v44
  %330 = vmatprep.subr.mxu0 0.0
  %331 = vmatpush1.msra.mxu0 %v45
  %332 = vmatprep.subr.mxu0 0.0
  %333 = vmatpush1.msra.mxu0 0.0
  %334 = vmatprep.subr.mxu0 0.0
  %335 = vmatpush1.msra.mxu0 0.0
  %336 = vmatprep.subr.mxu0 0.0
  %337 = vmatpush1.msra.mxu0 0.0
  %338 = vmatprep.subr.mxu0 0.0
  %339 = vmatpush1.msra.mxu0 0.0
  %340 = vmatprep.subr.mxu0 0.0
  %341 = vmatpush1.msra.mxu0 0.0
  %342 = vmatprep.subr.mxu0 0.0
  %343 = vmatpush1.msra.mxu0 0.0
  %344 = vmatprep.subr.mxu0 0.0
  %345 = vmatpush1.msra.mxu0 0.0
  %346 = vmatprep.subr.mxu0 0.0
  %347 = vmatpush1.msra.mxu0 0.0
  %348 = vmatprep.subr.mxu0 0.0
  %349 = vmatpush1.msra.mxu0 0.0
  %350 = vmatprep.subr.mxu0 0.0
  %351 = vmatpush1.msra.mxu0 0.0
  %352 = vmatprep.subr.mxu0 0.0
  %353 = vmatpush1.msra.mxu0 0.0
  %354 = vmatprep.subr.mxu0 0.0
  %355 = vmatpush1.msra.mxu0 0.0
  %356 = vmatprep.subr.mxu0 0.0
  %357 = vmatpush1.msra.mxu0 0.0
  %358 = vmatprep.subr.mxu0 0.0
  %359 = vmatpush1.msra.mxu0 0.0
  %360 = vmatprep.subr.mxu0 0.0
  %361 = vmatpush1.msra.mxu0 0.0
  %362 = vmatprep.subr.mxu0 0.0
  %363 = vmatpush1.msra.mxu0 0.0
  %364 = vmatprep.subr.mxu0 0.0
  %365 = vmatpush1.msra.mxu0 0.0
  %366 = vmatprep.subr.mxu0 0.0
  %367 = vmatpush1.msra.mxu0 0.0
  %368 = vmatprep.subr.mxu0 0.0
  %369 = vmatpush1.msra.mxu0 0.0
  %370 = vmatprep.subr.mxu0 0.0
  %371 = vmatpush1.msra.mxu0 0.0
  %372 = vmatprep.subr.mxu0 0.0
  %373 = vmatpush1.msra.mxu0 0.0
  %374 = vmatprep.subr.mxu0 0.0
  %375 = vmatpush1.msra.mxu0 0.0
  %376 = vmatprep.subr.mxu0 0.0
  %377 = vmatpush1.msra.mxu0 0.0
  %378 = vmatprep.subr.mxu0 0.0
  %379 = vmatpush1.msra.mxu0 0.0
  %380 = vmatprep.subr.mxu0 0.0
  %381 = vmatpush1.msra.mxu0 0.0
  %382 = vmatprep.subr.mxu0 0.0
  %383 = vmatpush1.msra.mxu0 0.0
  %384 = vmatprep.subr.mxu0 0.0
  %385 = vmatpush1.msra.mxu0 0.0
  %386 = vmatprep.subr.mxu0 0.0
  %387 = vmatpush1.msra.mxu0 0.0
  %388 = vmatprep.mubr.f32.mxu0 0.0
  %389 = vmatmul.mubr.f32.gmra.mrb[0].mxu0 %v322
  %v390 = vpop.f32.mrb[0].mxu0
  %v391 = vadd.f32 %v316, %v390
  %v392 = vpop.f32.mrb[0].mxu0
  %393 = vdwg.mxu0
  %v395 = vlaneseq
  %v396 = vshrl.u32 %v395, 7
  %v397 = vsub.s32 0, %v396
  %v398 = vrot.slane %v55, %v397
  %v400 = vadd.f32 %v391, %v398
  %v401 = vxor.u32 %v400, 2147483648
  %v402 = vmul.f32 %v401, 1.442695
  %v403 = vpow.pop %v402
  %v404 = vadd.f32 %v403, 1.0
  %v405 = vrcp.pop %v404
  %v406 = vmul.f32 1.0, %v405
  %v407 = vtanh.pop %v400
  %v408 = vmul.f32 %v406, 0.0
  %410 = vrot.lane.b32.xlu0 %v407, 64
  %v411 = vpop.permute.xlu0 %410
  %v413 = vmul.f32 %v406, %v411
  %415 = vrot.lane.b32.xlu0 %v413, 32
  %v416 = vpop.permute.xlu0 %415
  %v418 = vadd.f32 %v408, %v416
  %v419 = vtanh.pop %v418
  %421 = vrot.lane.b32.xlu0 %v419, 64
  %v422 = vpop.permute.xlu0 %421
  %v424 = vmul.f32 %v406, %v422
  %s425 = scalar_lea.vmem %s0, 8
  %v426 = vld [vmem:[%s425] sm:$0xff]
  %427 = vmatprep.subr.mxu0 0.0
  %428 = vmatpush1.msra.mxu0 %v46
  %429 = vmatprep.subr.mxu0 0.0
  %430 = vmatpush1.msra.mxu0 %v47
  %431 = vmatprep.subr.mxu0 0.0
  %432 = vmatpush1.msra.mxu0 %v48
  %433 = vmatprep.subr.mxu0 0.0
  %434 = vmatpush1.msra.mxu0 %v49
  %435 = vmatprep.subr.mxu0 0.0
  %436 = vmatpush1.msra.mxu0 0.0
  %437 = vmatprep.subr.mxu0 0.0
  %438 = vmatpush1.msra.mxu0 0.0
  %439 = vmatprep.subr.mxu0 0.0
  %440 = vmatpush1.msra.mxu0 0.0
  %441 = vmatprep.subr.mxu0 0.0
  %442 = vmatpush1.msra.mxu0 0.0
  %443 = vmatprep.subr.mxu0 0.0
  %444 = vmatpush1.msra.mxu0 0.0
  %445 = vmatprep.subr.mxu0 0.0
  %446 = vmatpush1.msra.mxu0 0.0
  %447 = vmatprep.subr.mxu0 0.0
  %448 = vmatpush1.msra.mxu0 0.0
  %449 = vmatprep.subr.mxu0 0.0
  %450 = vmatpush1.msra.mxu0 0.0
  %451 = vmatprep.subr.mxu0 0.0
  %452 = vmatpush1.msra.mxu0 0.0
  %453 = vmatprep.subr.mxu0 0.0
  %454 = vmatpush1.msra.mxu0 0.0
  %455 = vmatprep.subr.mxu0 0.0
  %456 = vmatpush1.msra.mxu0 0.0
  %457 = vmatprep.subr.mxu0 0.0
  %458 = vmatpush1.msra.mxu0 0.0
  %459 = vmatprep.subr.mxu0 0.0
  %460 = vmatpush1.msra.mxu0 0.0
  %461 = vmatprep.subr.mxu0 0.0
  %462 = vmatpush1.msra.mxu0 0.0
  %463 = vmatprep.subr.mxu0 0.0
  %464 = vmatpush1.msra.mxu0 0.0
  %465 = vmatprep.subr.mxu0 0.0
  %466 = vmatpush1.msra.mxu0 0.0
  %467 = vmatprep.subr.mxu0 0.0
  %468 = vmatpush1.msra.mxu0 0.0
  %469 = vmatprep.subr.mxu0 0.0
  %470 = vmatpush1.msra.mxu0 0.0
  %471 = vmatprep.subr.mxu0 0.0
  %472 = vmatpush1.msra.mxu0 0.0
  %473 = vmatprep.subr.mxu0 0.0
  %474 = vmatpush1.msra.mxu0 0.0
  %475 = vmatprep.subr.mxu0 0.0
  %476 = vmatpush1.msra.mxu0 0.0
  %477 = vmatprep.subr.mxu0 0.0
  %478 = vmatpush1.msra.mxu0 0.0
  %479 = vmatprep.subr.mxu0 0.0
  %480 = vmatpush1.msra.mxu0 0.0
  %481 = vmatprep.subr.mxu0 0.0
  %482 = vmatpush1.msra.mxu0 0.0
  %483 = vmatprep.subr.mxu0 0.0
  %484 = vmatpush1.msra.mxu0 0.0
  %485 = vmatprep.subr.mxu0 0.0
  %486 = vmatpush1.msra.mxu0 0.0
  %487 = vmatprep.subr.mxu0 0.0
  %488 = vmatpush1.msra.mxu0 0.0
  %489 = vmatprep.subr.mxu0 0.0
  %490 = vmatpush1.msra.mxu0 0.0
  %491 = vmatprep.mubr.f32.mxu0 0.0
  %492 = vmatmul.mubr.f32.gmra.mrb[0].mxu0 %v322
  %v493 = vpop.f32.mrb[0].mxu0
  %v494 = vadd.f32 0.0, %v493
  %v495 = vpop.f32.mrb[0].mxu0
  %496 = vdwg.mxu0
  %v498 = vsel %vm71, %v426, 0
  %500 = vmatprep.subr.mxu0 0.0
  %501 = vmatpush1.msra.mxu0 %v38
  %502 = vmatprep.subr.mxu0 0.0
  %503 = vmatpush1.msra.mxu0 %v39
  %504 = vmatprep.subr.mxu0 0.0
  %505 = vmatpush1.msra.mxu0 %v40
  %506 = vmatprep.subr.mxu0 0.0
  %507 = vmatpush1.msra.mxu0 %v41
  %508 = vmatprep.subr.mxu0 0.0
  %509 = vmatpush1.msra.mxu0 0.0
  %510 = vmatprep.subr.mxu0 0.0
  %511 = vmatpush1.msra.mxu0 0.0
  %512 = vmatprep.subr.mxu0 0.0
  %513 = vmatpush1.msra.mxu0 0.0
  %514 = vmatprep.subr.mxu0 0.0
  %515 = vmatpush1.msra.mxu0 0.0
  %516 = vmatprep.subr.mxu0 0.0
  %517 = vmatpush1.msra.mxu0 0.0
  %518 = vmatprep.subr.mxu0 0.0
  %519 = vmatpush1.msra.mxu0 0.0
  %520 = vmatprep.subr.mxu0 0.0
  %521 = vmatpush1.msra.mxu0 0.0
  %522 = vmatprep.subr.mxu0 0.0
  %523 = vmatpush1.msra.mxu0 0.0
  %524 = vmatprep.subr.mxu0 0.0
  %525 = vmatpush1.msra.mxu0 0.0
  %526 = vmatprep.subr.mxu0 0.0
  %527 = vmatpush1.msra.mxu0 0.0
  %528 = vmatprep.subr.mxu0 0.0
  %529 = vmatpush1.msra.mxu0 0.0
  %530 = vmatprep.subr.mxu0 0.0
  %531 = vmatpush1.msra.mxu0 0.0
  %532 = vmatprep.subr.mxu0 0.0
  %533 = vmatpush1.msra.mxu0 0.0
  %534 = vmatprep.subr.mxu0 0.0
  %535 = vmatpush1.msra.mxu0 0.0
  %536 = vmatprep.subr.mxu0 0.0
  %537 = vmatpush1.msra.mxu0 0.0
  %538 = vmatprep.subr.mxu0 0.0
  %539 = vmatpush1.msra.mxu0 0.0
  %540 = vmatprep.subr.mxu0 0.0
  %541 = vmatpush1.msra.mxu0 0.0
  %542 = vmatprep.subr.mxu0 0.0
  %543 = vmatpush1.msra.mxu0 0.0
  %544 = vmatprep.subr.mxu0 0.0
  %545 = vmatpush1.msra.mxu0 0.0
  %546 = vmatprep.subr.mxu0 0.0
  %547 = vmatpush1.msra.mxu0 0.0
  %548 = vmatprep.subr.mxu0 0.0
  %549 = vmatpush1.msra.mxu0 0.0
  %550 = vmatprep.subr.mxu0 0.0
  %551 = vmatpush1.msra.mxu0 0.0
  %552 = vmatprep.subr.mxu0 0.0
  %553 = vmatpush1.msra.mxu0 0.0
  %554 = vmatprep.subr.mxu0 0.0
  %555 = vmatpush1.msra.mxu0 0.0
  %556 = vmatprep.subr.mxu0 0.0
  %557 = vmatpush1.msra.mxu0 0.0
  %558 = vmatprep.subr.mxu0 0.0
  %559 = vmatpush1.msra.mxu0 0.0
  %560 = vmatprep.subr.mxu0 0.0
  %561 = vmatpush1.msra.mxu0 0.0
  %562 = vmatprep.subr.mxu0 0.0
  %563 = vmatpush1.msra.mxu0 0.0
  %564 = vmatprep.mubr.f32.mxu0 0.0
  %565 = vmatmul.mubr.f32.gmra.mrb[0].mxu0 %v498
  %v566 = vpop.f32.mrb[0].mxu0
  %v567 = vadd.f32 %v494, %v566
  %v568 = vpop.f32.mrb[0].mxu0
  %569 = vdwg.mxu0
  %v570 = vadd.f32 %v567, %v222
  %v571 = vxor.u32 %v570, 2147483648
  %v572 = vmul.f32 %v571, 1.442695
  %v573 = vpow.pop %v572
  %v574 = vadd.f32 %v573, 1.0
  %v575 = vrcp.pop %v574
  %v576 = vmul.f32 1.0, %v575
  %v577 = vtanh.pop %v570
  %v578 = vmul.f32 %v576, %v242
  %580 = vrot.lane.b32.xlu0 %v577, 64
  %v581 = vpop.permute.xlu0 %580
  %v583 = vmul.f32 %v576, %v581
  %585 = vrot.lane.b32.xlu0 %v583, 32
  %v586 = vpop.permute.xlu0 %585
  %v588 = vadd.f32 %v578, %v586
  %v589 = vtanh.pop %v588
  %591 = vrot.lane.b32.xlu0 %v589, 64
  %v592 = vpop.permute.xlu0 %591
  %v594 = vmul.f32 %v576, %v592
  %596 = vrot.lane.b32.xlu0 %v424, 32
  %v597 = vpop.permute.xlu0 %596
  %v598 = vsel %vm71, %v597, 0
  %600 = vmatprep.subr.mxu0 0.0
  %601 = vmatpush1.msra.mxu0 %v50
  %602 = vmatprep.subr.mxu0 0.0
  %603 = vmatpush1.msra.mxu0 %v51
  %604 = vmatprep.subr.mxu0 0.0
  %605 = vmatpush1.msra.mxu0 %v52
  %606 = vmatprep.subr.mxu0 0.0
  %607 = vmatpush1.msra.mxu0 %v53
  %608 = vmatprep.subr.mxu0 0.0
  %609 = vmatpush1.msra.mxu0 0.0
  %610 = vmatprep.subr.mxu0 0.0
  %611 = vmatpush1.msra.mxu0 0.0
  %612 = vmatprep.subr.mxu0 0.0
  %613 = vmatpush1.msra.mxu0 0.0
  %614 = vmatprep.subr.mxu0 0.0
  %615 = vmatpush1.msra.mxu0 0.0
  %616 = vmatprep.subr.mxu0 0.0
  %617 = vmatpush1.msra.mxu0 0.0
  %618 = vmatprep.subr.mxu0 0.0
  %619 = vmatpush1.msra.mxu0 0.0
  %620 = vmatprep.subr.mxu0 0.0
  %621 = vmatpush1.msra.mxu0 0.0
  %622 = vmatprep.subr.mxu0 0.0
  %623 = vmatpush1.msra.mxu0 0.0
  %624 = vmatprep.subr.mxu0 0.0
  %625 = vmatpush1.msra.mxu0 0.0
  %626 = vmatprep.subr.mxu0 0.0
  %627 = vmatpush1.msra.mxu0 0.0
  %628 = vmatprep.subr.mxu0 0.0
  %629 = vmatpush1.msra.mxu0 0.0
  %630 = vmatprep.subr.mxu0 0.0
  %631 = vmatpush1.msra.mxu0 0.0
  %632 = vmatprep.subr.mxu0 0.0
  %633 = vmatpush1.msra.mxu0 0.0
  %634 = vmatprep.subr.mxu0 0.0
  %635 = vmatpush1.msra.mxu0 0.0
  %636 = vmatprep.subr.mxu0 0.0
  %637 = vmatpush1.msra.mxu0 0.0
  %638 = vmatprep.subr.mxu0 0.0
  %639 = vmatpush1.msra.mxu0 0.0
  %640 = vmatprep.subr.mxu0 0.0
  %641 = vmatpush1.msra.mxu0 0.0
  %642 = vmatprep.subr.mxu0 0.0
  %643 = vmatpush1.msra.mxu0 0.0
  %644 = vmatprep.subr.mxu0 0.0
  %645 = vmatpush1.msra.mxu0 0.0
  %646 = vmatprep.subr.mxu0 0.0
  %647 = vmatpush1.msra.mxu0 0.0
  %648 = vmatprep.subr.mxu0 0.0
  %649 = vmatpush1.msra.mxu0 0.0
  %650 = vmatprep.subr.mxu0 0.0
  %651 = vmatpush1.msra.mxu0 0.0
  %652 = vmatprep.subr.mxu0 0.0
  %653 = vmatpush1.msra.mxu0 0.0
  %654 = vmatprep.subr.mxu0 0.0
  %655 = vmatpush1.msra.mxu0 0.0
  %656 = vmatprep.subr.mxu0 0.0
  %657 = vmatpush1.msra.mxu0 0.0
  %658 = vmatprep.subr.mxu0 0.0
  %659 = vmatpush1.msra.mxu0 0.0
  %660 = vmatprep.subr.mxu0 0.0
  %661 = vmatpush1.msra.mxu0 0.0
  %662 = vmatprep.subr.mxu0 0.0
  %663 = vmatpush1.msra.mxu0 0.0
  %664 = vmatprep.mubr.f32.mxu0 0.0
  %665 = vmatmul.mubr.f32.gmra.mrb[0].mxu0 %v598
  %v666 = vpop.f32.mrb[0].mxu0
  %v667 = vadd.f32 0.0, %v666
  %v668 = vpop.f32.mrb[0].mxu0
  %669 = vdwg.mxu0
  %671 = vrot.lane.b32.xlu0 %v594, 32
  %v672 = vpop.permute.xlu0 %671
  %v673 = vsel %vm71, %v672, 0
  %675 = vmatprep.subr.mxu0 0.0
  %676 = vmatpush1.msra.mxu0 %v42
  %677 = vmatprep.subr.mxu0 0.0
  %678 = vmatpush1.msra.mxu0 %v43
  %679 = vmatprep.subr.mxu0 0.0
  %680 = vmatpush1.msra.mxu0 %v44
  %681 = vmatprep.subr.mxu0 0.0
  %682 = vmatpush1.msra.mxu0 %v45
  %683 = vmatprep.subr.mxu0 0.0
  %684 = vmatpush1.msra.mxu0 0.0
  %685 = vmatprep.subr.mxu0 0.0
  %686 = vmatpush1.msra.mxu0 0.0
  %687 = vmatprep.subr.mxu0 0.0
  %688 = vmatpush1.msra.mxu0 0.0
  %689 = vmatprep.subr.mxu0 0.0
  %690 = vmatpush1.msra.mxu0 0.0
  %691 = vmatprep.subr.mxu0 0.0
  %692 = vmatpush1.msra.mxu0 0.0
  %693 = vmatprep.subr.mxu0 0.0
  %694 = vmatpush1.msra.mxu0 0.0
  %695 = vmatprep.subr.mxu0 0.0
  %696 = vmatpush1.msra.mxu0 0.0
  %697 = vmatprep.subr.mxu0 0.0
  %698 = vmatpush1.msra.mxu0 0.0
  %699 = vmatprep.subr.mxu0 0.0
  %700 = vmatpush1.msra.mxu0 0.0
  %701 = vmatprep.subr.mxu0 0.0
  %702 = vmatpush1.msra.mxu0 0.0
  %703 = vmatprep.subr.mxu0 0.0
  %704 = vmatpush1.msra.mxu0 0.0
  %705 = vmatprep.subr.mxu0 0.0
  %706 = vmatpush1.msra.mxu0 0.0
  %707 = vmatprep.subr.mxu0 0.0
  %708 = vmatpush1.msra.mxu0 0.0
  %709 = vmatprep.subr.mxu0 0.0
  %710 = vmatpush1.msra.mxu0 0.0
  %711 = vmatprep.subr.mxu0 0.0
  %712 = vmatpush1.msra.mxu0 0.0
  %713 = vmatprep.subr.mxu0 0.0
  %714 = vmatpush1.msra.mxu0 0.0
  %715 = vmatprep.subr.mxu0 0.0
  %716 = vmatpush1.msra.mxu0 0.0
  %717 = vmatprep.subr.mxu0 0.0
  %718 = vmatpush1.msra.mxu0 0.0
  %719 = vmatprep.subr.mxu0 0.0
  %720 = vmatpush1.msra.mxu0 0.0
  %721 = vmatprep.subr.mxu0 0.0
  %722 = vmatpush1.msra.mxu0 0.0
  %723 = vmatprep.subr.mxu0 0.0
  %724 = vmatpush1.msra.mxu0 0.0
  %725 = vmatprep.subr.mxu0 0.0
  %726 = vmatpush1.msra.mxu0 0.0
  %727 = vmatprep.subr.mxu0 0.0
  %728 = vmatpush1.msra.mxu0 0.0
  %729 = vmatprep.subr.mxu0 0.0
  %730 = vmatpush1.msra.mxu0 0.0
  %731 = vmatprep.subr.mxu0 0.0
  %732 = vmatpush1.msra.mxu0 0.0
  %733 = vmatprep.subr.mxu0 0.0
  %734 = vmatpush1.msra.mxu0 0.0
  %735 = vmatprep.subr.mxu0 0.0
  %736 = vmatpush1.msra.mxu0 0.0
  %737 = vmatprep.subr.mxu0 0.0
  %738 = vmatpush1.msra.mxu0 0.0
  %739 = vmatprep.mubr.f32.mxu0 0.0
  %740 = vmatmul.mubr.f32.gmra.mrb[0].mxu0 %v673
  %v741 = vpop.f32.mrb[0].mxu0
  %v742 = vadd.f32 %v667, %v741
  %v743 = vpop.f32.mrb[0].mxu0
  %744 = vdwg.mxu0
  %v745 = vadd.f32 %v742, %v398
  %v746 = vxor.u32 %v745, 2147483648
  %v747 = vmul.f32 %v746, 1.442695
  %v748 = vpow.pop %v747
  %v749 = vadd.f32 %v748, 1.0
  %v750 = vrcp.pop %v749
  %v751 = vmul.f32 1.0, %v750
  %v752 = vtanh.pop %v745
  %v753 = vmul.f32 %v751, %v418
  %755 = vrot.lane.b32.xlu0 %v752, 64
  %v756 = vpop.permute.xlu0 %755
  %v758 = vmul.f32 %v751, %v756
  %760 = vrot.lane.b32.xlu0 %v758, 32
  %v761 = vpop.permute.xlu0 %760
  %v763 = vadd.f32 %v753, %v761
  %v764 = vtanh.pop %v763
  %766 = vrot.lane.b32.xlu0 %v764, 64
  %v767 = vpop.permute.xlu0 %766
  %v769 = vmul.f32 %v751, %v767
  %s770 = scalar_lea.vmem %s0, 16
  %v771 = vld [vmem:[%s770] sm:$0xff]
  %772 = vmatprep.subr.mxu0 0.0
  %773 = vmatpush1.msra.mxu0 %v46
  %774 = vmatprep.subr.mxu0 0.0
  %775 = vmatpush1.msra.mxu0 %v47
  %776 = vmatprep.subr.mxu0 0.0
  %777 = vmatpush1.msra.mxu0 %v48
  %778 = vmatprep.subr.mxu0 0.0
  %779 = vmatpush1.msra.mxu0 %v49
  %780 = vmatprep.subr.mxu0 0.0
  %781 = vmatpush1.msra.mxu0 0.0
  %782 = vmatprep.subr.mxu0 0.0
  %783 = vmatpush1.msra.mxu0 0.0
  %784 = vmatprep.subr.mxu0 0.0
  %785 = vmatpush1.msra.mxu0 0.0
  %786 = vmatprep.subr.mxu0 0.0
  %787 = vmatpush1.msra.mxu0 0.0
  %788 = vmatprep.subr.mxu0 0.0
  %789 = vmatpush1.msra.mxu0 0.0
  %790 = vmatprep.subr.mxu0 0.0
  %791 = vmatpush1.msra.mxu0 0.0
  %792 = vmatprep.subr.mxu0 0.0
  %793 = vmatpush1.msra.mxu0 0.0
  %794 = vmatprep.subr.mxu0 0.0
  %795 = vmatpush1.msra.mxu0 0.0
  %796 = vmatprep.subr.mxu0 0.0
  %797 = vmatpush1.msra.mxu0 0.0
  %798 = vmatprep.subr.mxu0 0.0
  %799 = vmatpush1.msra.mxu0 0.0
  %800 = vmatprep.subr.mxu0 0.0
  %801 = vmatpush1.msra.mxu0 0.0
  %802 = vmatprep.subr.mxu0 0.0
  %803 = vmatpush1.msra.mxu0 0.0
  %804 = vmatprep.subr.mxu0 0.0
  %805 = vmatpush1.msra.mxu0 0.0
  %806 = vmatprep.subr.mxu0 0.0
  %807 = vmatpush1.msra.mxu0 0.0
  %808 = vmatprep.subr.mxu0 0.0
  %809 = vmatpush1.msra.mxu0 0.0
  %810 = vmatprep.subr.mxu0 0.0
  %811 = vmatpush1.msra.mxu0 0.0
  %812 = vmatprep.subr.mxu0 0.0
  %813 = vmatpush1.msra.mxu0 0.0
  %814 = vmatprep.subr.mxu0 0.0
  %815 = vmatpush1.msra.mxu0 0.0
  %816 = vmatprep.subr.mxu0 0.0
  %817 = vmatpush1.msra.mxu0 0.0
  %818 = vmatprep.subr.mxu0 0.0
  %819 = vmatpush1.msra.mxu0 0.0
  %820 = vmatprep.subr.mxu0 0.0
  %821 = vmatpush1.msra.mxu0 0.0
  %822 = vmatprep.subr.mxu0 0.0
  %823 = vmatpush1.msra.mxu0 0.0
  %824 = vmatprep.subr.mxu0 0.0
  %825 = vmatpush1.msra.mxu0 0.0
  %826 = vmatprep.subr.mxu0 0.0
  %827 = vmatpush1.msra.mxu0 0.0
  %828 = vmatprep.subr.mxu0 0.0
  %829 = vmatpush1.msra.mxu0 0.0
  %830 = vmatprep.subr.mxu0 0.0
  %831 = vmatpush1.msra.mxu0 0.0
  %832 = vmatprep.subr.mxu0 0.0
  %833 = vmatpush1.msra.mxu0 0.0
  %834 = vmatprep.subr.mxu0 0.0
  %835 = vmatpush1.msra.mxu0 0.0
  %836 = vmatprep.mubr.f32.mxu0 0.0
  %837 = vmatmul.mubr.f32.gmra.mrb[0].mxu0 %v673
  %v838 = vpop.f32.mrb[0].mxu0
  %v839 = vadd.f32 0.0, %v838
  %v840 = vpop.f32.mrb[0].mxu0
  %841 = vdwg.mxu0
  %v843 = vsel %vm71, %v771, 0
  %845 = vmatprep.subr.mxu0 0.0
  %846 = vmatpush1.msra.mxu0 %v38
  %847 = vmatprep.subr.mxu0 0.0
  %848 = vmatpush1.msra.mxu0 %v39
  %849 = vmatprep.subr.mxu0 0.0
  %850 = vmatpush1.msra.mxu0 %v40
  %851 = vmatprep.subr.mxu0 0.0
  %852 = vmatpush1.msra.mxu0 %v41
  %853 = vmatprep.subr.mxu0 0.0
  %854 = vmatpush1.msra.mxu0 0.0
  %855 = vmatprep.subr.mxu0 0.0
  %856 = vmatpush1.msra.mxu0 0.0
  %857 = vmatprep.subr.mxu0 0.0
  %858 = vmatpush1.msra.mxu0 0.0
  %859 = vmatprep.subr.mxu0 0.0
  %860 = vmatpush1.msra.mxu0 0.0
  %861 = vmatprep.subr.mxu0 0.0
  %862 = vmatpush1.msra.mxu0 0.0
  %863 = vmatprep.subr.mxu0 0.0
  %864 = vmatpush1.msra.mxu0 0.0
  %865 = vmatprep.subr.mxu0 0.0
  %866 = vmatpush1.msra.mxu0 0.0
  %867 = vmatprep.subr.mxu0 0.0
  %868 = vmatpush1.msra.mxu0 0.0
  %869 = vmatprep.subr.mxu0 0.0
  %870 = vmatpush1.msra.mxu0 0.0
  %871 = vmatprep.subr.mxu0 0.0
  %872 = vmatpush1.msra.mxu0 0.0
  %873 = vmatprep.subr.mxu0 0.0
  %874 = vmatpush1.msra.mxu0 0.0
  %875 = vmatprep.subr.mxu0 0.0
  %876 = vmatpush1.msra.mxu0 0.0
  %877 = vmatprep.subr.mxu0 0.0
  %878 = vmatpush1.msra.mxu0 0.0
  %879 = vmatprep.subr.mxu0 0.0
  %880 = vmatpush1.msra.mxu0 0.0
  %881 = vmatprep.subr.mxu0 0.0
  %882 = vmatpush1.msra.mxu0 0.0
  %883 = vmatprep.subr.mxu0 0.0
  %884 = vmatpush1.msra.mxu0 0.0
  %885 = vmatprep.subr.mxu0 0.0
  %886 = vmatpush1.msra.mxu0 0.0
  %887 = vmatprep.subr.mxu0 0.0
  %888 = vmatpush1.msra.mxu0 0.0
  %889 = vmatprep.subr.mxu0 0.0
  %890 = vmatpush1.msra.mxu0 0.0
  %891 = vmatprep.subr.mxu0 0.0
  %892 = vmatpush1.msra.mxu0 0.0
  %893 = vmatprep.subr.mxu0 0.0
  %894 = vmatpush1.msra.mxu0 0.0
  %895 = vmatprep.subr.mxu0 0.0
  %896 = vmatpush1.msra.mxu0 0.0
  %897 = vmatprep.subr.mxu0 0.0
  %898 = vmatpush1.msra.mxu0 0.0
  %899 = vmatprep.subr.mxu0 0.0
  %900 = vmatpush1.msra.mxu0 0.0
  %901 = vmatprep.subr.mxu0 0.0
  %902 = vmatpush1.msra.mxu0 0.0
  %903 = vmatprep.subr.mxu0 0.0
  %904 = vmatpush1.msra.mxu0 0.0
  %905 = vmatprep.subr.mxu0 0.0
  %906 = vmatpush1.msra.mxu0 0.0
  %907 = vmatprep.subr.mxu0 0.0
  %908 = vmatpush1.msra.mxu0 0.0
  %909 = vmatprep.mubr.f32.mxu0 0.0
  %910 = vmatmul.mubr.f32.gmra.mrb[0].mxu0 %v843
  %v911 = vpop.f32.mrb[0].mxu0
  %v912 = vadd.f32 %v839, %v911
  %v913 = vpop.f32.mrb[0].mxu0
  %914 = vdwg.mxu0
  %v915 = vadd.f32 %v912, %v222
  %v916 = vxor.u32 %v915, 2147483648
  %v917 = vmul.f32 %v916, 1.442695
  %v918 = vpow.pop %v917
  %v919 = vadd.f32 %v918, 1.0
  %v920 = vrcp.pop %v919
  %v921 = vmul.f32 1.0, %v920
  %v922 = vtanh.pop %v915
  %v923 = vmul.f32 %v921, %v588
  %925 = vrot.lane.b32.xlu0 %v922, 64
  %v926 = vpop.permute.xlu0 %925
  %v928 = vmul.f32 %v921, %v926
  %930 = vrot.lane.b32.xlu0 %v928, 32
  %v931 = vpop.permute.xlu0 %930
  %v933 = vadd.f32 %v923, %v931
  %v934 = vtanh.pop %v933
  %936 = vrot.lane.b32.xlu0 %v934, 64
  %v937 = vpop.permute.xlu0 %936
  %v939 = vmul.f32 %v921, %v937
  %941 = vrot.lane.b32.xlu0 %v769, 32
  %v942 = vpop.permute.xlu0 %941
  %v943 = vsel %vm71, %v942, 0
  %945 = vmatprep.subr.mxu0 0.0
  %946 = vmatpush1.msra.mxu0 %v50
  %947 = vmatprep.subr.mxu0 0.0
  %948 = vmatpush1.msra.mxu0 %v51
  %949 = vmatprep.subr.mxu0 0.0
  %950 = vmatpush1.msra.mxu0 %v52
  %951 = vmatprep.subr.mxu0 0.0
  %952 = vmatpush1.msra.mxu0 %v53
  %953 = vmatprep.subr.mxu0 0.0
  %954 = vmatpush1.msra.mxu0 0.0
  %955 = vmatprep.subr.mxu0 0.0
  %956 = vmatpush1.msra.mxu0 0.0
  %957 = vmatprep.subr.mxu0 0.0
  %958 = vmatpush1.msra.mxu0 0.0
  %959 = vmatprep.subr.mxu0 0.0
  %960 = vmatpush1.msra.mxu0 0.0
  %961 = vmatprep.subr.mxu0 0.0
  %962 = vmatpush1.msra.mxu0 0.0
  %963 = vmatprep.subr.mxu0 0.0
  %964 = vmatpush1.msra.mxu0 0.0
  %965 = vmatprep.subr.mxu0 0.0
  %966 = vmatpush1.msra.mxu0 0.0
  %967 = vmatprep.subr.mxu0 0.0
  %968 = vmatpush1.msra.mxu0 0.0
  %969 = vmatprep.subr.mxu0 0.0
  %970 = vmatpush1.msra.mxu0 0.0
  %971 = vmatprep.subr.mxu0 0.0
  %972 = vmatpush1.msra.mxu0 0.0
  %973 = vmatprep.subr.mxu0 0.0
  %974 = vmatpush1.msra.mxu0 0.0
  %975 = vmatprep.subr.mxu0 0.0
  %976 = vmatpush1.msra.mxu0 0.0
  %977 = vmatprep.subr.mxu0 0.0
  %978 = vmatpush1.msra.mxu0 0.0
  %979 = vmatprep.subr.mxu0 0.0
  %980 = vmatpush1.msra.mxu0 0.0
  %981 = vmatprep.subr.mxu0 0.0
  %982 = vmatpush1.msra.mxu0 0.0
  %983 = vmatprep.subr.mxu0 0.0
  %984 = vmatpush1.msra.mxu0 0.0
  %985 = vmatprep.subr.mxu0 0.0
  %986 = vmatpush1.msra.mxu0 0.0
  %987 = vmatprep.subr.mxu0 0.0
  %988 = vmatpush1.msra.mxu0 0.0
  %989 = vmatprep.subr.mxu0 0.0
  %990 = vmatpush1.msra.mxu0 0.0
  %991 = vmatprep.subr.mxu0 0.0
  %992 = vmatpush1.msra.mxu0 0.0
  %993 = vmatprep.subr.mxu0 0.0
  %994 = vmatpush1.msra.mxu0 0.0
  %995 = vmatprep.subr.mxu0 0.0
  %996 = vmatpush1.msra.mxu0 0.0
  %997 = vmatprep.subr.mxu0 0.0
  %998 = vmatpush1.msra.mxu0 0.0
  %999 = vmatprep.subr.mxu0 0.0
  %1000 = vmatpush1.msra.mxu0 0.0
  %1001 = vmatprep.subr.mxu0 0.0
  %1002 = vmatpush1.msra.mxu0 0.0
  %1003 = vmatprep.subr.mxu0 0.0
  %1004 = vmatpush1.msra.mxu0 0.0
  %1005 = vmatprep.subr.mxu0 0.0
  %1006 = vmatpush1.msra.mxu0 0.0
  %1007 = vmatprep.subr.mxu0 0.0
  %1008 = vmatpush1.msra.mxu0 0.0
  %1009 = vmatprep.mubr.f32.mxu0 0.0
  %1010 = vmatmul.mubr.f32.gmra.mrb[0].mxu0 %v943
  %v1011 = vpop.f32.mrb[0].mxu0
  %v1012 = vadd.f32 0.0, %v1011
  %v1013 = vpop.f32.mrb[0].mxu0
  %1014 = vdwg.mxu0
  %1016 = vrot.lane.b32.xlu0 %v939, 32
  %v1017 = vpop.permute.xlu0 %1016
  %v1018 = vsel %vm71, %v1017, 0
  %1020 = vmatprep.subr.mxu0 0.0
  %1021 = vmatpush1.msra.mxu0 %v42
  %1022 = vmatprep.subr.mxu0 0.0
  %1023 = vmatpush1.msra.mxu0 %v43
  %1024 = vmatprep.subr.mxu0 0.0
  %1025 = vmatpush1.msra.mxu0 %v44
  %1026 = vmatprep.subr.mxu0 0.0
  %1027 = vmatpush1.msra.mxu0 %v45
  %1028 = vmatprep.subr.mxu0 0.0
  %1029 = vmatpush1.msra.mxu0 0.0
  %1030 = vmatprep.subr.mxu0 0.0
  %1031 = vmatpush1.msra.mxu0 0.0
  %1032 = vmatprep.subr.mxu0 0.0
  %1033 = vmatpush1.msra.mxu0 0.0
  %1034 = vmatprep.subr.mxu0 0.0
  %1035 = vmatpush1.msra.mxu0 0.0
  %1036 = vmatprep.subr.mxu0 0.0
  %1037 = vmatpush1.msra.mxu0 0.0
  %1038 = vmatprep.subr.mxu0 0.0
  %1039 = vmatpush1.msra.mxu0 0.0
  %1040 = vmatprep.subr.mxu0 0.0
  %1041 = vmatpush1.msra.mxu0 0.0
  %1042 = vmatprep.subr.mxu0 0.0
  %1043 = vmatpush1.msra.mxu0 0.0
  %1044 = vmatprep.subr.mxu0 0.0
  %1045 = vmatpush1.msra.mxu0 0.0
  %1046 = vmatprep.subr.mxu0 0.0
  %1047 = vmatpush1.msra.mxu0 0.0
  %1048 = vmatprep.subr.mxu0 0.0
  %1049 = vmatpush1.msra.mxu0 0.0
  %1050 = vmatprep.subr.mxu0 0.0
  %1051 = vmatpush1.msra.mxu0 0.0
  %1052 = vmatprep.subr.mxu0 0.0
  %1053 = vmatpush1.msra.mxu0 0.0
  %1054 = vmatprep.subr.mxu0 0.0
  %1055 = vmatpush1.msra.mxu0 0.0
  %1056 = vmatprep.subr.mxu0 0.0
  %1057 = vmatpush1.msra.mxu0 0.0
  %1058 = vmatprep.subr.mxu0 0.0
  %1059 = vmatpush1.msra.mxu0 0.0
  %1060 = vmatprep.subr.mxu0 0.0
  %1061 = vmatpush1.msra.mxu0 0.0
  %1062 = vmatprep.subr.mxu0 0.0
  %1063 = vmatpush1.msra.mxu0 0.0
  %1064 = vmatprep.subr.mxu0 0.0
  %1065 = vmatpush1.msra.mxu0 0.0
  %1066 = vmatprep.subr.mxu0 0.0
  %1067 = vmatpush1.msra.mxu0 0.0
  %1068 = vmatprep.subr.mxu0 0.0
  %1069 = vmatpush1.msra.mxu0 0.0
  %1070 = vmatprep.subr.mxu0 0.0
  %1071 = vmatpush1.msra.mxu0 0.0
  %1072 = vmatprep.subr.mxu0 0.0
  %1073 = vmatpush1.msra.mxu0 0.0
  %1074 = vmatprep.subr.mxu0 0.0
  %1075 = vmatpush1.msra.mxu0 0.0
  %1076 = vmatprep.subr.mxu0 0.0
  %1077 = vmatpush1.msra.mxu0 0.0
  %1078 = vmatprep.subr.mxu0 0.0
  %1079 = vmatpush1.msra.mxu0 0.0
  %1080 = vmatprep.subr.mxu0 0.0
  %1081 = vmatpush1.msra.mxu0 0.0
  %1082 = vmatprep.subr.mxu0 0.0
  %1083 = vmatpush1.msra.mxu0 0.0
  %1084 = vmatprep.mubr.f32.mxu0 0.0
  %1085 = vmatmul.mubr.f32.gmra.mrb[0].mxu0 %v1018
  %v1086 = vpop.f32.mrb[0].mxu0
  %v1087 = vadd.f32 %v1012, %v1086
  %v1088 = vpop.f32.mrb[0].mxu0
  %1089 = vdwg.mxu0
  %v1090 = vadd.f32 %v1087, %v398
  %v1091 = vxor.u32 %v1090, 2147483648
  %v1092 = vmul.f32 %v1091, 1.442695
  %v1093 = vpow.pop %v1092
  %v1094 = vadd.f32 %v1093, 1.0
  %v1095 = vrcp.pop %v1094
  %v1096 = vmul.f32 1.0, %v1095
  %v1097 = vtanh.pop %v1090
  %v1098 = vmul.f32 %v1096, %v763
  %1100 = vrot.lane.b32.xlu0 %v1097, 64
  %v1101 = vpop.permute.xlu0 %1100
  %v1103 = vmul.f32 %v1096, %v1101
  %1105 = vrot.lane.b32.xlu0 %v1103, 32
  %v1106 = vpop.permute.xlu0 %1105
  %v1108 = vadd.f32 %v1098, %v1106
  %v1109 = vtanh.pop %v1108
  %1111 = vrot.lane.b32.xlu0 %v1109, 64
  %v1112 = vpop.permute.xlu0 %1111
  %v1114 = vmul.f32 %v1096, %v1112
  %s1115 = scalar_lea.vmem %s0, 24
  %v1116 = vld [vmem:[%s1115] sm:$0xff]
  %1117 = vmatprep.subr.mxu0 0.0
  %1118 = vmatpush1.msra.mxu0 %v46
  %1119 = vmatprep.subr.mxu0 0.0
  %1120 = vmatpush1.msra.mxu0 %v47
  %1121 = vmatprep.subr.mxu0 0.0
  %1122 = vmatpush1.msra.mxu0 %v48
  %1123 = vmatprep.subr.mxu0 0.0
  %1124 = vmatpush1.msra.mxu0 %v49
  %1125 = vmatprep.subr.mxu0 0.0
  %1126 = vmatpush1.msra.mxu0 0.0
  %1127 = vmatprep.subr.mxu0 0.0
  %1128 = vmatpush1.msra.mxu0 0.0
  %1129 = vmatprep.subr.mxu0 0.0
  %1130 = vmatpush1.msra.mxu0 0.0
  %1131 = vmatprep.subr.mxu0 0.0
  %1132 = vmatpush1.msra.mxu0 0.0
  %1133 = vmatprep.subr.mxu0 0.0
  %1134 = vmatpush1.msra.mxu0 0.0
  %1135 = vmatprep.subr.mxu0 0.0
  %1136 = vmatpush1.msra.mxu0 0.0
  %1137 = vmatprep.subr.mxu0 0.0
  %1138 = vmatpush1.msra.mxu0 0.0
  %1139 = vmatprep.subr.mxu0 0.0
  %1140 = vmatpush1.msra.mxu0 0.0
  %1141 = vmatprep.subr.mxu0 0.0
  %1142 = vmatpush1.msra.mxu0 0.0
  %1143 = vmatprep.subr.mxu0 0.0
  %1144 = vmatpush1.msra.mxu0 0.0
  %1145 = vmatprep.subr.mxu0 0.0
  %1146 = vmatpush1.msra.mxu0 0.0
  %1147 = vmatprep.subr.mxu0 0.0
  %1148 = vmatpush1.msra.mxu0 0.0
  %1149 = vmatprep.subr.mxu0 0.0
  %1150 = vmatpush1.msra.mxu0 0.0
  %1151 = vmatprep.subr.mxu0 0.0
  %1152 = vmatpush1.msra.mxu0 0.0
  %1153 = vmatprep.subr.mxu0 0.0
  %1154 = vmatpush1.msra.mxu0 0.0
  %1155 = vmatprep.subr.mxu0 0.0
  %1156 = vmatpush1.msra.mxu0 0.0
  %1157 = vmatprep.subr.mxu0 0.0
  %1158 = vmatpush1.msra.mxu0 0.0
  %1159 = vmatprep.subr.mxu0 0.0
  %1160 = vmatpush1.msra.mxu0 0.0
  %1161 = vmatprep.subr.mxu0 0.0
  %1162 = vmatpush1.msra.mxu0 0.0
  %1163 = vmatprep.subr.mxu0 0.0
  %1164 = vmatpush1.msra.mxu0 0.0
  %1165 = vmatprep.subr.mxu0 0.0
  %1166 = vmatpush1.msra.mxu0 0.0
  %1167 = vmatprep.subr.mxu0 0.0
  %1168 = vmatpush1.msra.mxu0 0.0
  %1169 = vmatprep.subr.mxu0 0.0
  %1170 = vmatpush1.msra.mxu0 0.0
  %1171 = vmatprep.subr.mxu0 0.0
  %1172 = vmatpush1.msra.mxu0 0.0
  %1173 = vmatprep.subr.mxu0 0.0
  %1174 = vmatpush1.msra.mxu0 0.0
  %1175 = vmatprep.subr.mxu0 0.0
  %1176 = vmatpush1.msra.mxu0 0.0
  %1177 = vmatprep.subr.mxu0 0.0
  %1178 = vmatpush1.msra.mxu0 0.0
  %1179 = vmatprep.subr.mxu0 0.0
  %1180 = vmatpush1.msra.mxu0 0.0
  %1181 = vmatprep.mubr.f32.mxu0 0.0
  %1182 = vmatmul.mubr.f32.gmra.mrb[0].mxu0 %v1018
  %v1183 = vpop.f32.mrb[0].mxu0
  %v1184 = vadd.f32 0.0, %v1183
  %v1185 = vpop.f32.mrb[0].mxu0
  %1186 = vdwg.mxu0
  %v1188 = vsel %vm71, %v1116, 0
  %1190 = vmatprep.subr.mxu0 0.0
  %1191 = vmatpush1.msra.mxu0 %v38
  %1192 = vmatprep.subr.mxu0 0.0
  %1193 = vmatpush1.msra.mxu0 %v39
  %1194 = vmatprep.subr.mxu0 0.0
  %1195 = vmatpush1.msra.mxu0 %v40
  %1196 = vmatprep.subr.mxu0 0.0
  %1197 = vmatpush1.msra.mxu0 %v41
  %1198 = vmatprep.subr.mxu0 0.0
  %1199 = vmatpush1.msra.mxu0 0.0
  %1200 = vmatprep.subr.mxu0 0.0
  %1201 = vmatpush1.msra.mxu0 0.0
  %1202 = vmatprep.subr.mxu0 0.0
  %1203 = vmatpush1.msra.mxu0 0.0
  %1204 = vmatprep.subr.mxu0 0.0
  %1205 = vmatpush1.msra.mxu0 0.0
  %1206 = vmatprep.subr.mxu0 0.0
  %1207 = vmatpush1.msra.mxu0 0.0
  %1208 = vmatprep.subr.mxu0 0.0
  %1209 = vmatpush1.msra.mxu0 0.0
  %1210 = vmatprep.subr.mxu0 0.0
  %1211 = vmatpush1.msra.mxu0 0.0
  %1212 = vmatprep.subr.mxu0 0.0
  %1213 = vmatpush1.msra.mxu0 0.0
  %1214 = vmatprep.subr.mxu0 0.0
  %1215 = vmatpush1.msra.mxu0 0.0
  %1216 = vmatprep.subr.mxu0 0.0
  %1217 = vmatpush1.msra.mxu0 0.0
  %1218 = vmatprep.subr.mxu0 0.0
  %1219 = vmatpush1.msra.mxu0 0.0
  %1220 = vmatprep.subr.mxu0 0.0
  %1221 = vmatpush1.msra.mxu0 0.0
  %1222 = vmatprep.subr.mxu0 0.0
  %1223 = vmatpush1.msra.mxu0 0.0
  %1224 = vmatprep.subr.mxu0 0.0
  %1225 = vmatpush1.msra.mxu0 0.0
  %1226 = vmatprep.subr.mxu0 0.0
  %1227 = vmatpush1.msra.mxu0 0.0
  %1228 = vmatprep.subr.mxu0 0.0
  %1229 = vmatpush1.msra.mxu0 0.0
  %1230 = vmatprep.subr.mxu0 0.0
  %1231 = vmatpush1.msra.mxu0 0.0
  %1232 = vmatprep.subr.mxu0 0.0
  %1233 = vmatpush1.msra.mxu0 0.0
  %1234 = vmatprep.subr.mxu0 0.0
  %1235 = vmatpush1.msra.mxu0 0.0
  %1236 = vmatprep.subr.mxu0 0.0
  %1237 = vmatpush1.msra.mxu0 0.0
  %1238 = vmatprep.subr.mxu0 0.0
  %1239 = vmatpush1.msra.mxu0 0.0
  %1240 = vmatprep.subr.mxu0 0.0
  %1241 = vmatpush1.msra.mxu0 0.0
  %1242 = vmatprep.subr.mxu0 0.0
  %1243 = vmatpush1.msra.mxu0 0.0
  %1244 = vmatprep.subr.mxu0 0.0
  %1245 = vmatpush1.msra.mxu0 0.0
  %1246 = vmatprep.subr.mxu0 0.0
  %1247 = vmatpush1.msra.mxu0 0.0
  %1248 = vmatprep.subr.mxu0 0.0
  %1249 = vmatpush1.msra.mxu0 0.0
  %1250 = vmatprep.subr.mxu0 0.0
  %1251 = vmatpush1.msra.mxu0 0.0
  %1252 = vmatprep.subr.mxu0 0.0
  %1253 = vmatpush1.msra.mxu0 0.0
  %1254 = vmatprep.mubr.f32.mxu0 0.0
  %1255 = vmatmul.mubr.f32.gmra.mrb[0].mxu0 %v1188
  %v1256 = vpop.f32.mrb[0].mxu0
  %v1257 = vadd.f32 %v1184, %v1256
  %v1258 = vpop.f32.mrb[0].mxu0
  %1259 = vdwg.mxu0
  %v1260 = vadd.f32 %v1257, %v222
  %v1261 = vxor.u32 %v1260, 2147483648
  %v1262 = vmul.f32 %v1261, 1.442695
  %v1263 = vpow.pop %v1262
  %v1264 = vadd.f32 %v1263, 1.0
  %v1265 = vrcp.pop %v1264
  %v1266 = vmul.f32 1.0, %v1265
  %v1267 = vtanh.pop %v1260
  %v1268 = vmul.f32 %v1266, %v933
  %1270 = vrot.lane.b32.xlu0 %v1267, 64
  %v1271 = vpop.permute.xlu0 %1270
  %v1273 = vmul.f32 %v1266, %v1271
  %1275 = vrot.lane.b32.xlu0 %v1273, 32
  %v1276 = vpop.permute.xlu0 %1275
  %v1278 = vadd.f32 %v1268, %v1276
  %v1279 = vtanh.pop %v1278
  %1281 = vrot.lane.b32.xlu0 %v1279, 64
  %v1282 = vpop.permute.xlu0 %1281
  %v1284 = vmul.f32 %v1266, %v1282
  %1286 = vrot.lane.b32.xlu0 %v1114, 32
  %v1287 = vpop.permute.xlu0 %1286
  %v1288 = vsel %vm71, %v1287, 0
  %1290 = vmatprep.subr.mxu0 0.0
  %1291 = vmatpush1.msra.mxu0 %v50
  %1292 = vmatprep.subr.mxu0 0.0
  %1293 = vmatpush1.msra.mxu0 %v51
  %1294 = vmatprep.subr.mxu0 0.0
  %1295 = vmatpush1.msra.mxu0 %v52
  %1296 = vmatprep.subr.mxu0 0.0
  %1297 = vmatpush1.msra.mxu0 %v53
  %1298 = vmatprep.subr.mxu0 0.0
  %1299 = vmatpush1.msra.mxu0 0.0
  %1300 = vmatprep.subr.mxu0 0.0
  %1301 = vmatpush1.msra.mxu0 0.0
  %1302 = vmatprep.subr.mxu0 0.0
  %1303 = vmatpush1.msra.mxu0 0.0
  %1304 = vmatprep.subr.mxu0 0.0
  %1305 = vmatpush1.msra.mxu0 0.0
  %1306 = vmatprep.subr.mxu0 0.0
  %1307 = vmatpush1.msra.mxu0 0.0
  %1308 = vmatprep.subr.mxu0 0.0
  %1309 = vmatpush1.msra.mxu0 0.0
  %1310 = vmatprep.subr.mxu0 0.0
  %1311 = vmatpush1.msra.mxu0 0.0
  %1312 = vmatprep.subr.mxu0 0.0
  %1313 = vmatpush1.msra.mxu0 0.0
  %1314 = vmatprep.subr.mxu0 0.0
  %1315 = vmatpush1.msra.mxu0 0.0
  %1316 = vmatprep.subr.mxu0 0.0
  %1317 = vmatpush1.msra.mxu0 0.0
  %1318 = vmatprep.subr.mxu0 0.0
  %1319 = vmatpush1.msra.mxu0 0.0
  %1320 = vmatprep.subr.mxu0 0.0
  %1321 = vmatpush1.msra.mxu0 0.0
  %1322 = vmatprep.subr.mxu0 0.0
  %1323 = vmatpush1.msra.mxu0 0.0
  %1324 = vmatprep.subr.mxu0 0.0
  %1325 = vmatpush1.msra.mxu0 0.0
  %1326 = vmatprep.subr.mxu0 0.0
  %1327 = vmatpush1.msra.mxu0 0.0
  %1328 = vmatprep.subr.mxu0 0.0
  %1329 = vmatpush1.msra.mxu0 0.0
  %1330 = vmatprep.subr.mxu0 0.0
  %1331 = vmatpush1.msra.mxu0 0.0
  %1332 = vmatprep.subr.mxu0 0.0
  %1333 = vmatpush1.msra.mxu0 0.0
  %1334 = vmatprep.subr.mxu0 0.0
  %1335 = vmatpush1.msra.mxu0 0.0
  %1336 = vmatprep.subr.mxu0 0.0
  %1337 = vmatpush1.msra.mxu0 0.0
  %1338 = vmatprep.subr.mxu0 0.0
  %1339 = vmatpush1.msra.mxu0 0.0
  %1340 = vmatprep.subr.mxu0 0.0
  %1341 = vmatpush1.msra.mxu0 0.0
  %1342 = vmatprep.subr.mxu0 0.0
  %1343 = vmatpush1.msra.mxu0 0.0
  %1344 = vmatprep.subr.mxu0 0.0
  %1345 = vmatpush1.msra.mxu0 0.0
  %1346 = vmatprep.subr.mxu0 0.0
  %1347 = vmatpush1.msra.mxu0 0.0
  %1348 = vmatprep.subr.mxu0 0.0
  %1349 = vmatpush1.msra.mxu0 0.0
  %1350 = vmatprep.subr.mxu0 0.0
  %1351 = vmatpush1.msra.mxu0 0.0
  %1352 = vmatprep.subr.mxu0 0.0
  %1353 = vmatpush1.msra.mxu0 0.0
  %1354 = vmatprep.mubr.f32.mxu0 0.0
  %1355 = vmatmul.mubr.f32.gmra.mrb[0].mxu0 %v1288
  %v1356 = vpop.f32.mrb[0].mxu0
  %v1357 = vadd.f32 0.0, %v1356
  %v1358 = vpop.f32.mrb[0].mxu0
  %1359 = vdwg.mxu0
  %1361 = vrot.lane.b32.xlu0 %v1284, 32
  %v1362 = vpop.permute.xlu0 %1361
  %v1363 = vsel %vm71, %v1362, 0
  %1365 = vmatprep.subr.mxu0 0.0
  %1366 = vmatpush1.msra.mxu0 %v42
  %1367 = vmatprep.subr.mxu0 0.0
  %1368 = vmatpush1.msra.mxu0 %v43
  %1369 = vmatprep.subr.mxu0 0.0
  %1370 = vmatpush1.msra.mxu0 %v44
  %1371 = vmatprep.subr.mxu0 0.0
  %1372 = vmatpush1.msra.mxu0 %v45
  %1373 = vmatprep.subr.mxu0 0.0
  %1374 = vmatpush1.msra.mxu0 0.0
  %1375 = vmatprep.subr.mxu0 0.0
  %1376 = vmatpush1.msra.mxu0 0.0
  %1377 = vmatprep.subr.mxu0 0.0
  %1378 = vmatpush1.msra.mxu0 0.0
  %1379 = vmatprep.subr.mxu0 0.0
  %1380 = vmatpush1.msra.mxu0 0.0
  %1381 = vmatprep.subr.mxu0 0.0
  %1382 = vmatpush1.msra.mxu0 0.0
  %1383 = vmatprep.subr.mxu0 0.0
  %1384 = vmatpush1.msra.mxu0 0.0
  %1385 = vmatprep.subr.mxu0 0.0
  %1386 = vmatpush1.msra.mxu0 0.0
  %1387 = vmatprep.subr.mxu0 0.0
  %1388 = vmatpush1.msra.mxu0 0.0
  %1389 = vmatprep.subr.mxu0 0.0
  %1390 = vmatpush1.msra.mxu0 0.0
  %1391 = vmatprep.subr.mxu0 0.0
  %1392 = vmatpush1.msra.mxu0 0.0
  %1393 = vmatprep.subr.mxu0 0.0
  %1394 = vmatpush1.msra.mxu0 0.0
  %1395 = vmatprep.subr.mxu0 0.0
  %1396 = vmatpush1.msra.mxu0 0.0
  %1397 = vmatprep.subr.mxu0 0.0
  %1398 = vmatpush1.msra.mxu0 0.0
  %1399 = vmatprep.subr.mxu0 0.0
  %1400 = vmatpush1.msra.mxu0 0.0
  %1401 = vmatprep.subr.mxu0 0.0
  %1402 = vmatpush1.msra.mxu0 0.0
  %1403 = vmatprep.subr.mxu0 0.0
  %1404 = vmatpush1.msra.mxu0 0.0
  %1405 = vmatprep.subr.mxu0 0.0
  %1406 = vmatpush1.msra.mxu0 0.0
  %1407 = vmatprep.subr.mxu0 0.0
  %1408 = vmatpush1.msra.mxu0 0.0
  %1409 = vmatprep.subr.mxu0 0.0
  %1410 = vmatpush1.msra.mxu0 0.0
  %1411 = vmatprep.subr.mxu0 0.0
  %1412 = vmatpush1.msra.mxu0 0.0
  %1413 = vmatprep.subr.mxu0 0.0
  %1414 = vmatpush1.msra.mxu0 0.0
  %1415 = vmatprep.subr.mxu0 0.0
  %1416 = vmatpush1.msra.mxu0 0.0
  %1417 = vmatprep.subr.mxu0 0.0
  %1418 = vmatpush1.msra.mxu0 0.0
  %1419 = vmatprep.subr.mxu0 0.0
  %1420 = vmatpush1.msra.mxu0 0.0
  %1421 = vmatprep.subr.mxu0 0.0
  %1422 = vmatpush1.msra.mxu0 0.0
  %1423 = vmatprep.subr.mxu0 0.0
  %1424 = vmatpush1.msra.mxu0 0.0
  %1425 = vmatprep.subr.mxu0 0.0
  %1426 = vmatpush1.msra.mxu0 0.0
  %1427 = vmatprep.subr.mxu0 0.0
  %1428 = vmatpush1.msra.mxu0 0.0
  %1429 = vmatprep.mubr.f32.mxu0 0.0
  %1430 = vmatmul.mubr.f32.gmra.mrb[0].mxu0 %v1363
  %v1431 = vpop.f32.mrb[0].mxu0
  %v1432 = vadd.f32 %v1357, %v1431
  %v1433 = vpop.f32.mrb[0].mxu0
  %1434 = vdwg.mxu0
  %v1435 = vadd.f32 %v1432, %v398
  %v1436 = vxor.u32 %v1435, 2147483648
  %v1437 = vmul.f32 %v1436, 1.442695
  %v1438 = vpow.pop %v1437
  %v1439 = vadd.f32 %v1438, 1.0
  %v1440 = vrcp.pop %v1439
  %v1441 = vmul.f32 1.0, %v1440
  %v1442 = vtanh.pop %v1435
  %v1443 = vmul.f32 %v1441, %v1108
  %1445 = vrot.lane.b32.xlu0 %v1442, 64
  %v1446 = vpop.permute.xlu0 %1445
  %v1448 = vmul.f32 %v1441, %v1446
  %1450 = vrot.lane.b32.xlu0 %v1448, 32
  %v1451 = vpop.permute.xlu0 %1450
  %v1453 = vadd.f32 %v1443, %v1451
  %v1454 = vtanh.pop %v1453
  %1456 = vrot.lane.b32.xlu0 %v1454, 64
  %v1457 = vpop.permute.xlu0 %1456
  %v1459 = vmul.f32 %v1441, %v1457
  %s1460 = scalar_lea.vmem %s0, 32
  %v1461 = vld [vmem:[%s1460] sm:$0xff]
  %1462 = vmatprep.subr.mxu0 0.0
  %1463 = vmatpush1.msra.mxu0 %v46
  %1464 = vmatprep.subr.mxu0 0.0
  %1465 = vmatpush1.msra.mxu0 %v47
  %1466 = vmatprep.subr.mxu0 0.0
  %1467 = vmatpush1.msra.mxu0 %v48
  %1468 = vmatprep.subr.mxu0 0.0
  %1469 = vmatpush1.msra.mxu0 %v49
  %1470 = vmatprep.subr.mxu0 0.0
  %1471 = vmatpush1.msra.mxu0 0.0
  %1472 = vmatprep.subr.mxu0 0.0
  %1473 = vmatpush1.msra.mxu0 0.0
  %1474 = vmatprep.subr.mxu0 0.0
  %1475 = vmatpush1.msra.mxu0 0.0
  %1476 = vmatprep.subr.mxu0 0.0
  %1477 = vmatpush1.msra.mxu0 0.0
  %1478 = vmatprep.subr.mxu0 0.0
  %1479 = vmatpush1.msra.mxu0 0.0
  %1480 = vmatprep.subr.mxu0 0.0
  %1481 = vmatpush1.msra.mxu0 0.0
  %1482 = vmatprep.subr.mxu0 0.0
  %1483 = vmatpush1.msra.mxu0 0.0
  %1484 = vmatprep.subr.mxu0 0.0
  %1485 = vmatpush1.msra.mxu0 0.0
  %1486 = vmatprep.subr.mxu0 0.0
  %1487 = vmatpush1.msra.mxu0 0.0
  %1488 = vmatprep.subr.mxu0 0.0
  %1489 = vmatpush1.msra.mxu0 0.0
  %1490 = vmatprep.subr.mxu0 0.0
  %1491 = vmatpush1.msra.mxu0 0.0
  %1492 = vmatprep.subr.mxu0 0.0
  %1493 = vmatpush1.msra.mxu0 0.0
  %1494 = vmatprep.subr.mxu0 0.0
  %1495 = vmatpush1.msra.mxu0 0.0
  %1496 = vmatprep.subr.mxu0 0.0
  %1497 = vmatpush1.msra.mxu0 0.0
  %1498 = vmatprep.subr.mxu0 0.0
  %1499 = vmatpush1.msra.mxu0 0.0
  %1500 = vmatprep.subr.mxu0 0.0
  %1501 = vmatpush1.msra.mxu0 0.0
  %1502 = vmatprep.subr.mxu0 0.0
  %1503 = vmatpush1.msra.mxu0 0.0
  %1504 = vmatprep.subr.mxu0 0.0
  %1505 = vmatpush1.msra.mxu0 0.0
  %1506 = vmatprep.subr.mxu0 0.0
  %1507 = vmatpush1.msra.mxu0 0.0
  %1508 = vmatprep.subr.mxu0 0.0
  %1509 = vmatpush1.msra.mxu0 0.0
  %1510 = vmatprep.subr.mxu0 0.0
  %1511 = vmatpush1.msra.mxu0 0.0
  %1512 = vmatprep.subr.mxu0 0.0
  %1513 = vmatpush1.msra.mxu0 0.0
  %1514 = vmatprep.subr.mxu0 0.0
  %1515 = vmatpush1.msra.mxu0 0.0
  %1516 = vmatprep.subr.mxu0 0.0
  %1517 = vmatpush1.msra.mxu0 0.0
  %1518 = vmatprep.subr.mxu0 0.0
  %1519 = vmatpush1.msra.mxu0 0.0
  %1520 = vmatprep.subr.mxu0 0.0
  %1521 = vmatpush1.msra.mxu0 0.0
  %1522 = vmatprep.subr.mxu0 0.0
  %1523 = vmatpush1.msra.mxu0 0.0
  %1524 = vmatprep.subr.mxu0 0.0
  %1525 = vmatpush1.msra.mxu0 0.0
  %1526 = vmatprep.mubr.f32.mxu0 0.0
  %1527 = vmatmul.mubr.f32.gmra.mrb[0].mxu0 %v1363
  %v1528 = vpop.f32.mrb[0].mxu0
  %v1529 = vadd.f32 0.0, %v1528
  %v1530 = vpop.f32.mrb[0].mxu0
  %1531 = vdwg.mxu0
  %v1533 = vsel %vm71, %v1461, 0
  %1535 = vmatprep.subr.mxu0 0.0
  %1536 = vmatpush1.msra.mxu0 %v38
  %1537 = vmatprep.subr.mxu0 0.0
  %1538 = vmatpush1.msra.mxu0 %v39
  %1539 = vmatprep.subr.mxu0 0.0
  %1540 = vmatpush1.msra.mxu0 %v40
  %1541 = vmatprep.subr.mxu0 0.0
  %1542 = vmatpush1.msra.mxu0 %v41
  %1543 = vmatprep.subr.mxu0 0.0
  %1544 = vmatpush1.msra.mxu0 0.0
  %1545 = vmatprep.subr.mxu0 0.0
  %1546 = vmatpush1.msra.mxu0 0.0
  %1547 = vmatprep.subr.mxu0 0.0
  %1548 = vmatpush1.msra.mxu0 0.0
  %1549 = vmatprep.subr.mxu0 0.0
  %1550 = vmatpush1.msra.mxu0 0.0
  %1551 = vmatprep.subr.mxu0 0.0
  %1552 = vmatpush1.msra.mxu0 0.0
  %1553 = vmatprep.subr.mxu0 0.0
  %1554 = vmatpush1.msra.mxu0 0.0
  %1555 = vmatprep.subr.mxu0 0.0
  %1556 = vmatpush1.msra.mxu0 0.0
  %1557 = vmatprep.subr.mxu0 0.0
  %1558 = vmatpush1.msra.mxu0 0.0
  %1559 = vmatprep.subr.mxu0 0.0
  %1560 = vmatpush1.msra.mxu0 0.0
  %1561 = vmatprep.subr.mxu0 0.0
  %1562 = vmatpush1.msra.mxu0 0.0
  %1563 = vmatprep.subr.mxu0 0.0
  %1564 = vmatpush1.msra.mxu0 0.0
  %1565 = vmatprep.subr.mxu0 0.0
  %1566 = vmatpush1.msra.mxu0 0.0
  %1567 = vmatprep.subr.mxu0 0.0
  %1568 = vmatpush1.msra.mxu0 0.0
  %1569 = vmatprep.subr.mxu0 0.0
  %1570 = vmatpush1.msra.mxu0 0.0
  %1571 = vmatprep.subr.mxu0 0.0
  %1572 = vmatpush1.msra.mxu0 0.0
  %1573 = vmatprep.subr.mxu0 0.0
  %1574 = vmatpush1.msra.mxu0 0.0
  %1575 = vmatprep.subr.mxu0 0.0
  %1576 = vmatpush1.msra.mxu0 0.0
  %1577 = vmatprep.subr.mxu0 0.0
  %1578 = vmatpush1.msra.mxu0 0.0
  %1579 = vmatprep.subr.mxu0 0.0
  %1580 = vmatpush1.msra.mxu0 0.0
  %1581 = vmatprep.subr.mxu0 0.0
  %1582 = vmatpush1.msra.mxu0 0.0
  %1583 = vmatprep.subr.mxu0 0.0
  %1584 = vmatpush1.msra.mxu0 0.0
  %1585 = vmatprep.subr.mxu0 0.0
  %1586 = vmatpush1.msra.mxu0 0.0
  %1587 = vmatprep.subr.mxu0 0.0
  %1588 = vmatpush1.msra.mxu0 0.0
  %1589 = vmatprep.subr.mxu0 0.0
  %1590 = vmatpush1.msra.mxu0 0.0
  %1591 = vmatprep.subr.mxu0 0.0
  %1592 = vmatpush1.msra.mxu0 0.0
  %1593 = vmatprep.subr.mxu0 0.0
  %1594 = vmatpush1.msra.mxu0 0.0
  %1595 = vmatprep.subr.mxu0 0.0
  %1596 = vmatpush1.msra.mxu0 0.0
  %1597 = vmatprep.subr.mxu0 0.0
  %1598 = vmatpush1.msra.mxu0 0.0
  %1599 = vmatprep.mubr.f32.mxu0 0.0
  %1600 = vmatmul.mubr.f32.gmra.mrb[0].mxu0 %v1533
  %v1601 = vpop.f32.mrb[0].mxu0
  %v1602 = vadd.f32 %v1529, %v1601
  %v1603 = vpop.f32.mrb[0].mxu0
  %1604 = vdwg.mxu0
  %v1605 = vadd.f32 %v1602, %v222
  %v1606 = vxor.u32 %v1605, 2147483648
  %v1607 = vmul.f32 %v1606, 1.442695
  %v1608 = vpow.pop %v1607
  %v1609 = vadd.f32 %v1608, 1.0
  %v1610 = vrcp.pop %v1609
  %v1611 = vmul.f32 1.0, %v1610
  %v1612 = vtanh.pop %v1605
  %v1613 = vmul.f32 %v1611, %v1278
  %1615 = vrot.lane.b32.xlu0 %v1612, 64
  %v1616 = vpop.permute.xlu0 %1615
  %v1618 = vmul.f32 %v1611, %v1616
  %1620 = vrot.lane.b32.xlu0 %v1618, 32
  %v1621 = vpop.permute.xlu0 %1620
  %v1623 = vadd.f32 %v1613, %v1621
  %v1624 = vtanh.pop %v1623
  %1626 = vrot.lane.b32.xlu0 %v1624, 64
  %v1627 = vpop.permute.xlu0 %1626
  %v1629 = vmul.f32 %v1611, %v1627
  %1631 = vrot.lane.b32.xlu0 %v1459, 32
  %v1632 = vpop.permute.xlu0 %1631
  %v1633 = vsel %vm71, %v1632, 0
  %1635 = vmatprep.subr.mxu0 0.0
  %1636 = vmatpush1.msra.mxu0 %v50
  %1637 = vmatprep.subr.mxu0 0.0
  %1638 = vmatpush1.msra.mxu0 %v51
  %1639 = vmatprep.subr.mxu0 0.0
  %1640 = vmatpush1.msra.mxu0 %v52
  %1641 = vmatprep.subr.mxu0 0.0
  %1642 = vmatpush1.msra.mxu0 %v53
  %1643 = vmatprep.subr.mxu0 0.0
  %1644 = vmatpush1.msra.mxu0 0.0
  %1645 = vmatprep.subr.mxu0 0.0
  %1646 = vmatpush1.msra.mxu0 0.0
  %1647 = vmatprep.subr.mxu0 0.0
  %1648 = vmatpush1.msra.mxu0 0.0
  %1649 = vmatprep.subr.mxu0 0.0
  %1650 = vmatpush1.msra.mxu0 0.0
  %1651 = vmatprep.subr.mxu0 0.0
  %1652 = vmatpush1.msra.mxu0 0.0
  %1653 = vmatprep.subr.mxu0 0.0
  %1654 = vmatpush1.msra.mxu0 0.0
  %1655 = vmatprep.subr.mxu0 0.0
  %1656 = vmatpush1.msra.mxu0 0.0
  %1657 = vmatprep.subr.mxu0 0.0
  %1658 = vmatpush1.msra.mxu0 0.0
  %1659 = vmatprep.subr.mxu0 0.0
  %1660 = vmatpush1.msra.mxu0 0.0
  %1661 = vmatprep.subr.mxu0 0.0
  %1662 = vmatpush1.msra.mxu0 0.0
  %1663 = vmatprep.subr.mxu0 0.0
  %1664 = vmatpush1.msra.mxu0 0.0
  %1665 = vmatprep.subr.mxu0 0.0
  %1666 = vmatpush1.msra.mxu0 0.0
  %1667 = vmatprep.subr.mxu0 0.0
  %1668 = vmatpush1.msra.mxu0 0.0
  %1669 = vmatprep.subr.mxu0 0.0
  %1670 = vmatpush1.msra.mxu0 0.0
  %1671 = vmatprep.subr.mxu0 0.0
  %1672 = vmatpush1.msra.mxu0 0.0
  %1673 = vmatprep.subr.mxu0 0.0
  %1674 = vmatpush1.msra.mxu0 0.0
  %1675 = vmatprep.subr.mxu0 0.0
  %1676 = vmatpush1.msra.mxu0 0.0
  %1677 = vmatprep.subr.mxu0 0.0
  %1678 = vmatpush1.msra.mxu0 0.0
  %1679 = vmatprep.subr.mxu0 0.0
  %1680 = vmatpush1.msra.mxu0 0.0
  %1681 = vmatprep.subr.mxu0 0.0
  %1682 = vmatpush1.msra.mxu0 0.0
  %1683 = vmatprep.subr.mxu0 0.0
  %1684 = vmatpush1.msra.mxu0 0.0
  %1685 = vmatprep.subr.mxu0 0.0
  %1686 = vmatpush1.msra.mxu0 0.0
  %1687 = vmatprep.subr.mxu0 0.0
  %1688 = vmatpush1.msra.mxu0 0.0
  %1689 = vmatprep.subr.mxu0 0.0
  %1690 = vmatpush1.msra.mxu0 0.0
  %1691 = vmatprep.subr.mxu0 0.0
  %1692 = vmatpush1.msra.mxu0 0.0
  %1693 = vmatprep.subr.mxu0 0.0
  %1694 = vmatpush1.msra.mxu0 0.0
  %1695 = vmatprep.subr.mxu0 0.0
  %1696 = vmatpush1.msra.mxu0 0.0
  %1697 = vmatprep.subr.mxu0 0.0
  %1698 = vmatpush1.msra.mxu0 0.0
  %1699 = vmatprep.mubr.f32.mxu0 0.0
  %1700 = vmatmul.mubr.f32.gmra.mrb[0].mxu0 %v1633
  %v1701 = vpop.f32.mrb[0].mxu0
  %v1702 = vadd.f32 0.0, %v1701
  %v1703 = vpop.f32.mrb[0].mxu0
  %1704 = vdwg.mxu0
  %1706 = vrot.lane.b32.xlu0 %v1629, 32
  %v1707 = vpop.permute.xlu0 %1706
  %v1708 = vsel %vm71, %v1707, 0
  %1710 = vmatprep.subr.mxu0 0.0
  %1711 = vmatpush1.msra.mxu0 %v42
  %1712 = vmatprep.subr.mxu0 0.0
  %1713 = vmatpush1.msra.mxu0 %v43
  %1714 = vmatprep.subr.mxu0 0.0
  %1715 = vmatpush1.msra.mxu0 %v44
  %1716 = vmatprep.subr.mxu0 0.0
  %1717 = vmatpush1.msra.mxu0 %v45
  %1718 = vmatprep.subr.mxu0 0.0
  %1719 = vmatpush1.msra.mxu0 0.0
  %1720 = vmatprep.subr.mxu0 0.0
  %1721 = vmatpush1.msra.mxu0 0.0
  %1722 = vmatprep.subr.mxu0 0.0
  %1723 = vmatpush1.msra.mxu0 0.0
  %1724 = vmatprep.subr.mxu0 0.0
  %1725 = vmatpush1.msra.mxu0 0.0
  %1726 = vmatprep.subr.mxu0 0.0
  %1727 = vmatpush1.msra.mxu0 0.0
  %1728 = vmatprep.subr.mxu0 0.0
  %1729 = vmatpush1.msra.mxu0 0.0
  %1730 = vmatprep.subr.mxu0 0.0
  %1731 = vmatpush1.msra.mxu0 0.0
  %1732 = vmatprep.subr.mxu0 0.0
  %1733 = vmatpush1.msra.mxu0 0.0
  %1734 = vmatprep.subr.mxu0 0.0
  %1735 = vmatpush1.msra.mxu0 0.0
  %1736 = vmatprep.subr.mxu0 0.0
  %1737 = vmatpush1.msra.mxu0 0.0
  %1738 = vmatprep.subr.mxu0 0.0
  %1739 = vmatpush1.msra.mxu0 0.0
  %1740 = vmatprep.subr.mxu0 0.0
  %1741 = vmatpush1.msra.mxu0 0.0
  %1742 = vmatprep.subr.mxu0 0.0
  %1743 = vmatpush1.msra.mxu0 0.0
  %1744 = vmatprep.subr.mxu0 0.0
  %1745 = vmatpush1.msra.mxu0 0.0
  %1746 = vmatprep.subr.mxu0 0.0
  %1747 = vmatpush1.msra.mxu0 0.0
  %1748 = vmatprep.subr.mxu0 0.0
  %1749 = vmatpush1.msra.mxu0 0.0
  %1750 = vmatprep.subr.mxu0 0.0
  %1751 = vmatpush1.msra.mxu0 0.0
  %1752 = vmatprep.subr.mxu0 0.0
  %1753 = vmatpush1.msra.mxu0 0.0
  %1754 = vmatprep.subr.mxu0 0.0
  %1755 = vmatpush1.msra.mxu0 0.0
  %1756 = vmatprep.subr.mxu0 0.0
  %1757 = vmatpush1.msra.mxu0 0.0
  %1758 = vmatprep.subr.mxu0 0.0
  %1759 = vmatpush1.msra.mxu0 0.0
  %1760 = vmatprep.subr.mxu0 0.0
  %1761 = vmatpush1.msra.mxu0 0.0
  %1762 = vmatprep.subr.mxu0 0.0
  %1763 = vmatpush1.msra.mxu0 0.0
  %1764 = vmatprep.subr.mxu0 0.0
  %1765 = vmatpush1.msra.mxu0 0.0
  %1766 = vmatprep.subr.mxu0 0.0
  %1767 = vmatpush1.msra.mxu0 0.0
  %1768 = vmatprep.subr.mxu0 0.0
  %1769 = vmatpush1.msra.mxu0 0.0
  %1770 = vmatprep.subr.mxu0 0.0
  %1771 = vmatpush1.msra.mxu0 0.0
  %1772 = vmatprep.subr.mxu0 0.0
  %1773 = vmatpush1.msra.mxu0 0.0
  %1774 = vmatprep.mubr.f32.mxu0 0.0
  %1775 = vmatmul.mubr.f32.gmra.mrb[0].mxu0 %v1708
  %v1776 = vpop.f32.mrb[0].mxu0
  %v1777 = vadd.f32 %v1702, %v1776
  %v1778 = vpop.f32.mrb[0].mxu0
  %1779 = vdwg.mxu0
  %v1780 = vadd.f32 %v1777, %v398
  %v1781 = vxor.u32 %v1780, 2147483648
  %v1782 = vmul.f32 %v1781, 1.442695
  %v1783 = vpow.pop %v1782
  %v1784 = vadd.f32 %v1783, 1.0
  %v1785 = vrcp.pop %v1784
  %v1786 = vmul.f32 1.0, %v1785
  %v1787 = vtanh.pop %v1780
  %v1788 = vmul.f32 %v1786, %v1453
  %1790 = vrot.lane.b32.xlu0 %v1787, 64
  %v1791 = vpop.permute.xlu0 %1790
  %v1793 = vmul.f32 %v1786, %v1791
  %1795 = vrot.lane.b32.xlu0 %v1793, 32
  %v1796 = vpop.permute.xlu0 %1795
  %v1798 = vadd.f32 %v1788, %v1796
  %v1799 = vtanh.pop %v1798
  %1801 = vrot.lane.b32.xlu0 %v1799, 64
  %v1802 = vpop.permute.xlu0 %1801
  %v1804 = vmul.f32 %v1786, %v1802
  %s1805 = scalar_lea.vmem %s0, 40
  %v1806 = vld [vmem:[%s1805] sm:$0xff]
  %1807 = vmatprep.subr.mxu0 0.0
  %1808 = vmatpush1.msra.mxu0 %v46
  %1809 = vmatprep.subr.mxu0 0.0
  %1810 = vmatpush1.msra.mxu0 %v47
  %1811 = vmatprep.subr.mxu0 0.0
  %1812 = vmatpush1.msra.mxu0 %v48
  %1813 = vmatprep.subr.mxu0 0.0
  %1814 = vmatpush1.msra.mxu0 %v49
  %1815 = vmatprep.subr.mxu0 0.0
  %1816 = vmatpush1.msra.mxu0 0.0
  %1817 = vmatprep.subr.mxu0 0.0
  %1818 = vmatpush1.msra.mxu0 0.0
  %1819 = vmatprep.subr.mxu0 0.0
  %1820 = vmatpush1.msra.mxu0 0.0
  %1821 = vmatprep.subr.mxu0 0.0
  %1822 = vmatpush1.msra.mxu0 0.0
  %1823 = vmatprep.subr.mxu0 0.0
  %1824 = vmatpush1.msra.mxu0 0.0
  %1825 = vmatprep.subr.mxu0 0.0
  %1826 = vmatpush1.msra.mxu0 0.0
  %1827 = vmatprep.subr.mxu0 0.0
  %1828 = vmatpush1.msra.mxu0 0.0
  %1829 = vmatprep.subr.mxu0 0.0
  %1830 = vmatpush1.msra.mxu0 0.0
  %1831 = vmatprep.subr.mxu0 0.0
  %1832 = vmatpush1.msra.mxu0 0.0
  %1833 = vmatprep.subr.mxu0 0.0
  %1834 = vmatpush1.msra.mxu0 0.0
  %1835 = vmatprep.subr.mxu0 0.0
  %1836 = vmatpush1.msra.mxu0 0.0
  %1837 = vmatprep.subr.mxu0 0.0
  %1838 = vmatpush1.msra.mxu0 0.0
  %1839 = vmatprep.subr.mxu0 0.0
  %1840 = vmatpush1.msra.mxu0 0.0
  %1841 = vmatprep.subr.mxu0 0.0
  %1842 = vmatpush1.msra.mxu0 0.0
  %1843 = vmatprep.subr.mxu0 0.0
  %1844 = vmatpush1.msra.mxu0 0.0
  %1845 = vmatprep.subr.mxu0 0.0
  %1846 = vmatpush1.msra.mxu0 0.0
  %1847 = vmatprep.subr.mxu0 0.0
  %1848 = vmatpush1.msra.mxu0 0.0
  %1849 = vmatprep.subr.mxu0 0.0
  %1850 = vmatpush1.msra.mxu0 0.0
  %1851 = vmatprep.subr.mxu0 0.0
  %1852 = vmatpush1.msra.mxu0 0.0
  %1853 = vmatprep.subr.mxu0 0.0
  %1854 = vmatpush1.msra.mxu0 0.0
  %1855 = vmatprep.subr.mxu0 0.0
  %1856 = vmatpush1.msra.mxu0 0.0
  %1857 = vmatprep.subr.mxu0 0.0
  %1858 = vmatpush1.msra.mxu0 0.0
  %1859 = vmatprep.subr.mxu0 0.0
  %1860 = vmatpush1.msra.mxu0 0.0
  %1861 = vmatprep.subr.mxu0 0.0
  %1862 = vmatpush1.msra.mxu0 0.0
  %1863 = vmatprep.subr.mxu0 0.0
  %1864 = vmatpush1.msra.mxu0 0.0
  %1865 = vmatprep.subr.mxu0 0.0
  %1866 = vmatpush1.msra.mxu0 0.0
  %1867 = vmatprep.subr.mxu0 0.0
  %1868 = vmatpush1.msra.mxu0 0.0
  %1869 = vmatprep.subr.mxu0 0.0
  %1870 = vmatpush1.msra.mxu0 0.0
  %1871 = vmatprep.mubr.f32.mxu0 0.0
  %1872 = vmatmul.mubr.f32.gmra.mrb[0].mxu0 %v1708
  %v1873 = vpop.f32.mrb[0].mxu0
  %v1874 = vadd.f32 0.0, %v1873
  %v1875 = vpop.f32.mrb[0].mxu0
  %1876 = vdwg.mxu0
  %v1878 = vsel %vm71, %v1806, 0
  %1880 = vmatprep.subr.mxu0 0.0
  %1881 = vmatpush1.msra.mxu0 %v38
  %1882 = vmatprep.subr.mxu0 0.0
  %1883 = vmatpush1.msra.mxu0 %v39
  %1884 = vmatprep.subr.mxu0 0.0
  %1885 = vmatpush1.msra.mxu0 %v40
  %1886 = vmatprep.subr.mxu0 0.0
  %1887 = vmatpush1.msra.mxu0 %v41
  %1888 = vmatprep.subr.mxu0 0.0
  %1889 = vmatpush1.msra.mxu0 0.0
  %1890 = vmatprep.subr.mxu0 0.0
  %1891 = vmatpush1.msra.mxu0 0.0
  %1892 = vmatprep.subr.mxu0 0.0
  %1893 = vmatpush1.msra.mxu0 0.0
  %1894 = vmatprep.subr.mxu0 0.0
  %1895 = vmatpush1.msra.mxu0 0.0
  %1896 = vmatprep.subr.mxu0 0.0
  %1897 = vmatpush1.msra.mxu0 0.0
  %1898 = vmatprep.subr.mxu0 0.0
  %1899 = vmatpush1.msra.mxu0 0.0
  %1900 = vmatprep.subr.mxu0 0.0
  %1901 = vmatpush1.msra.mxu0 0.0
  %1902 = vmatprep.subr.mxu0 0.0
  %1903 = vmatpush1.msra.mxu0 0.0
  %1904 = vmatprep.subr.mxu0 0.0
  %1905 = vmatpush1.msra.mxu0 0.0
  %1906 = vmatprep.subr.mxu0 0.0
  %1907 = vmatpush1.msra.mxu0 0.0
  %1908 = vmatprep.subr.mxu0 0.0
  %1909 = vmatpush1.msra.mxu0 0.0
  %1910 = vmatprep.subr.mxu0 0.0
  %1911 = vmatpush1.msra.mxu0 0.0
  %1912 = vmatprep.subr.mxu0 0.0
  %1913 = vmatpush1.msra.mxu0 0.0
  %1914 = vmatprep.subr.mxu0 0.0
  %1915 = vmatpush1.msra.mxu0 0.0
  %1916 = vmatprep.subr.mxu0 0.0
  %1917 = vmatpush1.msra.mxu0 0.0
  %1918 = vmatprep.subr.mxu0 0.0
  %1919 = vmatpush1.msra.mxu0 0.0
  %1920 = vmatprep.subr.mxu0 0.0
  %1921 = vmatpush1.msra.mxu0 0.0
  %1922 = vmatprep.subr.mxu0 0.0
  %1923 = vmatpush1.msra.mxu0 0.0
  %1924 = vmatprep.subr.mxu0 0.0
  %1925 = vmatpush1.msra.mxu0 0.0
  %1926 = vmatprep.subr.mxu0 0.0
  %1927 = vmatpush1.msra.mxu0 0.0
  %1928 = vmatprep.subr.mxu0 0.0
  %1929 = vmatpush1.msra.mxu0 0.0
  %1930 = vmatprep.subr.mxu0 0.0
  %1931 = vmatpush1.msra.mxu0 0.0
  %1932 = vmatprep.subr.mxu0 0.0
  %1933 = vmatpush1.msra.mxu0 0.0
  %1934 = vmatprep.subr.mxu0 0.0
  %1935 = vmatpush1.msra.mxu0 0.0
  %1936 = vmatprep.subr.mxu0 0.0
  %1937 = vmatpush1.msra.mxu0 0.0
  %1938 = vmatprep.subr.mxu0 0.0
  %1939 = vmatpush1.msra.mxu0 0.0
  %1940 = vmatprep.subr.mxu0 0.0
  %1941 = vmatpush1.msra.mxu0 0.0
  %1942 = vmatprep.subr.mxu0 0.0
  %1943 = vmatpush1.msra.mxu0 0.0
  %1944 = vmatprep.mubr.f32.mxu0 0.0
  %1945 = vmatmul.mubr.f32.gmra.mrb[0].mxu0 %v1878
  %v1946 = vpop.f32.mrb[0].mxu0
  %v1947 = vadd.f32 %v1874, %v1946
  %v1948 = vpop.f32.mrb[0].mxu0
  %1949 = vdwg.mxu0
  %v1950 = vadd.f32 %v1947, %v222
  %v1951 = vxor.u32 %v1950, 2147483648
  %v1952 = vmul.f32 %v1951, 1.442695
  %v1953 = vpow.pop %v1952
  %v1954 = vadd.f32 %v1953, 1.0
  %v1955 = vrcp.pop %v1954
  %v1956 = vmul.f32 1.0, %v1955
  %v1957 = vtanh.pop %v1950
  %v1958 = vmul.f32 %v1956, %v1623
  %1960 = vrot.lane.b32.xlu0 %v1957, 64
  %v1961 = vpop.permute.xlu0 %1960
  %v1963 = vmul.f32 %v1956, %v1961
  %1965 = vrot.lane.b32.xlu0 %v1963, 32
  %v1966 = vpop.permute.xlu0 %1965
  %v1968 = vadd.f32 %v1958, %v1966
  %v1969 = vtanh.pop %v1968
  %1971 = vrot.lane.b32.xlu0 %v1969, 64
  %v1972 = vpop.permute.xlu0 %1971
  %v1974 = vmul.f32 %v1956, %v1972
  %1976 = vrot.lane.b32.xlu0 %v1804, 32
  %v1977 = vpop.permute.xlu0 %1976
  %v1978 = vsel %vm71, %v1977, 0
  %1980 = vmatprep.subr.mxu0 0.0
  %1981 = vmatpush1.msra.mxu0 %v50
  %1982 = vmatprep.subr.mxu0 0.0
  %1983 = vmatpush1.msra.mxu0 %v51
  %1984 = vmatprep.subr.mxu0 0.0
  %1985 = vmatpush1.msra.mxu0 %v52
  %1986 = vmatprep.subr.mxu0 0.0
  %1987 = vmatpush1.msra.mxu0 %v53
  %1988 = vmatprep.subr.mxu0 0.0
  %1989 = vmatpush1.msra.mxu0 0.0
  %1990 = vmatprep.subr.mxu0 0.0
  %1991 = vmatpush1.msra.mxu0 0.0
  %1992 = vmatprep.subr.mxu0 0.0
  %1993 = vmatpush1.msra.mxu0 0.0
  %1994 = vmatprep.subr.mxu0 0.0
  %1995 = vmatpush1.msra.mxu0 0.0
  %1996 = vmatprep.subr.mxu0 0.0
  %1997 = vmatpush1.msra.mxu0 0.0
  %1998 = vmatprep.subr.mxu0 0.0
  %1999 = vmatpush1.msra.mxu0 0.0
  %2000 = vmatprep.subr.mxu0 0.0
  %2001 = vmatpush1.msra.mxu0 0.0
  %2002 = vmatprep.subr.mxu0 0.0
  %2003 = vmatpush1.msra.mxu0 0.0
  %2004 = vmatprep.subr.mxu0 0.0
  %2005 = vmatpush1.msra.mxu0 0.0
  %2006 = vmatprep.subr.mxu0 0.0
  %2007 = vmatpush1.msra.mxu0 0.0
  %2008 = vmatprep.subr.mxu0 0.0
  %2009 = vmatpush1.msra.mxu0 0.0
  %2010 = vmatprep.subr.mxu0 0.0
  %2011 = vmatpush1.msra.mxu0 0.0
  %2012 = vmatprep.subr.mxu0 0.0
  %2013 = vmatpush1.msra.mxu0 0.0
  %2014 = vmatprep.subr.mxu0 0.0
  %2015 = vmatpush1.msra.mxu0 0.0
  %2016 = vmatprep.subr.mxu0 0.0
  %2017 = vmatpush1.msra.mxu0 0.0
  %2018 = vmatprep.subr.mxu0 0.0
  %2019 = vmatpush1.msra.mxu0 0.0
  %2020 = vmatprep.subr.mxu0 0.0
  %2021 = vmatpush1.msra.mxu0 0.0
  %2022 = vmatprep.subr.mxu0 0.0
  %2023 = vmatpush1.msra.mxu0 0.0
  %2024 = vmatprep.subr.mxu0 0.0
  %2025 = vmatpush1.msra.mxu0 0.0
  %2026 = vmatprep.subr.mxu0 0.0
  %2027 = vmatpush1.msra.mxu0 0.0
  %2028 = vmatprep.subr.mxu0 0.0
  %2029 = vmatpush1.msra.mxu0 0.0
  %2030 = vmatprep.subr.mxu0 0.0
  %2031 = vmatpush1.msra.mxu0 0.0
  %2032 = vmatprep.subr.mxu0 0.0
  %2033 = vmatpush1.msra.mxu0 0.0
  %2034 = vmatprep.subr.mxu0 0.0
  %2035 = vmatpush1.msra.mxu0 0.0
  %2036 = vmatprep.subr.mxu0 0.0
  %2037 = vmatpush1.msra.mxu0 0.0
  %2038 = vmatprep.subr.mxu0 0.0
  %2039 = vmatpush1.msra.mxu0 0.0
  %2040 = vmatprep.subr.mxu0 0.0
  %2041 = vmatpush1.msra.mxu0 0.0
  %2042 = vmatprep.subr.mxu0 0.0
  %2043 = vmatpush1.msra.mxu0 0.0
  %2044 = vmatprep.mubr.f32.mxu0 0.0
  %2045 = vmatmul.mubr.f32.gmra.mrb[0].mxu0 %v1978
  %v2046 = vpop.f32.mrb[0].mxu0
  %v2047 = vadd.f32 0.0, %v2046
  %v2048 = vpop.f32.mrb[0].mxu0
  %2049 = vdwg.mxu0
  %2051 = vrot.lane.b32.xlu0 %v1974, 32
  %v2052 = vpop.permute.xlu0 %2051
  %v2053 = vsel %vm71, %v2052, 0
  %2055 = vmatprep.subr.mxu0 0.0
  %2056 = vmatpush1.msra.mxu0 %v42
  %2057 = vmatprep.subr.mxu0 0.0
  %2058 = vmatpush1.msra.mxu0 %v43
  %2059 = vmatprep.subr.mxu0 0.0
  %2060 = vmatpush1.msra.mxu0 %v44
  %2061 = vmatprep.subr.mxu0 0.0
  %2062 = vmatpush1.msra.mxu0 %v45
  %2063 = vmatprep.subr.mxu0 0.0
  %2064 = vmatpush1.msra.mxu0 0.0
  %2065 = vmatprep.subr.mxu0 0.0
  %2066 = vmatpush1.msra.mxu0 0.0
  %2067 = vmatprep.subr.mxu0 0.0
  %2068 = vmatpush1.msra.mxu0 0.0
  %2069 = vmatprep.subr.mxu0 0.0
  %2070 = vmatpush1.msra.mxu0 0.0
  %2071 = vmatprep.subr.mxu0 0.0
  %2072 = vmatpush1.msra.mxu0 0.0
  %2073 = vmatprep.subr.mxu0 0.0
  %2074 = vmatpush1.msra.mxu0 0.0
  %2075 = vmatprep.subr.mxu0 0.0
  %2076 = vmatpush1.msra.mxu0 0.0
  %2077 = vmatprep.subr.mxu0 0.0
  %2078 = vmatpush1.msra.mxu0 0.0
  %2079 = vmatprep.subr.mxu0 0.0
  %2080 = vmatpush1.msra.mxu0 0.0
  %2081 = vmatprep.subr.mxu0 0.0
  %2082 = vmatpush1.msra.mxu0 0.0
  %2083 = vmatprep.subr.mxu0 0.0
  %2084 = vmatpush1.msra.mxu0 0.0
  %2085 = vmatprep.subr.mxu0 0.0
  %2086 = vmatpush1.msra.mxu0 0.0
  %2087 = vmatprep.subr.mxu0 0.0
  %2088 = vmatpush1.msra.mxu0 0.0
  %2089 = vmatprep.subr.mxu0 0.0
  %2090 = vmatpush1.msra.mxu0 0.0
  %2091 = vmatprep.subr.mxu0 0.0
  %2092 = vmatpush1.msra.mxu0 0.0
  %2093 = vmatprep.subr.mxu0 0.0
  %2094 = vmatpush1.msra.mxu0 0.0
  %2095 = vmatprep.subr.mxu0 0.0
  %2096 = vmatpush1.msra.mxu0 0.0
  %2097 = vmatprep.subr.mxu0 0.0
  %2098 = vmatpush1.msra.mxu0 0.0
  %2099 = vmatprep.subr.mxu0 0.0
  %2100 = vmatpush1.msra.mxu0 0.0
  %2101 = vmatprep.subr.mxu0 0.0
  %2102 = vmatpush1.msra.mxu0 0.0
  %2103 = vmatprep.subr.mxu0 0.0
  %2104 = vmatpush1.msra.mxu0 0.0
  %2105 = vmatprep.subr.mxu0 0.0
  %2106 = vmatpush1.msra.mxu0 0.0
  %2107 = vmatprep.subr.mxu0 0.0
  %2108 = vmatpush1.msra.mxu0 0.0
  %2109 = vmatprep.subr.mxu0 0.0
  %2110 = vmatpush1.msra.mxu0 0.0
  %2111 = vmatprep.subr.mxu0 0.0
  %2112 = vmatpush1.msra.mxu0 0.0
  %2113 = vmatprep.subr.mxu0 0.0
  %2114 = vmatpush1.msra.mxu0 0.0
  %2115 = vmatprep.subr.mxu0 0.0
  %2116 = vmatpush1.msra.mxu0 0.0
  %2117 = vmatprep.subr.mxu0 0.0
  %2118 = vmatpush1.msra.mxu0 0.0
  %2119 = vmatprep.mubr.f32.mxu0 0.0
  %2120 = vmatmul.mubr.f32.gmra.mrb[0].mxu0 %v2053
  %v2121 = vpop.f32.mrb[0].mxu0
  %v2122 = vadd.f32 %v2047, %v2121
  %v2123 = vpop.f32.mrb[0].mxu0
  %2124 = vdwg.mxu0
  %v2125 = vadd.f32 %v2122, %v398
  %v2126 = vxor.u32 %v2125, 2147483648
  %v2127 = vmul.f32 %v2126, 1.442695
  %v2128 = vpow.pop %v2127
  %v2129 = vadd.f32 %v2128, 1.0
  %v2130 = vrcp.pop %v2129
  %v2131 = vmul.f32 1.0, %v2130
  %v2132 = vtanh.pop %v2125
  %v2133 = vmul.f32 %v2131, %v1798
  %2135 = vrot.lane.b32.xlu0 %v2132, 64
  %v2136 = vpop.permute.xlu0 %2135
  %v2138 = vmul.f32 %v2131, %v2136
  %2140 = vrot.lane.b32.xlu0 %v2138, 32
  %v2141 = vpop.permute.xlu0 %2140
  %v2143 = vadd.f32 %v2133, %v2141
  %v2144 = vtanh.pop %v2143
  %2146 = vrot.lane.b32.xlu0 %v2144, 64
  %v2147 = vpop.permute.xlu0 %2146
  %v2149 = vmul.f32 %v2131, %v2147
  %s2150 = scalar_lea.vmem %s0, 48
  %v2151 = vld [vmem:[%s2150] sm:$0xff]
  %2152 = vmatprep.subr.mxu0 0.0
  %2153 = vmatpush1.msra.mxu0 %v46
  %2154 = vmatprep.subr.mxu0 0.0
  %2155 = vmatpush1.msra.mxu0 %v47
  %2156 = vmatprep.subr.mxu0 0.0
  %2157 = vmatpush1.msra.mxu0 %v48
  %2158 = vmatprep.subr.mxu0 0.0
  %2159 = vmatpush1.msra.mxu0 %v49
  %2160 = vmatprep.subr.mxu0 0.0
  %2161 = vmatpush1.msra.mxu0 0.0
  %2162 = vmatprep.subr.mxu0 0.0
  %2163 = vmatpush1.msra.mxu0 0.0
  %2164 = vmatprep.subr.mxu0 0.0
  %2165 = vmatpush1.msra.mxu0 0.0
  %2166 = vmatprep.subr.mxu0 0.0
  %2167 = vmatpush1.msra.mxu0 0.0
  %2168 = vmatprep.subr.mxu0 0.0
  %2169 = vmatpush1.msra.mxu0 0.0
  %2170 = vmatprep.subr.mxu0 0.0
  %2171 = vmatpush1.msra.mxu0 0.0
  %2172 = vmatprep.subr.mxu0 0.0
  %2173 = vmatpush1.msra.mxu0 0.0
  %2174 = vmatprep.subr.mxu0 0.0
  %2175 = vmatpush1.msra.mxu0 0.0
  %2176 = vmatprep.subr.mxu0 0.0
  %2177 = vmatpush1.msra.mxu0 0.0
  %2178 = vmatprep.subr.mxu0 0.0
  %2179 = vmatpush1.msra.mxu0 0.0
  %2180 = vmatprep.subr.mxu0 0.0
  %2181 = vmatpush1.msra.mxu0 0.0
  %2182 = vmatprep.subr.mxu0 0.0
  %2183 = vmatpush1.msra.mxu0 0.0
  %2184 = vmatprep.subr.mxu0 0.0
  %2185 = vmatpush1.msra.mxu0 0.0
  %2186 = vmatprep.subr.mxu0 0.0
  %2187 = vmatpush1.msra.mxu0 0.0
  %2188 = vmatprep.subr.mxu0 0.0
  %2189 = vmatpush1.msra.mxu0 0.0
  %2190 = vmatprep.subr.mxu0 0.0
  %2191 = vmatpush1.msra.mxu0 0.0
  %2192 = vmatprep.subr.mxu0 0.0
  %2193 = vmatpush1.msra.mxu0 0.0
  %2194 = vmatprep.subr.mxu0 0.0
  %2195 = vmatpush1.msra.mxu0 0.0
  %2196 = vmatprep.subr.mxu0 0.0
  %2197 = vmatpush1.msra.mxu0 0.0
  %2198 = vmatprep.subr.mxu0 0.0
  %2199 = vmatpush1.msra.mxu0 0.0
  %2200 = vmatprep.subr.mxu0 0.0
  %2201 = vmatpush1.msra.mxu0 0.0
  %2202 = vmatprep.subr.mxu0 0.0
  %2203 = vmatpush1.msra.mxu0 0.0
  %2204 = vmatprep.subr.mxu0 0.0
  %2205 = vmatpush1.msra.mxu0 0.0
  %2206 = vmatprep.subr.mxu0 0.0
  %2207 = vmatpush1.msra.mxu0 0.0
  %2208 = vmatprep.subr.mxu0 0.0
  %2209 = vmatpush1.msra.mxu0 0.0
  %2210 = vmatprep.subr.mxu0 0.0
  %2211 = vmatpush1.msra.mxu0 0.0
  %2212 = vmatprep.subr.mxu0 0.0
  %2213 = vmatpush1.msra.mxu0 0.0
  %2214 = vmatprep.subr.mxu0 0.0
  %2215 = vmatpush1.msra.mxu0 0.0
  %2216 = vmatprep.mubr.f32.mxu0 0.0
  %2217 = vmatmul.mubr.f32.gmra.mrb[0].mxu0 %v2053
  %v2218 = vpop.f32.mrb[0].mxu0
  %v2219 = vadd.f32 0.0, %v2218
  %v2220 = vpop.f32.mrb[0].mxu0
  %2221 = vdwg.mxu0
  %v2223 = vsel %vm71, %v2151, 0
  %2225 = vmatprep.subr.mxu0 0.0
  %2226 = vmatpush1.msra.mxu0 %v38
  %2227 = vmatprep.subr.mxu0 0.0
  %2228 = vmatpush1.msra.mxu0 %v39
  %2229 = vmatprep.subr.mxu0 0.0
  %2230 = vmatpush1.msra.mxu0 %v40
  %2231 = vmatprep.subr.mxu0 0.0
  %2232 = vmatpush1.msra.mxu0 %v41
  %2233 = vmatprep.subr.mxu0 0.0
  %2234 = vmatpush1.msra.mxu0 0.0
  %2235 = vmatprep.subr.mxu0 0.0
  %2236 = vmatpush1.msra.mxu0 0.0
  %2237 = vmatprep.subr.mxu0 0.0
  %2238 = vmatpush1.msra.mxu0 0.0
  %2239 = vmatprep.subr.mxu0 0.0
  %2240 = vmatpush1.msra.mxu0 0.0
  %2241 = vmatprep.subr.mxu0 0.0
  %2242 = vmatpush1.msra.mxu0 0.0
  %2243 = vmatprep.subr.mxu0 0.0
  %2244 = vmatpush1.msra.mxu0 0.0
  %2245 = vmatprep.subr.mxu0 0.0
  %2246 = vmatpush1.msra.mxu0 0.0
  %2247 = vmatprep.subr.mxu0 0.0
  %2248 = vmatpush1.msra.mxu0 0.0
  %2249 = vmatprep.subr.mxu0 0.0
  %2250 = vmatpush1.msra.mxu0 0.0
  %2251 = vmatprep.subr.mxu0 0.0
  %2252 = vmatpush1.msra.mxu0 0.0
  %2253 = vmatprep.subr.mxu0 0.0
  %2254 = vmatpush1.msra.mxu0 0.0
  %2255 = vmatprep.subr.mxu0 0.0
  %2256 = vmatpush1.msra.mxu0 0.0
  %2257 = vmatprep.subr.mxu0 0.0
  %2258 = vmatpush1.msra.mxu0 0.0
  %2259 = vmatprep.subr.mxu0 0.0
  %2260 = vmatpush1.msra.mxu0 0.0
  %2261 = vmatprep.subr.mxu0 0.0
  %2262 = vmatpush1.msra.mxu0 0.0
  %2263 = vmatprep.subr.mxu0 0.0
  %2264 = vmatpush1.msra.mxu0 0.0
  %2265 = vmatprep.subr.mxu0 0.0
  %2266 = vmatpush1.msra.mxu0 0.0
  %2267 = vmatprep.subr.mxu0 0.0
  %2268 = vmatpush1.msra.mxu0 0.0
  %2269 = vmatprep.subr.mxu0 0.0
  %2270 = vmatpush1.msra.mxu0 0.0
  %2271 = vmatprep.subr.mxu0 0.0
  %2272 = vmatpush1.msra.mxu0 0.0
  %2273 = vmatprep.subr.mxu0 0.0
  %2274 = vmatpush1.msra.mxu0 0.0
  %2275 = vmatprep.subr.mxu0 0.0
  %2276 = vmatpush1.msra.mxu0 0.0
  %2277 = vmatprep.subr.mxu0 0.0
  %2278 = vmatpush1.msra.mxu0 0.0
  %2279 = vmatprep.subr.mxu0 0.0
  %2280 = vmatpush1.msra.mxu0 0.0
  %2281 = vmatprep.subr.mxu0 0.0
  %2282 = vmatpush1.msra.mxu0 0.0
  %2283 = vmatprep.subr.mxu0 0.0
  %2284 = vmatpush1.msra.mxu0 0.0
  %2285 = vmatprep.subr.mxu0 0.0
  %2286 = vmatpush1.msra.mxu0 0.0
  %2287 = vmatprep.subr.mxu0 0.0
  %2288 = vmatpush1.msra.mxu0 0.0
  %2289 = vmatprep.mubr.f32.mxu0 0.0
  %2290 = vmatmul.mubr.f32.gmra.mrb[0].mxu0 %v2223
  %v2291 = vpop.f32.mrb[0].mxu0
  %v2292 = vadd.f32 %v2219, %v2291
  %v2293 = vpop.f32.mrb[0].mxu0
  %2294 = vdwg.mxu0
  %v2295 = vadd.f32 %v2292, %v222
  %v2296 = vxor.u32 %v2295, 2147483648
  %v2297 = vmul.f32 %v2296, 1.442695
  %v2298 = vpow.pop %v2297
  %v2299 = vadd.f32 %v2298, 1.0
  %v2300 = vrcp.pop %v2299
  %v2301 = vmul.f32 1.0, %v2300
  %v2302 = vtanh.pop %v2295
  %v2303 = vmul.f32 %v2301, %v1968
  %2305 = vrot.lane.b32.xlu0 %v2302, 64
  %v2306 = vpop.permute.xlu0 %2305
  %v2308 = vmul.f32 %v2301, %v2306
  %2310 = vrot.lane.b32.xlu0 %v2308, 32
  %v2311 = vpop.permute.xlu0 %2310
  %v2313 = vadd.f32 %v2303, %v2311
  %v2314 = vtanh.pop %v2313
  %2316 = vrot.lane.b32.xlu0 %v2314, 64
  %v2317 = vpop.permute.xlu0 %2316
  %v2319 = vmul.f32 %v2301, %v2317
  %2321 = vrot.lane.b32.xlu0 %v2149, 32
  %v2322 = vpop.permute.xlu0 %2321
  %v2323 = vsel %vm71, %v2322, 0
  %2325 = vmatprep.subr.mxu0 0.0
  %2326 = vmatpush1.msra.mxu0 %v50
  %2327 = vmatprep.subr.mxu0 0.0
  %2328 = vmatpush1.msra.mxu0 %v51
  %2329 = vmatprep.subr.mxu0 0.0
  %2330 = vmatpush1.msra.mxu0 %v52
  %2331 = vmatprep.subr.mxu0 0.0
  %2332 = vmatpush1.msra.mxu0 %v53
  %2333 = vmatprep.subr.mxu0 0.0
  %2334 = vmatpush1.msra.mxu0 0.0
  %2335 = vmatprep.subr.mxu0 0.0
  %2336 = vmatpush1.msra.mxu0 0.0
  %2337 = vmatprep.subr.mxu0 0.0
  %2338 = vmatpush1.msra.mxu0 0.0
  %2339 = vmatprep.subr.mxu0 0.0
  %2340 = vmatpush1.msra.mxu0 0.0
  %2341 = vmatprep.subr.mxu0 0.0
  %2342 = vmatpush1.msra.mxu0 0.0
  %2343 = vmatprep.subr.mxu0 0.0
  %2344 = vmatpush1.msra.mxu0 0.0
  %2345 = vmatprep.subr.mxu0 0.0
  %2346 = vmatpush1.msra.mxu0 0.0
  %2347 = vmatprep.subr.mxu0 0.0
  %2348 = vmatpush1.msra.mxu0 0.0
  %2349 = vmatprep.subr.mxu0 0.0
  %2350 = vmatpush1.msra.mxu0 0.0
  %2351 = vmatprep.subr.mxu0 0.0
  %2352 = vmatpush1.msra.mxu0 0.0
  %2353 = vmatprep.subr.mxu0 0.0
  %2354 = vmatpush1.msra.mxu0 0.0
  %2355 = vmatprep.subr.mxu0 0.0
  %2356 = vmatpush1.msra.mxu0 0.0
  %2357 = vmatprep.subr.mxu0 0.0
  %2358 = vmatpush1.msra.mxu0 0.0
  %2359 = vmatprep.subr.mxu0 0.0
  %2360 = vmatpush1.msra.mxu0 0.0
  %2361 = vmatprep.subr.mxu0 0.0
  %2362 = vmatpush1.msra.mxu0 0.0
  %2363 = vmatprep.subr.mxu0 0.0
  %2364 = vmatpush1.msra.mxu0 0.0
  %2365 = vmatprep.subr.mxu0 0.0
  %2366 = vmatpush1.msra.mxu0 0.0
  %2367 = vmatprep.subr.mxu0 0.0
  %2368 = vmatpush1.msra.mxu0 0.0
  %2369 = vmatprep.subr.mxu0 0.0
  %2370 = vmatpush1.msra.mxu0 0.0
  %2371 = vmatprep.subr.mxu0 0.0
  %2372 = vmatpush1.msra.mxu0 0.0
  %2373 = vmatprep.subr.mxu0 0.0
  %2374 = vmatpush1.msra.mxu0 0.0
  %2375 = vmatprep.subr.mxu0 0.0
  %2376 = vmatpush1.msra.mxu0 0.0
  %2377 = vmatprep.subr.mxu0 0.0
  %2378 = vmatpush1.msra.mxu0 0.0
  %2379 = vmatprep.subr.mxu0 0.0
  %2380 = vmatpush1.msra.mxu0 0.0
  %2381 = vmatprep.subr.mxu0 0.0
  %2382 = vmatpush1.msra.mxu0 0.0
  %2383 = vmatprep.subr.mxu0 0.0
  %2384 = vmatpush1.msra.mxu0 0.0
  %2385 = vmatprep.subr.mxu0 0.0
  %2386 = vmatpush1.msra.mxu0 0.0
  %2387 = vmatprep.subr.mxu0 0.0
  %2388 = vmatpush1.msra.mxu0 0.0
  %2389 = vmatprep.mubr.f32.mxu0 0.0
  %2390 = vmatmul.mubr.f32.gmra.mrb[0].mxu0 %v2323
  %v2391 = vpop.f32.mrb[0].mxu0
  %v2392 = vadd.f32 0.0, %v2391
  %v2393 = vpop.f32.mrb[0].mxu0
  %2394 = vdwg.mxu0
  %2396 = vrot.lane.b32.xlu0 %v2319, 32
  %v2397 = vpop.permute.xlu0 %2396
  %v2398 = vsel %vm71, %v2397, 0
  %2400 = vmatprep.subr.mxu0 0.0
  %2401 = vmatpush1.msra.mxu0 %v42
  %2402 = vmatprep.subr.mxu0 0.0
  %2403 = vmatpush1.msra.mxu0 %v43
  %2404 = vmatprep.subr.mxu0 0.0
  %2405 = vmatpush1.msra.mxu0 %v44
  %2406 = vmatprep.subr.mxu0 0.0
  %2407 = vmatpush1.msra.mxu0 %v45
  %2408 = vmatprep.subr.mxu0 0.0
  %2409 = vmatpush1.msra.mxu0 0.0
  %2410 = vmatprep.subr.mxu0 0.0
  %2411 = vmatpush1.msra.mxu0 0.0
  %2412 = vmatprep.subr.mxu0 0.0
  %2413 = vmatpush1.msra.mxu0 0.0
  %2414 = vmatprep.subr.mxu0 0.0
  %2415 = vmatpush1.msra.mxu0 0.0
  %2416 = vmatprep.subr.mxu0 0.0
  %2417 = vmatpush1.msra.mxu0 0.0
  %2418 = vmatprep.subr.mxu0 0.0
  %2419 = vmatpush1.msra.mxu0 0.0
  %2420 = vmatprep.subr.mxu0 0.0
  %2421 = vmatpush1.msra.mxu0 0.0
  %2422 = vmatprep.subr.mxu0 0.0
  %2423 = vmatpush1.msra.mxu0 0.0
  %2424 = vmatprep.subr.mxu0 0.0
  %2425 = vmatpush1.msra.mxu0 0.0
  %2426 = vmatprep.subr.mxu0 0.0
  %2427 = vmatpush1.msra.mxu0 0.0
  %2428 = vmatprep.subr.mxu0 0.0
  %2429 = vmatpush1.msra.mxu0 0.0
  %2430 = vmatprep.subr.mxu0 0.0
  %2431 = vmatpush1.msra.mxu0 0.0
  %2432 = vmatprep.subr.mxu0 0.0
  %2433 = vmatpush1.msra.mxu0 0.0
  %2434 = vmatprep.subr.mxu0 0.0
  %2435 = vmatpush1.msra.mxu0 0.0
  %2436 = vmatprep.subr.mxu0 0.0
  %2437 = vmatpush1.msra.mxu0 0.0
  %2438 = vmatprep.subr.mxu0 0.0
  %2439 = vmatpush1.msra.mxu0 0.0
  %2440 = vmatprep.subr.mxu0 0.0
  %2441 = vmatpush1.msra.mxu0 0.0
  %2442 = vmatprep.subr.mxu0 0.0
  %2443 = vmatpush1.msra.mxu0 0.0
  %2444 = vmatprep.subr.mxu0 0.0
  %2445 = vmatpush1.msra.mxu0 0.0
  %2446 = vmatprep.subr.mxu0 0.0
  %2447 = vmatpush1.msra.mxu0 0.0
  %2448 = vmatprep.subr.mxu0 0.0
  %2449 = vmatpush1.msra.mxu0 0.0
  %2450 = vmatprep.subr.mxu0 0.0
  %2451 = vmatpush1.msra.mxu0 0.0
  %2452 = vmatprep.subr.mxu0 0.0
  %2453 = vmatpush1.msra.mxu0 0.0
  %2454 = vmatprep.subr.mxu0 0.0
  %2455 = vmatpush1.msra.mxu0 0.0
  %2456 = vmatprep.subr.mxu0 0.0
  %2457 = vmatpush1.msra.mxu0 0.0
  %2458 = vmatprep.subr.mxu0 0.0
  %2459 = vmatpush1.msra.mxu0 0.0
  %2460 = vmatprep.subr.mxu0 0.0
  %2461 = vmatpush1.msra.mxu0 0.0
  %2462 = vmatprep.subr.mxu0 0.0
  %2463 = vmatpush1.msra.mxu0 0.0
  %2464 = vmatprep.mubr.f32.mxu0 0.0
  %2465 = vmatmul.mubr.f32.gmra.mrb[0].mxu0 %v2398
  %v2466 = vpop.f32.mrb[0].mxu0
  %v2467 = vadd.f32 %v2392, %v2466
  %v2468 = vpop.f32.mrb[0].mxu0
  %2469 = vdwg.mxu0
  %v2470 = vadd.f32 %v2467, %v398
  %v2471 = vxor.u32 %v2470, 2147483648
  %v2472 = vmul.f32 %v2471, 1.442695
  %v2473 = vpow.pop %v2472
  %v2474 = vadd.f32 %v2473, 1.0
  %v2475 = vrcp.pop %v2474
  %v2476 = vmul.f32 1.0, %v2475
  %v2477 = vtanh.pop %v2470
  %v2478 = vmul.f32 %v2476, %v2143
  %2480 = vrot.lane.b32.xlu0 %v2477, 64
  %v2481 = vpop.permute.xlu0 %2480
  %v2483 = vmul.f32 %v2476, %v2481
  %2485 = vrot.lane.b32.xlu0 %v2483, 32
  %v2486 = vpop.permute.xlu0 %2485
  %v2488 = vadd.f32 %v2478, %v2486
  %v2489 = vtanh.pop %v2488
  %2491 = vrot.lane.b32.xlu0 %v2489, 64
  %v2492 = vpop.permute.xlu0 %2491
  %v2494 = vmul.f32 %v2476, %v2492
  %s2495 = scalar_lea.vmem %s0, 56
  %v2496 = vld [vmem:[%s2495] sm:$0xff]
  %2497 = vmatprep.subr.mxu0 0.0
  %2498 = vmatpush1.msra.mxu0 %v46
  %2499 = vmatprep.subr.mxu0 0.0
  %2500 = vmatpush1.msra.mxu0 %v47
  %2501 = vmatprep.subr.mxu0 0.0
  %2502 = vmatpush1.msra.mxu0 %v48
  %2503 = vmatprep.subr.mxu0 0.0
  %2504 = vmatpush1.msra.mxu0 %v49
  %2505 = vmatprep.subr.mxu0 0.0
  %2506 = vmatpush1.msra.mxu0 0.0
  %2507 = vmatprep.subr.mxu0 0.0
  %2508 = vmatpush1.msra.mxu0 0.0
  %2509 = vmatprep.subr.mxu0 0.0
  %2510 = vmatpush1.msra.mxu0 0.0
  %2511 = vmatprep.subr.mxu0 0.0
  %2512 = vmatpush1.msra.mxu0 0.0
  %2513 = vmatprep.subr.mxu0 0.0
  %2514 = vmatpush1.msra.mxu0 0.0
  %2515 = vmatprep.subr.mxu0 0.0
  %2516 = vmatpush1.msra.mxu0 0.0
  %2517 = vmatprep.subr.mxu0 0.0
  %2518 = vmatpush1.msra.mxu0 0.0
  %2519 = vmatprep.subr.mxu0 0.0
  %2520 = vmatpush1.msra.mxu0 0.0
  %2521 = vmatprep.subr.mxu0 0.0
  %2522 = vmatpush1.msra.mxu0 0.0
  %2523 = vmatprep.subr.mxu0 0.0
  %2524 = vmatpush1.msra.mxu0 0.0
  %2525 = vmatprep.subr.mxu0 0.0
  %2526 = vmatpush1.msra.mxu0 0.0
  %2527 = vmatprep.subr.mxu0 0.0
  %2528 = vmatpush1.msra.mxu0 0.0
  %2529 = vmatprep.subr.mxu0 0.0
  %2530 = vmatpush1.msra.mxu0 0.0
  %2531 = vmatprep.subr.mxu0 0.0
  %2532 = vmatpush1.msra.mxu0 0.0
  %2533 = vmatprep.subr.mxu0 0.0
  %2534 = vmatpush1.msra.mxu0 0.0
  %2535 = vmatprep.subr.mxu0 0.0
  %2536 = vmatpush1.msra.mxu0 0.0
  %2537 = vmatprep.subr.mxu0 0.0
  %2538 = vmatpush1.msra.mxu0 0.0
  %2539 = vmatprep.subr.mxu0 0.0
  %2540 = vmatpush1.msra.mxu0 0.0
  %2541 = vmatprep.subr.mxu0 0.0
  %2542 = vmatpush1.msra.mxu0 0.0
  %2543 = vmatprep.subr.mxu0 0.0
  %2544 = vmatpush1.msra.mxu0 0.0
  %2545 = vmatprep.subr.mxu0 0.0
  %2546 = vmatpush1.msra.mxu0 0.0
  %2547 = vmatprep.subr.mxu0 0.0
  %2548 = vmatpush1.msra.mxu0 0.0
  %2549 = vmatprep.subr.mxu0 0.0
  %2550 = vmatpush1.msra.mxu0 0.0
  %2551 = vmatprep.subr.mxu0 0.0
  %2552 = vmatpush1.msra.mxu0 0.0
  %2553 = vmatprep.subr.mxu0 0.0
  %2554 = vmatpush1.msra.mxu0 0.0
  %2555 = vmatprep.subr.mxu0 0.0
  %2556 = vmatpush1.msra.mxu0 0.0
  %2557 = vmatprep.subr.mxu0 0.0
  %2558 = vmatpush1.msra.mxu0 0.0
  %2559 = vmatprep.subr.mxu0 0.0
  %2560 = vmatpush1.msra.mxu0 0.0
  %2561 = vmatprep.mubr.f32.mxu0 0.0
  %2562 = vmatmul.mubr.f32.gmra.mrb[0].mxu0 %v2398
  %v2563 = vpop.f32.mrb[0].mxu0
  %v2564 = vadd.f32 0.0, %v2563
  %v2565 = vpop.f32.mrb[0].mxu0
  %2566 = vdwg.mxu0
  %v2568 = vsel %vm71, %v2496, 0
  %2570 = vmatprep.subr.mxu0 0.0
  %2571 = vmatpush1.msra.mxu0 %v38
  %2572 = vmatprep.subr.mxu0 0.0
  %2573 = vmatpush1.msra.mxu0 %v39
  %2574 = vmatprep.subr.mxu0 0.0
  %2575 = vmatpush1.msra.mxu0 %v40
  %2576 = vmatprep.subr.mxu0 0.0
  %2577 = vmatpush1.msra.mxu0 %v41
  %2578 = vmatprep.subr.mxu0 0.0
  %2579 = vmatpush1.msra.mxu0 0.0
  %2580 = vmatprep.subr.mxu0 0.0
  %2581 = vmatpush1.msra.mxu0 0.0
  %2582 = vmatprep.subr.mxu0 0.0
  %2583 = vmatpush1.msra.mxu0 0.0
  %2584 = vmatprep.subr.mxu0 0.0
  %2585 = vmatpush1.msra.mxu0 0.0
  %2586 = vmatprep.subr.mxu0 0.0
  %2587 = vmatpush1.msra.mxu0 0.0
  %2588 = vmatprep.subr.mxu0 0.0
  %2589 = vmatpush1.msra.mxu0 0.0
  %2590 = vmatprep.subr.mxu0 0.0
  %2591 = vmatpush1.msra.mxu0 0.0
  %2592 = vmatprep.subr.mxu0 0.0
  %2593 = vmatpush1.msra.mxu0 0.0
  %2594 = vmatprep.subr.mxu0 0.0
  %2595 = vmatpush1.msra.mxu0 0.0
  %2596 = vmatprep.subr.mxu0 0.0
  %2597 = vmatpush1.msra.mxu0 0.0
  %2598 = vmatprep.subr.mxu0 0.0
  %2599 = vmatpush1.msra.mxu0 0.0
  %2600 = vmatprep.subr.mxu0 0.0
  %2601 = vmatpush1.msra.mxu0 0.0
  %2602 = vmatprep.subr.mxu0 0.0
  %2603 = vmatpush1.msra.mxu0 0.0
  %2604 = vmatprep.subr.mxu0 0.0
  %2605 = vmatpush1.msra.mxu0 0.0
  %2606 = vmatprep.subr.mxu0 0.0
  %2607 = vmatpush1.msra.mxu0 0.0
  %2608 = vmatprep.subr.mxu0 0.0
  %2609 = vmatpush1.msra.mxu0 0.0
  %2610 = vmatprep.subr.mxu0 0.0
  %2611 = vmatpush1.msra.mxu0 0.0
  %2612 = vmatprep.subr.mxu0 0.0
  %2613 = vmatpush1.msra.mxu0 0.0
  %2614 = vmatprep.subr.mxu0 0.0
  %2615 = vmatpush1.msra.mxu0 0.0
  %2616 = vmatprep.subr.mxu0 0.0
  %2617 = vmatpush1.msra.mxu0 0.0
  %2618 = vmatprep.subr.mxu0 0.0
  %2619 = vmatpush1.msra.mxu0 0.0
  %2620 = vmatprep.subr.mxu0 0.0
  %2621 = vmatpush1.msra.mxu0 0.0
  %2622 = vmatprep.subr.mxu0 0.0
  %2623 = vmatpush1.msra.mxu0 0.0
  %2624 = vmatprep.subr.mxu0 0.0
  %2625 = vmatpush1.msra.mxu0 0.0
  %2626 = vmatprep.subr.mxu0 0.0
  %2627 = vmatpush1.msra.mxu0 0.0
  %2628 = vmatprep.subr.mxu0 0.0
  %2629 = vmatpush1.msra.mxu0 0.0
  %2630 = vmatprep.subr.mxu0 0.0
  %2631 = vmatpush1.msra.mxu0 0.0
  %2632 = vmatprep.subr.mxu0 0.0
  %2633 = vmatpush1.msra.mxu0 0.0
  %2634 = vmatprep.mubr.f32.mxu0 0.0
  %2635 = vmatmul.mubr.f32.gmra.mrb[0].mxu0 %v2568
  %v2636 = vpop.f32.mrb[0].mxu0
  %v2637 = vadd.f32 %v2564, %v2636
  %v2638 = vpop.f32.mrb[0].mxu0
  %2639 = vdwg.mxu0
  %v2640 = vadd.f32 %v2637, %v222
  %v2641 = vxor.u32 %v2640, 2147483648
  %v2642 = vmul.f32 %v2641, 1.442695
  %v2643 = vpow.pop %v2642
  %v2644 = vadd.f32 %v2643, 1.0
  %v2645 = vrcp.pop %v2644
  %v2646 = vmul.f32 1.0, %v2645
  %v2647 = vtanh.pop %v2640
  %v2648 = vmul.f32 %v2646, %v2313
  %2650 = vrot.lane.b32.xlu0 %v2647, 64
  %v2651 = vpop.permute.xlu0 %2650
  %v2653 = vmul.f32 %v2646, %v2651
  %2655 = vrot.lane.b32.xlu0 %v2653, 32
  %v2656 = vpop.permute.xlu0 %2655
  %v2658 = vadd.f32 %v2648, %v2656
  %v2659 = vtanh.pop %v2658
  %2661 = vrot.lane.b32.xlu0 %v2659, 64
  %v2662 = vpop.permute.xlu0 %2661
  %v2664 = vmul.f32 %v2646, %v2662
  %2666 = vrot.lane.b32.xlu0 %v2494, 32
  %v2667 = vpop.permute.xlu0 %2666
  %v2668 = vsel %vm71, %v2667, 0
  %2670 = vmatprep.subr.mxu0 0.0
  %2671 = vmatpush1.msra.mxu0 %v50
  %2672 = vmatprep.subr.mxu0 0.0
  %2673 = vmatpush1.msra.mxu0 %v51
  %2674 = vmatprep.subr.mxu0 0.0
  %2675 = vmatpush1.msra.mxu0 %v52
  %2676 = vmatprep.subr.mxu0 0.0
  %2677 = vmatpush1.msra.mxu0 %v53
  %2678 = vmatprep.subr.mxu0 0.0
  %2679 = vmatpush1.msra.mxu0 0.0
  %2680 = vmatprep.subr.mxu0 0.0
  %2681 = vmatpush1.msra.mxu0 0.0
  %2682 = vmatprep.subr.mxu0 0.0
  %2683 = vmatpush1.msra.mxu0 0.0
  %2684 = vmatprep.subr.mxu0 0.0
  %2685 = vmatpush1.msra.mxu0 0.0
  %2686 = vmatprep.subr.mxu0 0.0
  %2687 = vmatpush1.msra.mxu0 0.0
  %2688 = vmatprep.subr.mxu0 0.0
  %2689 = vmatpush1.msra.mxu0 0.0
  %2690 = vmatprep.subr.mxu0 0.0
  %2691 = vmatpush1.msra.mxu0 0.0
  %2692 = vmatprep.subr.mxu0 0.0
  %2693 = vmatpush1.msra.mxu0 0.0
  %2694 = vmatprep.subr.mxu0 0.0
  %2695 = vmatpush1.msra.mxu0 0.0
  %2696 = vmatprep.subr.mxu0 0.0
  %2697 = vmatpush1.msra.mxu0 0.0
  %2698 = vmatprep.subr.mxu0 0.0
  %2699 = vmatpush1.msra.mxu0 0.0
  %2700 = vmatprep.subr.mxu0 0.0
  %2701 = vmatpush1.msra.mxu0 0.0
  %2702 = vmatprep.subr.mxu0 0.0
  %2703 = vmatpush1.msra.mxu0 0.0
  %2704 = vmatprep.subr.mxu0 0.0
  %2705 = vmatpush1.msra.mxu0 0.0
  %2706 = vmatprep.subr.mxu0 0.0
  %2707 = vmatpush1.msra.mxu0 0.0
  %2708 = vmatprep.subr.mxu0 0.0
  %2709 = vmatpush1.msra.mxu0 0.0
  %2710 = vmatprep.subr.mxu0 0.0
  %2711 = vmatpush1.msra.mxu0 0.0
  %2712 = vmatprep.subr.mxu0 0.0
  %2713 = vmatpush1.msra.mxu0 0.0
  %2714 = vmatprep.subr.mxu0 0.0
  %2715 = vmatpush1.msra.mxu0 0.0
  %2716 = vmatprep.subr.mxu0 0.0
  %2717 = vmatpush1.msra.mxu0 0.0
  %2718 = vmatprep.subr.mxu0 0.0
  %2719 = vmatpush1.msra.mxu0 0.0
  %2720 = vmatprep.subr.mxu0 0.0
  %2721 = vmatpush1.msra.mxu0 0.0
  %2722 = vmatprep.subr.mxu0 0.0
  %2723 = vmatpush1.msra.mxu0 0.0
  %2724 = vmatprep.subr.mxu0 0.0
  %2725 = vmatpush1.msra.mxu0 0.0
  %2726 = vmatprep.subr.mxu0 0.0
  %2727 = vmatpush1.msra.mxu0 0.0
  %2728 = vmatprep.subr.mxu0 0.0
  %2729 = vmatpush1.msra.mxu0 0.0
  %2730 = vmatprep.subr.mxu0 0.0
  %2731 = vmatpush1.msra.mxu0 0.0
  %2732 = vmatprep.subr.mxu0 0.0
  %2733 = vmatpush1.msra.mxu0 0.0
  %2734 = vmatprep.mubr.f32.mxu0 0.0
  %2735 = vmatmul.mubr.f32.gmra.mrb[0].mxu0 %v2668
  %v2736 = vpop.f32.mrb[0].mxu0
  %v2737 = vadd.f32 0.0, %v2736
  %v2738 = vpop.f32.mrb[0].mxu0
  %2739 = vdwg.mxu0
  %2741 = vrot.lane.b32.xlu0 %v2664, 32
  %v2742 = vpop.permute.xlu0 %2741
  %v2743 = vsel %vm71, %v2742, 0
  %2745 = vmatprep.subr.mxu0 0.0
  %2746 = vmatpush1.msra.mxu0 %v42
  %2747 = vmatprep.subr.mxu0 0.0
  %2748 = vmatpush1.msra.mxu0 %v43
  %2749 = vmatprep.subr.mxu0 0.0
  %2750 = vmatpush1.msra.mxu0 %v44
  %2751 = vmatprep.subr.mxu0 0.0
  %2752 = vmatpush1.msra.mxu0 %v45
  %2753 = vmatprep.subr.mxu0 0.0
  %2754 = vmatpush1.msra.mxu0 0.0
  %2755 = vmatprep.subr.mxu0 0.0
  %2756 = vmatpush1.msra.mxu0 0.0
  %2757 = vmatprep.subr.mxu0 0.0
  %2758 = vmatpush1.msra.mxu0 0.0
  %2759 = vmatprep.subr.mxu0 0.0
  %2760 = vmatpush1.msra.mxu0 0.0
  %2761 = vmatprep.subr.mxu0 0.0
  %2762 = vmatpush1.msra.mxu0 0.0
  %2763 = vmatprep.subr.mxu0 0.0
  %2764 = vmatpush1.msra.mxu0 0.0
  %2765 = vmatprep.subr.mxu0 0.0
  %2766 = vmatpush1.msra.mxu0 0.0
  %2767 = vmatprep.subr.mxu0 0.0
  %2768 = vmatpush1.msra.mxu0 0.0
  %2769 = vmatprep.subr.mxu0 0.0
  %2770 = vmatpush1.msra.mxu0 0.0
  %2771 = vmatprep.subr.mxu0 0.0
  %2772 = vmatpush1.msra.mxu0 0.0
  %2773 = vmatprep.subr.mxu0 0.0
  %2774 = vmatpush1.msra.mxu0 0.0
  %2775 = vmatprep.subr.mxu0 0.0
  %2776 = vmatpush1.msra.mxu0 0.0
  %2777 = vmatprep.subr.mxu0 0.0
  %2778 = vmatpush1.msra.mxu0 0.0
  %2779 = vmatprep.subr.mxu0 0.0
  %2780 = vmatpush1.msra.mxu0 0.0
  %2781 = vmatprep.subr.mxu0 0.0
  %2782 = vmatpush1.msra.mxu0 0.0
  %2783 = vmatprep.subr.mxu0 0.0
  %2784 = vmatpush1.msra.mxu0 0.0
  %2785 = vmatprep.subr.mxu0 0.0
  %2786 = vmatpush1.msra.mxu0 0.0
  %2787 = vmatprep.subr.mxu0 0.0
  %2788 = vmatpush1.msra.mxu0 0.0
  %2789 = vmatprep.subr.mxu0 0.0
  %2790 = vmatpush1.msra.mxu0 0.0
  %2791 = vmatprep.subr.mxu0 0.0
  %2792 = vmatpush1.msra.mxu0 0.0
  %2793 = vmatprep.subr.mxu0 0.0
  %2794 = vmatpush1.msra.mxu0 0.0
  %2795 = vmatprep.subr.mxu0 0.0
  %2796 = vmatpush1.msra.mxu0 0.0
  %2797 = vmatprep.subr.mxu0 0.0
  %2798 = vmatpush1.msra.mxu0 0.0
  %2799 = vmatprep.subr.mxu0 0.0
  %2800 = vmatpush1.msra.mxu0 0.0
  %2801 = vmatprep.subr.mxu0 0.0
  %2802 = vmatpush1.msra.mxu0 0.0
  %2803 = vmatprep.subr.mxu0 0.0
  %2804 = vmatpush1.msra.mxu0 0.0
  %2805 = vmatprep.subr.mxu0 0.0
  %2806 = vmatpush1.msra.mxu0 0.0
  %2807 = vmatprep.subr.mxu0 0.0
  %2808 = vmatpush1.msra.mxu0 0.0
  %2809 = vmatprep.mubr.f32.mxu0 0.0
  %2810 = vmatmul.mubr.f32.gmra.mrb[0].mxu0 %v2743
  %v2811 = vpop.f32.mrb[0].mxu0
  %v2812 = vadd.f32 %v2737, %v2811
  %v2813 = vpop.f32.mrb[0].mxu0
  %2814 = vdwg.mxu0
  %v2815 = vadd.f32 %v2812, %v398
  %v2816 = vxor.u32 %v2815, 2147483648
  %v2817 = vmul.f32 %v2816, 1.442695
  %v2818 = vpow.pop %v2817
  %v2819 = vadd.f32 %v2818, 1.0
  %v2820 = vrcp.pop %v2819
  %v2821 = vmul.f32 1.0, %v2820
  %v2822 = vtanh.pop %v2815
  %v2823 = vmul.f32 %v2821, %v2488
  %2825 = vrot.lane.b32.xlu0 %v2822, 64
  %v2826 = vpop.permute.xlu0 %2825
  %v2828 = vmul.f32 %v2821, %v2826
  %2830 = vrot.lane.b32.xlu0 %v2828, 32
  %v2831 = vpop.permute.xlu0 %2830
  %v2833 = vadd.f32 %v2823, %v2831
  %v2834 = vtanh.pop %v2833
  %2836 = vrot.lane.b32.xlu0 %v2834, 64
  %v2837 = vpop.permute.xlu0 %2836
  %v2839 = vmul.f32 %v2821, %v2837
  %v2841 = vlaneseq
  %v2842 = vshrl.u32 %v2841, 7
  %v2843 = vsub.s32 0, %v2842
  %v2844 = vrot.slane %v60, %v2843
  %2847 = vrot.lane.b32.xlu0 %v2839, 32
  %v2848 = vpop.permute.xlu0 %2847
  %v2849 = vsel %vm71, %v2848, 0
  %2851 = vmatprep.subr.mxu0 0.0
  %2852 = vmatpush1.msra.mxu0 %v56
  %2853 = vmatprep.subr.mxu0 0.0
  %2854 = vmatpush1.msra.mxu0 %v57
  %2855 = vmatprep.subr.mxu0 0.0
  %2856 = vmatpush1.msra.mxu0 %v58
  %2857 = vmatprep.subr.mxu0 0.0
  %2858 = vmatpush1.msra.mxu0 %v59
  %2859 = vmatprep.subr.mxu0 0.0
  %2860 = vmatpush1.msra.mxu0 0.0
  %2861 = vmatprep.subr.mxu0 0.0
  %2862 = vmatpush1.msra.mxu0 0.0
  %2863 = vmatprep.subr.mxu0 0.0
  %2864 = vmatpush1.msra.mxu0 0.0
  %2865 = vmatprep.subr.mxu0 0.0
  %2866 = vmatpush1.msra.mxu0 0.0
  %2867 = vmatprep.subr.mxu0 0.0
  %2868 = vmatpush1.msra.mxu0 0.0
  %2869 = vmatprep.subr.mxu0 0.0
  %2870 = vmatpush1.msra.mxu0 0.0
  %2871 = vmatprep.subr.mxu0 0.0
  %2872 = vmatpush1.msra.mxu0 0.0
  %2873 = vmatprep.subr.mxu0 0.0
  %2874 = vmatpush1.msra.mxu0 0.0
  %2875 = vmatprep.subr.mxu0 0.0
  %2876 = vmatpush1.msra.mxu0 0.0
  %2877 = vmatprep.subr.mxu0 0.0
  %2878 = vmatpush1.msra.mxu0 0.0
  %2879 = vmatprep.subr.mxu0 0.0
  %2880 = vmatpush1.msra.mxu0 0.0
  %2881 = vmatprep.subr.mxu0 0.0
  %2882 = vmatpush1.msra.mxu0 0.0
  %2883 = vmatprep.subr.mxu0 0.0
  %2884 = vmatpush1.msra.mxu0 0.0
  %2885 = vmatprep.subr.mxu0 0.0
  %2886 = vmatpush1.msra.mxu0 0.0
  %2887 = vmatprep.subr.mxu0 0.0
  %2888 = vmatpush1.msra.mxu0 0.0
  %2889 = vmatprep.subr.mxu0 0.0
  %2890 = vmatpush1.msra.mxu0 0.0
  %2891 = vmatprep.subr.mxu0 0.0
  %2892 = vmatpush1.msra.mxu0 0.0
  %2893 = vmatprep.subr.mxu0 0.0
  %2894 = vmatpush1.msra.mxu0 0.0
  %2895 = vmatprep.subr.mxu0 0.0
  %2896 = vmatpush1.msra.mxu0 0.0
  %2897 = vmatprep.subr.mxu0 0.0
  %2898 = vmatpush1.msra.mxu0 0.0
  %2899 = vmatprep.subr.mxu0 0.0
  %2900 = vmatpush1.msra.mxu0 0.0
  %2901 = vmatprep.subr.mxu0 0.0
  %2902 = vmatpush1.msra.mxu0 0.0
  %2903 = vmatprep.subr.mxu0 0.0
  %2904 = vmatpush1.msra.mxu0 0.0
  %2905 = vmatprep.subr.mxu0 0.0
  %2906 = vmatpush1.msra.mxu0 0.0
  %2907 = vmatprep.subr.mxu0 0.0
  %2908 = vmatpush1.msra.mxu0 0.0
  %2909 = vmatprep.subr.mxu0 0.0
  %2910 = vmatpush1.msra.mxu0 0.0
  %2911 = vmatprep.subr.mxu0 0.0
  %2912 = vmatpush1.msra.mxu0 0.0
  %2913 = vmatprep.subr.mxu0 0.0
  %2914 = vmatpush1.msra.mxu0 0.0
  %2915 = vmatprep.mubr.f32.mxu0 0.0
  %2916 = vmatmul.mubr.f32.gmra.mrb[0].mxu0 %v598
  %v2917 = vpop.f32.mrb[0].mxu0
  %v2918 = vadd.f32 %v2844, %v2917
  %v2919 = vpop.f32.mrb[0].mxu0
  %2920 = vmatprep.mubr.f32.mxu0 0.0
  %2921 = vmatmul.mubr.f32.gmra.mrb[0].mxu0 %v943
  %v2922 = vpop.f32.mrb[0].mxu0
  %v2923 = vadd.f32 %v2844, %v2922
  %v2924 = vpop.f32.mrb[0].mxu0
  %2925 = vmatprep.mubr.f32.mxu0 0.0
  %2926 = vmatmul.mubr.f32.gmra.mrb[0].mxu0 %v1288
  %v2927 = vpop.f32.mrb[0].mxu0
  %v2928 = vadd.f32 %v2844, %v2927
  %v2929 = vpop.f32.mrb[0].mxu0
  %2930 = vmatprep.mubr.f32.mxu0 0.0
  %2931 = vmatmul.mubr.f32.gmra.mrb[0].mxu0 %v1633
  %v2932 = vpop.f32.mrb[0].mxu0
  %v2933 = vadd.f32 %v2844, %v2932
  %v2934 = vpop.f32.mrb[0].mxu0
  %2935 = vmatprep.mubr.f32.mxu0 0.0
  %2936 = vmatmul.mubr.f32.gmra.mrb[0].mxu0 %v1978
  %v2937 = vpop.f32.mrb[0].mxu0
  %v2938 = vadd.f32 %v2844, %v2937
  %v2939 = vpop.f32.mrb[0].mxu0
  %2940 = vmatprep.mubr.f32.mxu0 0.0
  %2941 = vmatmul.mubr.f32.gmra.mrb[0].mxu0 %v2323
  %v2942 = vpop.f32.mrb[0].mxu0
  %v2943 = vadd.f32 %v2844, %v2942
  %v2944 = vpop.f32.mrb[0].mxu0
  %2945 = vmatprep.mubr.f32.mxu0 0.0
  %2946 = vmatmul.mubr.f32.gmra.mrb[0].mxu0 %v2668
  %v2947 = vpop.f32.mrb[0].mxu0
  %v2948 = vadd.f32 %v2844, %v2947
  %v2949 = vpop.f32.mrb[0].mxu0
  %2950 = vmatprep.mubr.f32.mxu0 0.0
  %2951 = vmatmul.mubr.f32.gmra.mrb[0].mxu0 %v2849
  %v2952 = vpop.f32.mrb[0].mxu0
  %v2953 = vadd.f32 %v2844, %v2952
  %v2954 = vpop.f32.mrb[0].mxu0
  %2955 = vdwg.mxu0
  %v2956 = vmax.f32 %v2918, 0.0
  %v2957 = vmax.f32 %v2923, 0.0
  %v2958 = vmax.f32 %v2928, 0.0
  %v2959 = vmax.f32 %v2933, 0.0
  %v2960 = vmax.f32 %v2938, 0.0
  %v2961 = vmax.f32 %v2943, 0.0
  %v2962 = vmax.f32 %v2948, 0.0
  %v2963 = vmax.f32 %v2953, 0.0
  %v2965 = vlaneseq
  %v2966 = vshrl.u32 %v2965, 7
  %v2967 = vsub.s32 0, %v2966
  %v2968 = vrot.slane %v69, %v2967
  %vm2970 = vcmask 523264
  %v2972 = vsel %vm2970, %v2956, 0
  %v2975 = vsel %vm2970, %v2957, 0
  %v2978 = vsel %vm2970, %v2958, 0
  %v2981 = vsel %vm2970, %v2959, 0
  %v2984 = vsel %vm2970, %v2960, 0
  %v2987 = vsel %vm2970, %v2961, 0
  %v2990 = vsel %vm2970, %v2962, 0
  %v2993 = vsel %vm2970, %v2963, 0
  %2995 = vmatprep.subr.mxu0 0.0
  %2996 = vmatpush1.msra.mxu0 %v61
  %2997 = vmatprep.subr.mxu0 0.0
  %2998 = vmatpush1.msra.mxu0 %v62
  %2999 = vmatprep.subr.mxu0 0.0
  %3000 = vmatpush1.msra.mxu0 %v63
  %3001 = vmatprep.subr.mxu0 0.0
  %3002 = vmatpush1.msra.mxu0 %v64
  %3003 = vmatprep.subr.mxu0 0.0
  %3004 = vmatpush1.msra.mxu0 %v65
  %3005 = vmatprep.subr.mxu0 0.0
  %3006 = vmatpush1.msra.mxu0 %v66
  %3007 = vmatprep.subr.mxu0 0.0
  %3008 = vmatpush1.msra.mxu0 %v67
  %3009 = vmatprep.subr.mxu0 0.0
  %3010 = vmatpush1.msra.mxu0 %v68
  %3011 = vmatprep.subr.mxu0 0.0
  %3012 = vmatpush1.msra.mxu0 0.0
  %3013 = vmatprep.subr.mxu0 0.0
  %3014 = vmatpush1.msra.mxu0 0.0
  %3015 = vmatprep.subr.mxu0 0.0
  %3016 = vmatpush1.msra.mxu0 0.0
  %3017 = vmatprep.subr.mxu0 0.0
  %3018 = vmatpush1.msra.mxu0 0.0
  %3019 = vmatprep.subr.mxu0 0.0
  %3020 = vmatpush1.msra.mxu0 0.0
  %3021 = vmatprep.subr.mxu0 0.0
  %3022 = vmatpush1.msra.mxu0 0.0
  %3023 = vmatprep.subr.mxu0 0.0
  %3024 = vmatpush1.msra.mxu0 0.0
  %3025 = vmatprep.subr.mxu0 0.0
  %3026 = vmatpush1.msra.mxu0 0.0
  %3027 = vmatprep.subr.mxu0 0.0
  %3028 = vmatpush1.msra.mxu0 0.0
  %3029 = vmatprep.subr.mxu0 0.0
  %3030 = vmatpush1.msra.mxu0 0.0
  %3031 = vmatprep.subr.mxu0 0.0
  %3032 = vmatpush1.msra.mxu0 0.0
  %3033 = vmatprep.subr.mxu0 0.0
  %3034 = vmatpush1.msra.mxu0 0.0
  %3035 = vmatprep.subr.mxu0 0.0
  %3036 = vmatpush1.msra.mxu0 0.0
  %3037 = vmatprep.subr.mxu0 0.0
  %3038 = vmatpush1.msra.mxu0 0.0
  %3039 = vmatprep.subr.mxu0 0.0
  %3040 = vmatpush1.msra.mxu0 0.0
  %3041 = vmatprep.subr.mxu0 0.0
  %3042 = vmatpush1.msra.mxu0 0.0
  %3043 = vmatprep.subr.mxu0 0.0
  %3044 = vmatpush1.msra.mxu0 0.0
  %3045 = vmatprep.subr.mxu0 0.0
  %3046 = vmatpush1.msra.mxu0 0.0
  %3047 = vmatprep.subr.mxu0 0.0
  %3048 = vmatpush1.msra.mxu0 0.0
  %3049 = vmatprep.subr.mxu0 0.0
  %3050 = vmatpush1.msra.mxu0 0.0
  %3051 = vmatprep.subr.mxu0 0.0
  %3052 = vmatpush1.msra.mxu0 0.0
  %3053 = vmatprep.subr.mxu0 0.0
  %3054 = vmatpush1.msra.mxu0 0.0
  %3055 = vmatprep.subr.mxu0 0.0
  %3056 = vmatpush1.msra.mxu0 0.0
  %3057 = vmatprep.subr.mxu0 0.0
  %3058 = vmatpush1.msra.mxu0 0.0
  %3059 = vmatprep.mubr.f32.mxu0 0.0
  %3060 = vmatmul.mubr.f32.gmra.mrb[0].mxu0 %v2972
  %v3061 = vpop.f32.mrb[0].mxu0
  %v3062 = vadd.f32 %v2968, %v3061
  %v3063 = vpop.f32.mrb[0].mxu0
  %3064 = vmatprep.mubr.f32.mxu0 0.0
  %3065 = vmatmul.mubr.f32.gmra.mrb[0].mxu0 %v2975
  %v3066 = vpop.f32.mrb[0].mxu0
  %v3067 = vadd.f32 %v2968, %v3066
  %v3068 = vpop.f32.mrb[0].mxu0
  %3069 = vmatprep.mubr.f32.mxu0 0.0
  %3070 = vmatmul.mubr.f32.gmra.mrb[0].mxu0 %v2978
  %v3071 = vpop.f32.mrb[0].mxu0
  %v3072 = vadd.f32 %v2968, %v3071
  %v3073 = vpop.f32.mrb[0].mxu0
  %3074 = vmatprep.mubr.f32.mxu0 0.0
  %3075 = vmatmul.mubr.f32.gmra.mrb[0].mxu0 %v2981
  %v3076 = vpop.f32.mrb[0].mxu0
  %v3077 = vadd.f32 %v2968, %v3076
  %v3078 = vpop.f32.mrb[0].mxu0
  %3079 = vmatprep.mubr.f32.mxu0 0.0
  %3080 = vmatmul.mubr.f32.gmra.mrb[0].mxu0 %v2984
  %v3081 = vpop.f32.mrb[0].mxu0
  %v3082 = vadd.f32 %v2968, %v3081
  %v3083 = vpop.f32.mrb[0].mxu0
  %3084 = vmatprep.mubr.f32.mxu0 0.0
  %3085 = vmatmul.mubr.f32.gmra.mrb[0].mxu0 %v2987
  %v3086 = vpop.f32.mrb[0].mxu0
  %v3087 = vadd.f32 %v2968, %v3086
  %v3088 = vpop.f32.mrb[0].mxu0
  %3089 = vmatprep.mubr.f32.mxu0 0.0
  %3090 = vmatmul.mubr.f32.gmra.mrb[0].mxu0 %v2990
  %v3091 = vpop.f32.mrb[0].mxu0
  %v3092 = vadd.f32 %v2968, %v3091
  %v3093 = vpop.f32.mrb[0].mxu0
  %3094 = vmatprep.mubr.f32.mxu0 0.0
  %3095 = vmatmul.mubr.f32.gmra.mrb[0].mxu0 %v2993
  %v3096 = vpop.f32.mrb[0].mxu0
  %v3097 = vadd.f32 %v2968, %v3096
  %v3098 = vpop.f32.mrb[0].mxu0
  %3099 = vdwg.mxu0
  %vm3100 = vcmask 130048
  %3101 = vst.msk [vmem:[%s11] sm:$0xff] %vm3100, %v3062
  %3102 = vst.msk [vmem:[%s11 + $0x8] sm:$0xff] %vm3100, %v3067
  %3103 = vst.msk [vmem:[%s11 + $0x10] sm:$0xff] %vm3100, %v3072
  %3104 = vst.msk [vmem:[%s11 + $0x18] sm:$0xff] %vm3100, %v3077
  %3105 = vst.msk [vmem:[%s11 + $0x20] sm:$0xff] %vm3100, %v3082
  %3106 = vst.msk [vmem:[%s11 + $0x28] sm:$0xff] %vm3100, %v3087
  %3107 = vst.msk [vmem:[%s11 + $0x30] sm:$0xff] %vm3100, %v3092
  %3108 = vst.msk [vmem:[%s11 + $0x38] sm:$0xff] %vm3100, %v3097
  // Predicated region
  $region46: #{decoder_lstm_forward.1} parent=0 // pred_check
    _
  $region47: #{decoder_lstm_forward.1} parent=0 // pred_check_branch
    %3110 = sbr.rel (0) target = $region49
  $region48: #{decoder_lstm_forward.1} parent=0 // pred_region
    _
  $region49: #{decoder_lstm_forward.1} parent=0 // pred_fallthru
    _
  // Predicated region
  $region50: #{decoder_lstm_forward.1} parent=0 // pred_check
    _
  $region51: #{decoder_lstm_forward.1} parent=0 // pred_check_branch
    %3112 = sbr.rel (0) target = $region53
  $region52: #{decoder_lstm_forward.1} parent=0 // pred_region
    _
  $region53: #{decoder_lstm_forward.1} parent=0 // pred_fallthru
    _

</llo_original>
